<compile_context>
chip_gen: v5e
topology: v5e:2x2
jax: 0.10.0
libtpu: 0.0.40
codegen_flags: <defaults>
</compile_context>

<pallas_src>
import functools

import jax
import jax.numpy as jnp
from jax import lax
from jax.experimental import pallas as pl
from jax.experimental.pallas import tpu as pltpu

_MATMUL_DTYPE = jnp.bfloat16  # MXU operand dtype; c state / gates / accum stay f32


# ------------------------------ small helpers -------------------------------
def _round_up(x, m):
    return ((x + m - 1) // m) * m


def _vmem_limit():
    """Per-generation VMEM budget (v5e/v6e: 128 MiB phys, v7x: 64 MiB)."""
    try:
        cap = pltpu.get_tpu_info().vmem_capacity_bytes
        return max(min(cap - (16 << 20), 100 << 20), 32 << 20)
    except Exception:  # pragma: no cover - conservative fallback
        return 32 << 20


def _pick_t_chunk(T, Bp, Ein, Hp, O, budget_bytes, t_chunk_max):
    """Largest time chunk whose working set fits the VMEM budget."""
    G = 4 * Hp

    def est(tc):
        rows = tc * Bp
        return (2 * rows * Ein * 2                     # double-buffered bf16 x chunks
                + 2 * rows * max(Hp * 2, O * 4)        # double-buffered output chunks
                + rows * G * 4                         # gx scratch (f32)
                + rows * Hp * 2                        # head h-chunk buffer (bf16)
                + (Ein + Hp) * G * 2                   # grid-invariant weights (bf16)
                + Bp * Hp * 6)                         # h (bf16) + c (f32) state

    tc = max(1, min(T, t_chunk_max))
    while tc > 1 and est(tc) > budget_bytes:
        tc = max(1, tc // 2)
    return tc


def _prep_gates(w, H, Hp):
    """Torch gate order (i,f,g,o) -> (i,f,o,g), zero-pad each gate H->Hp (axis 0)."""
    blocks = [w[0:H], w[H:2 * H], w[3 * H:4 * H], w[2 * H:3 * H]]   # i, f, o, g
    pad_width = ((0, Hp - H),) + ((0, 0),) * (w.ndim - 1)
    return jnp.concatenate([jnp.pad(b, pad_width) for b in blocks], axis=0)


# ------------------------------ fused LSTM layer -----------------------------
def _lstm_cell_loop(gx_scr, whh_ref, h_scr, c_scr, store_h, *, Hp, Bp, Tc, unroll):
    """Sequential LSTM recurrence over one time chunk (gates precomputed in gx_scr)."""

    def step(j, carry):
        off = pl.multiple_of(j * Bp, Bp)
        # Only the h-recurrence matmul sits on the serial critical path.
        gates = gx_scr[pl.ds(off, Bp), :] + jnp.dot(
            h_scr[...], whh_ref[...], preferred_element_type=jnp.float32)
        # permuted gate order (i, f, o | g): one sigmoid slab + one tanh slab
        sig = jax.nn.sigmoid(gates[:, :3 * Hp])
        g = jnp.tanh(gates[:, 3 * Hp:])
        i = sig[:, :Hp]
        f = sig[:, Hp:2 * Hp]
        o = sig[:, 2 * Hp:]
        c = f * c_scr[...] + i * g
        h = o * jnp.tanh(c)
        c_scr[...] = c
        h_scr[...] = h.astype(h_scr.dtype)   # bf16 shadow feeds next step's MXU push
        store_h(off, h)
        return carry

    lax.fori_loop(0, Tc, step, 0, unroll=unroll)


def _lstm_layer_kernel(x_ref, wih_ref, whh_ref, b_ref, out_ref,
                       gx_scr, h_scr, c_scr, *, Hp, Bp, Tc, unroll):
    @pl.when(pl.program_id(0) == 0)
    def _():
        h_scr[...] = jnp.zeros_like(h_scr)
        c_scr[...] = jnp.zeros_like(c_scr)

    # chunk prologue: hoisted x-projection (one big MXU matmul, off serial chain)
    gx_scr[...] = jnp.dot(x_ref[...], wih_ref[...],
                          preferred_element_type=jnp.float32) + b_ref[...]

    def store_h(off, h):
        out_ref[pl.ds(off, Bp), :] = h.astype(out_ref.dtype)

    _lstm_cell_loop(gx_scr, whh_ref, h_scr, c_scr, store_h,
                    Hp=Hp, Bp=Bp, Tc=Tc, unroll=unroll)


def _lstm_layer_head_kernel(x_ref, wih_ref, whh_ref, b_ref, wc_ref, bc_ref,
                            out_ref, gx_scr, h_scr, c_scr, hbuf_scr,
                            *, Hp, Bp, Tc, unroll):
    @pl.when(pl.program_id(0) == 0)
    def _():
        h_scr[...] = jnp.zeros_like(h_scr)
        c_scr[...] = jnp.zeros_like(c_scr)

    gx_scr[...] = jnp.dot(x_ref[...], wih_ref[...],
                          preferred_element_type=jnp.float32) + b_ref[...]

    def store_h(off, h):
        hbuf_scr[pl.ds(off, Bp), :] = h.astype(hbuf_scr.dtype)

    _lstm_cell_loop(gx_scr, whh_ref, h_scr, c_scr, store_h,
                    Hp=Hp, Bp=Bp, Tc=Tc, unroll=unroll)

    # chunk epilogue: folded dense1->dense2 head as ONE matmul (off serial chain)
    out_ref[...] = (jnp.dot(hbuf_scr[...], wc_ref[...],
                            preferred_element_type=jnp.float32)
                    + bc_ref[...]).astype(out_ref.dtype)


def lstm_layer_pallas(x_flat, w_ih_t, w_hh_t, bias2d, *, Bp, Tc, head=None):
    """One LSTM layer (+ optional fused eval head).

    x_flat: [Tpad*Bp, Ein] bf16 (row = timestep-major, batch-minor)
    w_ih_t: [Ein, 4Hp] bf16, w_hh_t: [Hp, 4Hp] bf16, bias2d: [1, 4Hp] f32.
    Returns [Tpad*Bp, Hp] bf16, or [Tpad*Bp, O] f32 if head=(w_comb, b_comb).
    """
    N, Ein = x_flat.shape
    G = w_ih_t.shape[1]
    Hp = G // 4
    rows = Tc * Bp
    n_chunks = N // rows
    unroll = min(Tc, 8)

    base_in_specs = [
        pl.BlockSpec((rows, Ein), lambda t: (t, 0)),   # time-chunk of inputs
        pl.BlockSpec((Ein, G), lambda t: (0, 0)),      # grid-invariant weights
        pl.BlockSpec((Hp, G), lambda t: (0, 0)),
        pl.BlockSpec((1, G), lambda t: (0, 0)),
    ]
    scratch = [
        pltpu.VMEM((rows, G), jnp.float32),            # per-chunk gx (never hits HBM)
        pltpu.VMEM((Bp, Hp), jnp.bfloat16),            # h state (persists across chunks)
        pltpu.VMEM((Bp, Hp), jnp.float32),             # c state (persists across chunks)
    ]

    if head is None:
        kernel = functools.partial(_lstm_layer_kernel,
                                   Hp=Hp, Bp=Bp, Tc=Tc, unroll=unroll)
        out_dim, out_dtype = Hp, jnp.bfloat16
        extra_in, extra_specs = [], []
    else:
        w_c, b_c = head
        out_dim, out_dtype = w_c.shape[1], jnp.float32
        kernel = functools.partial(_lstm_layer_head_kernel,
                                   Hp=Hp, Bp=Bp, Tc=Tc, unroll=unroll)
        extra_in = [w_c, b_c]
        extra_specs = [pl.BlockSpec((Hp, out_dim), lambda t: (0, 0)),
                       pl.BlockSpec((1, out_dim), lambda t: (0, 0))]
        scratch.append(pltpu.VMEM((rows, Hp), jnp.bfloat16))   # per-chunk h buffer

    return pl.pallas_call(
        kernel,
        out_shape=jax.ShapeDtypeStruct((N, out_dim), out_dtype),
        grid_spec=pltpu.PrefetchScalarGridSpec(
            num_scalar_prefetch=0,
            grid=(n_chunks,),
            in_specs=base_in_specs + extra_specs,
            out_specs=pl.BlockSpec((rows, out_dim), lambda t: (t, 0)),
            scratch_shapes=scratch,
        ),
        compiler_params=pltpu.CompilerParams(
            dimension_semantics=("arbitrary",),        # recurrence is sequential
            vmem_limit_bytes=_vmem_limit()),
    )(x_flat, w_ih_t, w_hh_t, bias2d, *extra_in)


# ------------------------------ full model wrapper ---------------------------
def lstm_model_forward(tokens, params, t_chunk=32):
    """tokens: int32 [B, T] -> logits f32 [B, T, output_dim] (eval mode)."""
    B, T = tokens.shape
    L = params["num_layers"]
    H = params["w_hh_l0"].shape[1]
    E = params["embedding"].shape[1]
    O = params["dense2_w"].shape[0]

    Hp = _round_up(H, 128)   # lane-dense hidden width (padded cols stay exactly 0)
    Bp = _round_up(B, 8)     # sublane-aligned batch

    # Fold dense1 -> dense2 (eval: bn=Identity, activation=None, dropout=identity).
    w_comb = jnp.dot(params["dense1_w"].T, params["dense2_w"].T)                 # [H, O]
    b_comb = jnp.dot(params["dense1_b"], params["dense2_w"].T) + params["dense2_b"]
    w_comb = jnp.pad(w_comb, ((0, Hp - H), (0, 0))).astype(_MATMUL_DTYPE)        # [Hp, O]
    b_comb = jnp.asarray(b_comb[None, :], jnp.float32)                           # [1, O]

    # VMEM-derived chunk size + ragged-T guard (avoid the Tc=1 cliff).
    tc = _pick_t_chunk(T, Bp, max(E, Hp), Hp, O, _vmem_limit() // 2, t_chunk)
    n_chunks = -(-T // tc)
    Tc = -(-T // n_chunks)
    Tpad = Tc * n_chunks

    # Time-major embedding gather, pad T/B, fold (T, B) into a dense row dim.
    x = jnp.take(params["embedding"], tokens.T, axis=0)                          # [T, B, E]
    x = jnp.pad(x, ((0, Tpad - T), (0, Bp - B), (0, 0)))
    x_flat = x.reshape(Tpad * Bp, E).astype(_MATMUL_DTYPE)                       # [Tpad*Bp, E]

    for layer in range(L):
        in_dim = x_flat.shape[1]
        w_ih = _prep_gates(params[f"w_ih_l{layer}"], H, Hp)                      # [4Hp, In0]
        if w_ih.shape[1] < in_dim:                                               # pad h-input cols
            w_ih = jnp.pad(w_ih, ((0, 0), (0, in_dim - w_ih.shape[1])))
        w_ih_t = w_ih.T.astype(_MATMUL_DTYPE)                                    # [In, 4Hp]

        w_hh = _prep_gates(params[f"w_hh_l{layer}"], H, Hp)                      # [4Hp, H]
        w_hh = jnp.pad(w_hh, ((0, 0), (0, Hp - H)))
        w_hh_t = w_hh.T.astype(_MATMUL_DTYPE)                                    # [Hp, 4Hp]

        bias = _prep_gates(params[f"b_ih_l{layer}"] + params[f"b_hh_l{layer}"], H, Hp)
        bias2d = jnp.asarray(bias[None, :], jnp.float32)                         # [1, 4Hp]

        head = (w_comb, b_comb) if layer == L - 1 else None
        x_flat = lstm_layer_pallas(x_flat, w_ih_t, w_hh_t, bias2d,
                                   Bp=Bp, Tc=Tc, head=head)

    y = x_flat.reshape(Tpad, Bp, O)[:T, :B]      # drop T / B padding
    return jnp.swapaxes(y, 0, 1)                 # [B, T, O]


# ------------------------------ pure-JAX reference ---------------------------
def _lstm_layer_ref(x_bte, w_ih, w_hh, b_ih, b_hh):
    B, T, E = x_bte.shape
    H = w_hh.shape[1]
    b = b_ih + b_hh

    def step(carry, xt):
        h, c = carry
        gates = xt @ w_ih.T + h @ w_hh.T + b
        i, f, g, o = jnp.split(gates, 4, axis=-1)
        i, f, o = jax.nn.sigmoid(i), jax.nn.sigmoid(f), jax.nn.sigmoid(o)
        g = jnp.tanh(g)
        c = f * c + i * g
        h = o * jnp.tanh(c)
        return (h, c), h

    init = (jnp.zeros((B, H), jnp.float32), jnp.zeros((B, H), jnp.float32))
    _, hs = jax.lax.scan(step, init, jnp.swapaxes(x_bte, 0, 1))
    return jnp.swapaxes(hs, 0, 1)


def lstm_model_ref(tokens, params):
    x = jnp.take(params["embedding"], tokens, axis=0)
    for layer in range(params["num_layers"]):
        x = _lstm_layer_ref(
            x,
            params[f"w_ih_l{layer}"], params[f"w_hh_l{layer}"],
            params[f"b_ih_l{layer}"], params[f"b_hh_l{layer}"],
        )
    x = x @ params["dense1_w"].T + params["dense1_b"]
    x = x @ params["dense2_w"].T + params["dense2_b"]
    return x


# ---------------------------------- params -----------------------------------
def init_params(key, vocab_size, embedding_dim, lstm_units, num_layers, output_dim):
    keys = iter(jax.random.split(key, 32))
    p = {"num_layers": num_layers}
    p["embedding"] = jax.random.normal(next(keys), (vocab_size, embedding_dim), jnp.float32)
    k = 1.0 / jnp.sqrt(lstm_units)
    for layer in range(num_layers):
        in_dim = embedding_dim if layer == 0 else lstm_units
        p[f"w_ih_l{layer}"] = jax.random.uniform(next(keys), (4 * lstm_units, in_dim), jnp.float32, -k, k)
        p[f"w_hh_l{layer}"] = jax.random.uniform(next(keys), (4 * lstm_units, lstm_units), jnp.float32, -k, k)
        p[f"b_ih_l{layer}"] = jax.random.uniform(next(keys), (4 * lstm_units,), jnp.float32, -k, k)
        p[f"b_hh_l{layer}"] = jax.random.uniform(next(keys), (4 * lstm_units,), jnp.float32, -k, k)
    p["dense1_w"] = jax.random.uniform(next(keys), (lstm_units, lstm_units), jnp.float32, -k, k)
    p["dense1_b"] = jax.random.uniform(next(keys), (lstm_units,), jnp.float32, -k, k)
    ko = 1.0 / jnp.sqrt(lstm_units)
    p["dense2_w"] = jax.random.uniform(next(keys), (output_dim, lstm_units), jnp.float32, -ko, ko)
    p["dense2_b"] = jax.random.uniform(next(keys), (output_dim,), jnp.float32, -ko, ko)
    return p


if __name__ == "__main__":
    VOCAB, EMB, H, LAYERS, OUT = 32, 32, 64, 2, 2

    key = jax.random.PRNGKey(0)
    k_tok, k_par, k_tok2 = jax.random.split(key, 3)
    params = init_params(k_par, VOCAB, EMB, H, LAYERS, OUT)

    # Small shape (single chunk; exercises H->128 / B->8 padding).
    B, T = 2, 8
    tokens = jax.random.randint(k_tok, (B, T), 0, VOCAB, dtype=jnp.int32)
    out = jax.block_until_ready(lstm_model_forward(tokens, params))
    assert out.shape == (B, T, OUT), out.shape
    ref = jax.block_until_ready(lstm_model_ref(tokens, params))
    assert jnp.all(jnp.isfinite(out))
    # bf16 MXU operands vs pure-f32 reference -> slightly relaxed tolerance.
    assert jnp.allclose(out, ref, atol=2e-2, rtol=2e-2), float(jnp.max(jnp.abs(out - ref)))

    # Longer, chunk-ragged sequence: exercises multi-chunk recurrence with
    # persistent VMEM state and the ragged-T padding guard.
    B2, T2 = 2, 40
    tokens2 = jax.random.randint(k_tok2, (B2, T2), 0, VOCAB, dtype=jnp.int32)
    out2 = jax.block_until_ready(lstm_model_forward(tokens2, params, t_chunk=16))
    ref2 = jax.block_until_ready(lstm_model_ref(tokens2, params))
    assert out2.shape == (B2, T2, OUT), out2.shape
    assert jnp.all(jnp.isfinite(out2))
    assert jnp.allclose(out2, ref2, atol=5e-2, rtol=5e-2), float(jnp.max(jnp.abs(out2 - ref2)))

    print("KERNEL_OK")
</pallas_src>

<mosaic_0001>
module attributes {stable_mosaic.version = 11 : i64} {
  func.func @_lstm_layer_kernel(%arg0: i32, %arg1: memref<64x32xbf16, #tpu.memory_space<vmem>>, %arg2: memref<32x512xbf16, #tpu.memory_space<vmem>>, %arg3: memref<128x512xbf16, #tpu.memory_space<vmem>>, %arg4: memref<1x512xf32, #tpu.memory_space<vmem>>, %arg5: memref<64x128xbf16, #tpu.memory_space<vmem>>, %arg6: memref<64x512xf32, #tpu.memory_space<vmem>>, %arg7: memref<8x128xbf16, #tpu.memory_space<vmem>>, %arg8: memref<8x128xf32, #tpu.memory_space<vmem>>) attributes {dimension_semantics = [#tpu.dimension_semantics<arbitrary>], iteration_bounds = array<i64: 1>, scalar_prefetch = 0 : i64, scratch_operands = 3 : i64, tpu.core_type = #tpu.core_type<tc>, window_params = [{transform_indices = @transform_0, window_bounds = array<i64: 64, 32>}, {pipeline_mode = #tpu.pipeline_mode<synchronous>, transform_indices = @transform_1, window_bounds = array<i64: 32, 512>}, {pipeline_mode = #tpu.pipeline_mode<synchronous>, transform_indices = @transform_2, window_bounds = array<i64: 128, 512>}, {pipeline_mode = #tpu.pipeline_mode<synchronous>, transform_indices = @transform_3, window_bounds = array<i64: 1, 512>}, {transform_indices = @transform_4, window_bounds = array<i64: 64, 128>}]} {
    %c0_i32 = arith.constant 0 : i32
    %0 = arith.cmpi eq, %arg0, %c0_i32 : i32
    %1 = arith.extui %0 : i1 to i32
    %c0_i32_0 = arith.constant 0 : i32
    %2 = arith.cmpi ne, %1, %c0_i32_0 : i32
    scf.if %2 {
      %cst_129 = arith.constant 0.000000e+00 : bf16
      %258 = vector.broadcast %cst_129 : bf16 to vector<8x128xbf16>
      %c0_130 = arith.constant 0 : index
      %c0_131 = arith.constant 0 : index
      %259 = vector.load %arg7[%c0_130, %c0_131] : memref<8x128xbf16, #tpu.memory_space<vmem>>, vector<8x128xbf16>
      tpu.vector_store %arg7[%c0_130, %c0_131], %258 {strides = array<i32>} : memref<8x128xbf16, #tpu.memory_space<vmem>>, vector<8x128xbf16>,
      %cst_132 = arith.constant 0.000000e+00 : f32
      %260 = vector.broadcast %cst_132 : f32 to vector<8x128xf32>
      %c0_133 = arith.constant 0 : index
      %c0_134 = arith.constant 0 : index
      %261 = vector.load %arg8[%c0_133, %c0_134] : memref<8x128xf32, #tpu.memory_space<vmem>>, vector<8x128xf32>
      tpu.vector_store %arg8[%c0_133, %c0_134], %260 {strides = array<i32>} : memref<8x128xf32, #tpu.memory_space<vmem>>, vector<8x128xf32>,
    } else {
    }
    %c0 = arith.constant 0 : index
    %c0_1 = arith.constant 0 : index
    %3 = vector.load %arg1[%c0, %c0_1] : memref<64x32xbf16, #tpu.memory_space<vmem>>, vector<64x32xbf16>
    %c0_2 = arith.constant 0 : index
    %c0_3 = arith.constant 0 : index
    %4 = vector.load %arg2[%c0_2, %c0_3] : memref<32x512xbf16, #tpu.memory_space<vmem>>, vector<32x512xbf16>
    %cst = arith.constant dense<0.000000e+00> : vector<64x512xf32>
    %5 = tpu.matmul %3, %4, %cst {dimension_numbers = #tpu.dot_dimension_numbers<[1], [0], [0], [1], [0, 0, 1, 1], [], []>} : vector<64x32xbf16>, vector<32x512xbf16>, vector<64x512xf32> -> vector<64x512xf32>
    %c0_4 = arith.constant 0 : index
    %c0_5 = arith.constant 0 : index
    %6 = vector.load %arg4[%c0_4, %c0_5] : memref<1x512xf32, #tpu.memory_space<vmem>>, vector<1x512xf32>
    %7 = vector.broadcast %6 : vector<1x512xf32> to vector<64x512xf32>
    %8 = arith.addf %5, %7 : vector<64x512xf32>
    %c0_6 = arith.constant 0 : index
    %c0_7 = arith.constant 0 : index
    %9 = vector.load %arg6[%c0_6, %c0_7] : memref<64x512xf32, #tpu.memory_space<vmem>>, vector<64x512xf32>
    tpu.vector_store %arg6[%c0_6, %c0_7], %8 {strides = array<i32>} : memref<64x512xf32, #tpu.memory_space<vmem>>, vector<64x512xf32>,
    %c0_i32_8 = arith.constant 0 : i32
    %c8_i32 = arith.constant 8 : i32
    %10 = arith.muli %c0_i32_8, %c8_i32 : i32
    %11 = tpu.assume_multiple %10, 8 : i32
    %12 = arith.index_cast %11 : i32 to index
    %c0_9 = arith.constant 0 : index
    %13 = vector.load %arg6[%12, %c0_9] : memref<64x512xf32, #tpu.memory_space<vmem>>, vector<8x512xf32>
    %c0_10 = arith.constant 0 : index
    %c0_11 = arith.constant 0 : index
    %14 = vector.load %arg7[%c0_10, %c0_11] : memref<8x128xbf16, #tpu.memory_space<vmem>>, vector<8x128xbf16>
    %c0_12 = arith.constant 0 : index
    %c0_13 = arith.constant 0 : index
    %15 = vector.load %arg3[%c0_12, %c0_13] : memref<128x512xbf16, #tpu.memory_space<vmem>>, vector<128x512xbf16>
    %cst_14 = arith.constant dense<0.000000e+00> : vector<8x512xf32>
    %16 = tpu.matmul %14, %15, %cst_14 {dimension_numbers = #tpu.dot_dimension_numbers<[1], [0], [0], [1], [0, 0, 1, 1], [], []>} : vector<8x128xbf16>, vector<128x512xbf16>, vector<8x512xf32> -> vector<8x512xf32>
    %17 = arith.addf %13, %16 : vector<8x512xf32>
    %18 = vector.extract_strided_slice %17 {offsets = [0, 0], sizes = [8, 384], strides = [1, 1]} : vector<8x512xf32> to vector<8x384xf32>
    %19 = arith.negf %18 : vector<8x384xf32>
    %20 = math.exp %19 : vector<8x384xf32>
    %cst_15 = arith.constant 1.000000e+00 : f32
    %21 = vector.broadcast %cst_15 : f32 to vector<8x384xf32>
    %22 = arith.addf %21, %20 : vector<8x384xf32>
    %23 = arith.divf %21, %22 : vector<8x384xf32>
    %24 = vector.extract_strided_slice %17 {offsets = [0, 384], sizes = [8, 128], strides = [1, 1]} : vector<8x512xf32> to vector<8x128xf32>
    %25 = math.tanh %24 : vector<8x128xf32>
    %26 = vector.extract_strided_slice %23 {offsets = [0, 0], sizes = [8, 128], strides = [1, 1]} : vector<8x384xf32> to vector<8x128xf32>
    %27 = vector.extract_strided_slice %23 {offsets = [0, 128], sizes = [8, 128], strides = [1, 1]} : vector<8x384xf32> to vector<8x128xf32>
    %28 = vector.extract_strided_slice %23 {offsets = [0, 256], sizes = [8, 128], strides = [1, 1]} : vector<8x384xf32> to vector<8x128xf32>
    %c0_16 = arith.constant 0 : index
    %c0_17 = arith.constant 0 : index
    %29 = vector.load %arg8[%c0_16, %c0_17] : memref<8x128xf32, #tpu.memory_space<vmem>>, vector<8x128xf32>
    %30 = arith.mulf %27, %29 : vector<8x128xf32>
    %31 = arith.mulf %26, %25 : vector<8x128xf32>
    %32 = arith.addf %30, %31 : vector<8x128xf32>
    %33 = math.tanh %32 : vector<8x128xf32>
    %34 = arith.mulf %28, %33 : vector<8x128xf32>
    %c0_18 = arith.constant 0 : index
    %c0_19 = arith.constant 0 : index
    %35 = vector.load %arg8[%c0_18, %c0_19] : memref<8x128xf32, #tpu.memory_space<vmem>>, vector<8x128xf32>
    tpu.vector_store %arg8[%c0_18, %c0_19], %32 {strides = array<i32>} : memref<8x128xf32, #tpu.memory_space<vmem>>, vector<8x128xf32>,
    %36 = arith.truncf %34 : vector<8x128xf32> to vector<8x128xbf16>
    %c0_20 = arith.constant 0 : index
    %c0_21 = arith.constant 0 : index
    %37 = vector.load %arg7[%c0_20, %c0_21] : memref<8x128xbf16, #tpu.memory_space<vmem>>, vector<8x128xbf16>
    tpu.vector_store %arg7[%c0_20, %c0_21], %36 {strides = array<i32>} : memref<8x128xbf16, #tpu.memory_space<vmem>>, vector<8x128xbf16>,
    %38 = arith.truncf %34 : vector<8x128xf32> to vector<8x128xbf16>
    %39 = arith.index_cast %11 : i32 to index
    %c0_22 = arith.constant 0 : index
    %40 = vector.load %arg5[%39, %c0_22] : memref<64x128xbf16, #tpu.memory_space<vmem>>, vector<8x128xbf16>
    tpu.vector_store %arg5[%39, %c0_22], %38 {strides = array<i32>} : memref<64x128xbf16, #tpu.memory_space<vmem>>, vector<8x128xbf16>,
    %c1_i32 = arith.constant 1 : i32
    %c8_i32_23 = arith.constant 8 : i32
    %41 = arith.muli %c1_i32, %c8_i32_23 : i32
    %42 = tpu.assume_multiple %41, 8 : i32
    %43 = arith.index_cast %42 : i32 to index
    %c0_24 = arith.constant 0 : index
    %44 = vector.load %arg6[%43, %c0_24] : memref<64x512xf32, #tpu.memory_space<vmem>>, vector<8x512xf32>
    %c0_25 = arith.constant 0 : index
    %c0_26 = arith.constant 0 : index
    %45 = vector.load %arg7[%c0_25, %c0_26] : memref<8x128xbf16, #tpu.memory_space<vmem>>, vector<8x128xbf16>
    %c0_27 = arith.constant 0 : index
    %c0_28 = arith.constant 0 : index
    %46 = vector.load %arg3[%c0_27, %c0_28] : memref<128x512xbf16, #tpu.memory_space<vmem>>, vector<128x512xbf16>
    %cst_29 = arith.constant dense<0.000000e+00> : vector<8x512xf32>
    %47 = tpu.matmul %45, %46, %cst_29 {dimension_numbers = #tpu.dot_dimension_numbers<[1], [0], [0], [1], [0, 0, 1, 1], [], []>} : vector<8x128xbf16>, vector<128x512xbf16>, vector<8x512xf32> -> vector<8x512xf32>
    %48 = arith.addf %44, %47 : vector<8x512xf32>
    %49 = vector.extract_strided_slice %48 {offsets = [0, 0], sizes = [8, 384], strides = [1, 1]} : vector<8x512xf32> to vector<8x384xf32>
    %50 = arith.negf %49 : vector<8x384xf32>
    %51 = math.exp %50 : vector<8x384xf32>
    %cst_30 = arith.constant 1.000000e+00 : f32
    %52 = vector.broadcast %cst_30 : f32 to vector<8x384xf32>
    %53 = arith.addf %52, %51 : vector<8x384xf32>
    %54 = arith.divf %52, %53 : vector<8x384xf32>
    %55 = vector.extract_strided_slice %48 {offsets = [0, 384], sizes = [8, 128], strides = [1, 1]} : vector<8x512xf32> to vector<8x128xf32>
    %56 = math.tanh %55 : vector<8x128xf32>
    %57 = vector.extract_strided_slice %54 {offsets = [0, 0], sizes = [8, 128], strides = [1, 1]} : vector<8x384xf32> to vector<8x128xf32>
    %58 = vector.extract_strided_slice %54 {offsets = [0, 128], sizes = [8, 128], strides = [1, 1]} : vector<8x384xf32> to vector<8x128xf32>
    %59 = vector.extract_strided_slice %54 {offsets = [0, 256], sizes = [8, 128], strides = [1, 1]} : vector<8x384xf32> to vector<8x128xf32>
    %c0_31 = arith.constant 0 : index
    %c0_32 = arith.constant 0 : index
    %60 = vector.load %arg8[%c0_31, %c0_32] : memref<8x128xf32, #tpu.memory_space<vmem>>, vector<8x128xf32>
    %61 = arith.mulf %58, %60 : vector<8x128xf32>
    %62 = arith.mulf %57, %56 : vector<8x128xf32>
    %63 = arith.addf %61, %62 : vector<8x128xf32>
    %64 = math.tanh %63 : vector<8x128xf32>
    %65 = arith.mulf %59, %64 : vector<8x128xf32>
    %c0_33 = arith.constant 0 : index
    %c0_34 = arith.constant 0 : index
    %66 = vector.load %arg8[%c0_33, %c0_34] : memref<8x128xf32, #tpu.memory_space<vmem>>, vector<8x128xf32>
    tpu.vector_store %arg8[%c0_33, %c0_34], %63 {strides = array<i32>} : memref<8x128xf32, #tpu.memory_space<vmem>>, vector<8x128xf32>,
    %67 = arith.truncf %65 : vector<8x128xf32> to vector<8x128xbf16>
    %c0_35 = arith.constant 0 : index
    %c0_36 = arith.constant 0 : index
    %68 = vector.load %arg7[%c0_35, %c0_36] : memref<8x128xbf16, #tpu.memory_space<vmem>>, vector<8x128xbf16>
    tpu.vector_store %arg7[%c0_35, %c0_36], %67 {strides = array<i32>} : memref<8x128xbf16, #tpu.memory_space<vmem>>, vector<8x128xbf16>,
    %69 = arith.truncf %65 : vector<8x128xf32> to vector<8x128xbf16>
    %70 = arith.index_cast %42 : i32 to index
    %c0_37 = arith.constant 0 : index
    %71 = vector.load %arg5[%70, %c0_37] : memref<64x128xbf16, #tpu.memory_space<vmem>>, vector<8x128xbf16>
    tpu.vector_store %arg5[%70, %c0_37], %69 {strides = array<i32>} : memref<64x128xbf16, #tpu.memory_space<vmem>>, vector<8x128xbf16>,
    %c2_i32 = arith.constant 2 : i32
    %c8_i32_38 = arith.constant 8 : i32
    %72 = arith.muli %c2_i32, %c8_i32_38 : i32
    %73 = tpu.assume_multiple %72, 8 : i32
    %74 = arith.index_cast %73 : i32 to index
    %c0_39 = arith.constant 0 : index
    %75 = vector.load %arg6[%74, %c0_39] : memref<64x512xf32, #tpu.memory_space<vmem>>, vector<8x512xf32>
    %c0_40 = arith.constant 0 : index
    %c0_41 = arith.constant 0 : index
    %76 = vector.load %arg7[%c0_40, %c0_41] : memref<8x128xbf16, #tpu.memory_space<vmem>>, vector<8x128xbf16>
    %c0_42 = arith.constant 0 : index
    %c0_43 = arith.constant 0 : index
    %77 = vector.load %arg3[%c0_42, %c0_43] : memref<128x512xbf16, #tpu.memory_space<vmem>>, vector<128x512xbf16>
    %cst_44 = arith.constant dense<0.000000e+00> : vector<8x512xf32>
    %78 = tpu.matmul %76, %77, %cst_44 {dimension_numbers = #tpu.dot_dimension_numbers<[1], [0], [0], [1], [0, 0, 1, 1], [], []>} : vector<8x128xbf16>, vector<128x512xbf16>, vector<8x512xf32> -> vector<8x512xf32>
    %79 = arith.addf %75, %78 : vector<8x512xf32>
    %80 = vector.extract_strided_slice %79 {offsets = [0, 0], sizes = [8, 384], strides = [1, 1]} : vector<8x512xf32> to vector<8x384xf32>
    %81 = arith.negf %80 : vector<8x384xf32>
    %82 = math.exp %81 : vector<8x384xf32>
    %cst_45 = arith.constant 1.000000e+00 : f32
    %83 = vector.broadcast %cst_45 : f32 to vector<8x384xf32>
    %84 = arith.addf %83, %82 : vector<8x384xf32>
    %85 = arith.divf %83, %84 : vector<8x384xf32>
    %86 = vector.extract_strided_slice %79 {offsets = [0, 384], sizes = [8, 128], strides = [1, 1]} : vector<8x512xf32> to vector<8x128xf32>
    %87 = math.tanh %86 : vector<8x128xf32>
    %88 = vector.extract_strided_slice %85 {offsets = [0, 0], sizes = [8, 128], strides = [1, 1]} : vector<8x384xf32> to vector<8x128xf32>
    %89 = vector.extract_strided_slice %85 {offsets = [0, 128], sizes = [8, 128], strides = [1, 1]} : vector<8x384xf32> to vector<8x128xf32>
    %90 = vector.extract_strided_slice %85 {offsets = [0, 256], sizes = [8, 128], strides = [1, 1]} : vector<8x384xf32> to vector<8x128xf32>
    %c0_46 = arith.constant 0 : index
    %c0_47 = arith.constant 0 : index
    %91 = vector.load %arg8[%c0_46, %c0_47] : memref<8x128xf32, #tpu.memory_space<vmem>>, vector<8x128xf32>
    %92 = arith.mulf %89, %91 : vector<8x128xf32>
    %93 = arith.mulf %88, %87 : vector<8x128xf32>
    %94 = arith.addf %92, %93 : vector<8x128xf32>
    %95 = math.tanh %94 : vector<8x128xf32>
    %96 = arith.mulf %90, %95 : vector<8x128xf32>
    %c0_48 = arith.constant 0 : index
    %c0_49 = arith.constant 0 : index
    %97 = vector.load %arg8[%c0_48, %c0_49] : memref<8x128xf32, #tpu.memory_space<vmem>>, vector<8x128xf32>
    tpu.vector_store %arg8[%c0_48, %c0_49], %94 {strides = array<i32>} : memref<8x128xf32, #tpu.memory_space<vmem>>, vector<8x128xf32>,
    %98 = arith.truncf %96 : vector<8x128xf32> to vector<8x128xbf16>
    %c0_50 = arith.constant 0 : index
    %c0_51 = arith.constant 0 : index
    %99 = vector.load %arg7[%c0_50, %c0_51] : memref<8x128xbf16, #tpu.memory_space<vmem>>, vector<8x128xbf16>
    tpu.vector_store %arg7[%c0_50, %c0_51], %98 {strides = array<i32>} : memref<8x128xbf16, #tpu.memory_space<vmem>>, vector<8x128xbf16>,
    %100 = arith.truncf %96 : vector<8x128xf32> to vector<8x128xbf16>
    %101 = arith.index_cast %73 : i32 to index
    %c0_52 = arith.constant 0 : index
    %102 = vector.load %arg5[%101, %c0_52] : memref<64x128xbf16, #tpu.memory_space<vmem>>, vector<8x128xbf16>
    tpu.vector_store %arg5[%101, %c0_52], %100 {strides = array<i32>} : memref<64x128xbf16, #tpu.memory_space<vmem>>, vector<8x128xbf16>,
    %c3_i32 = arith.constant 3 : i32
    %c8_i32_53 = arith.constant 8 : i32
    %103 = arith.muli %c3_i32, %c8_i32_53 : i32
    %104 = tpu.assume_multiple %103, 8 : i32
    %105 = arith.index_cast %104 : i32 to index
    %c0_54 = arith.constant 0 : index
    %106 = vector.load %arg6[%105, %c0_54] : memref<64x512xf32, #tpu.memory_space<vmem>>, vector<8x512xf32>
    %c0_55 = arith.constant 0 : index
    %c0_56 = arith.constant 0 : index
    %107 = vector.load %arg7[%c0_55, %c0_56] : memref<8x128xbf16, #tpu.memory_space<vmem>>, vector<8x128xbf16>
    %c0_57 = arith.constant 0 : index
    %c0_58 = arith.constant 0 : index
    %108 = vector.load %arg3[%c0_57, %c0_58] : memref<128x512xbf16, #tpu.memory_space<vmem>>, vector<128x512xbf16>
    %cst_59 = arith.constant dense<0.000000e+00> : vector<8x512xf32>
    %109 = tpu.matmul %107, %108, %cst_59 {dimension_numbers = #tpu.dot_dimension_numbers<[1], [0], [0], [1], [0, 0, 1, 1], [], []>} : vector<8x128xbf16>, vector<128x512xbf16>, vector<8x512xf32> -> vector<8x512xf32>
    %110 = arith.addf %106, %109 : vector<8x512xf32>
    %111 = vector.extract_strided_slice %110 {offsets = [0, 0], sizes = [8, 384], strides = [1, 1]} : vector<8x512xf32> to vector<8x384xf32>
    %112 = arith.negf %111 : vector<8x384xf32>
    %113 = math.exp %112 : vector<8x384xf32>
    %cst_60 = arith.constant 1.000000e+00 : f32
    %114 = vector.broadcast %cst_60 : f32 to vector<8x384xf32>
    %115 = arith.addf %114, %113 : vector<8x384xf32>
    %116 = arith.divf %114, %115 : vector<8x384xf32>
    %117 = vector.extract_strided_slice %110 {offsets = [0, 384], sizes = [8, 128], strides = [1, 1]} : vector<8x512xf32> to vector<8x128xf32>
    %118 = math.tanh %117 : vector<8x128xf32>
    %119 = vector.extract_strided_slice %116 {offsets = [0, 0], sizes = [8, 128], strides = [1, 1]} : vector<8x384xf32> to vector<8x128xf32>
    %120 = vector.extract_strided_slice %116 {offsets = [0, 128], sizes = [8, 128], strides = [1, 1]} : vector<8x384xf32> to vector<8x128xf32>
    %121 = vector.extract_strided_slice %116 {offsets = [0, 256], sizes = [8, 128], strides = [1, 1]} : vector<8x384xf32> to vector<8x128xf32>
    %c0_61 = arith.constant 0 : index
    %c0_62 = arith.constant 0 : index
    %122 = vector.load %arg8[%c0_61, %c0_62] : memref<8x128xf32, #tpu.memory_space<vmem>>, vector<8x128xf32>
    %123 = arith.mulf %120, %122 : vector<8x128xf32>
    %124 = arith.mulf %119, %118 : vector<8x128xf32>
    %125 = arith.addf %123, %124 : vector<8x128xf32>
    %126 = math.tanh %125 : vector<8x128xf32>
    %127 = arith.mulf %121, %126 : vector<8x128xf32>
    %c0_63 = arith.constant 0 : index
    %c0_64 = arith.constant 0 : index
    %128 = vector.load %arg8[%c0_63, %c0_64] : memref<8x128xf32, #tpu.memory_space<vmem>>, vector<8x128xf32>
    tpu.vector_store %arg8[%c0_63, %c0_64], %125 {strides = array<i32>} : memref<8x128xf32, #tpu.memory_space<vmem>>, vector<8x128xf32>,
    %129 = arith.truncf %127 : vector<8x128xf32> to vector<8x128xbf16>
    %c0_65 = arith.constant 0 : index
    %c0_66 = arith.constant 0 : index
    %130 = vector.load %arg7[%c0_65, %c0_66] : memref<8x128xbf16, #tpu.memory_space<vmem>>, vector<8x128xbf16>
    tpu.vector_store %arg7[%c0_65, %c0_66], %129 {strides = array<i32>} : memref<8x128xbf16, #tpu.memory_space<vmem>>, vector<8x128xbf16>,
    %131 = arith.truncf %127 : vector<8x128xf32> to vector<8x128xbf16>
    %132 = arith.index_cast %104 : i32 to index
    %c0_67 = arith.constant 0 : index
    %133 = vector.load %arg5[%132, %c0_67] : memref<64x128xbf16, #tpu.memory_space<vmem>>, vector<8x128xbf16>
    tpu.vector_store %arg5[%132, %c0_67], %131 {strides = array<i32>} : memref<64x128xbf16, #tpu.memory_space<vmem>>, vector<8x128xbf16>,
    %c4_i32 = arith.constant 4 : i32
    %c8_i32_68 = arith.constant 8 : i32
    %134 = arith.muli %c4_i32, %c8_i32_68 : i32
    %135 = tpu.assume_multiple %134, 8 : i32
    %136 = arith.index_cast %135 : i32 to index
    %c0_69 = arith.constant 0 : index
    %137 = vector.load %arg6[%136, %c0_69] : memref<64x512xf32, #tpu.memory_space<vmem>>, vector<8x512xf32>
    %c0_70 = arith.constant 0 : index
    %c0_71 = arith.constant 0 : index
    %138 = vector.load %arg7[%c0_70, %c0_71] : memref<8x128xbf16, #tpu.memory_space<vmem>>, vector<8x128xbf16>
    %c0_72 = arith.constant 0 : index
    %c0_73 = arith.constant 0 : index
    %139 = vector.load %arg3[%c0_72, %c0_73] : memref<128x512xbf16, #tpu.memory_space<vmem>>, vector<128x512xbf16>
    %cst_74 = arith.constant dense<0.000000e+00> : vector<8x512xf32>
    %140 = tpu.matmul %138, %139, %cst_74 {dimension_numbers = #tpu.dot_dimension_numbers<[1], [0], [0], [1], [0, 0, 1, 1], [], []>} : vector<8x128xbf16>, vector<128x512xbf16>, vector<8x512xf32> -> vector<8x512xf32>
    %141 = arith.addf %137, %140 : vector<8x512xf32>
    %142 = vector.extract_strided_slice %141 {offsets = [0, 0], sizes = [8, 384], strides = [1, 1]} : vector<8x512xf32> to vector<8x384xf32>
    %143 = arith.negf %142 : vector<8x384xf32>
    %144 = math.exp %143 : vector<8x384xf32>
    %cst_75 = arith.constant 1.000000e+00 : f32
    %145 = vector.broadcast %cst_75 : f32 to vector<8x384xf32>
    %146 = arith.addf %145, %144 : vector<8x384xf32>
    %147 = arith.divf %145, %146 : vector<8x384xf32>
    %148 = vector.extract_strided_slice %141 {offsets = [0, 384], sizes = [8, 128], strides = [1, 1]} : vector<8x512xf32> to vector<8x128xf32>
    %149 = math.tanh %148 : vector<8x128xf32>
    %150 = vector.extract_strided_slice %147 {offsets = [0, 0], sizes = [8, 128], strides = [1, 1]} : vector<8x384xf32> to vector<8x128xf32>
    %151 = vector.extract_strided_slice %147 {offsets = [0, 128], sizes = [8, 128], strides = [1, 1]} : vector<8x384xf32> to vector<8x128xf32>
    %152 = vector.extract_strided_slice %147 {offsets = [0, 256], sizes = [8, 128], strides = [1, 1]} : vector<8x384xf32> to vector<8x128xf32>
    %c0_76 = arith.constant 0 : index
    %c0_77 = arith.constant 0 : index
    %153 = vector.load %arg8[%c0_76, %c0_77] : memref<8x128xf32, #tpu.memory_space<vmem>>, vector<8x128xf32>
    %154 = arith.mulf %151, %153 : vector<8x128xf32>
    %155 = arith.mulf %150, %149 : vector<8x128xf32>
    %156 = arith.addf %154, %155 : vector<8x128xf32>
    %157 = math.tanh %156 : vector<8x128xf32>
    %158 = arith.mulf %152, %157 : vector<8x128xf32>
    %c0_78 = arith.constant 0 : index
    %c0_79 = arith.constant 0 : index
    %159 = vector.load %arg8[%c0_78, %c0_79] : memref<8x128xf32, #tpu.memory_space<vmem>>, vector<8x128xf32>
    tpu.vector_store %arg8[%c0_78, %c0_79], %156 {strides = array<i32>} : memref<8x128xf32, #tpu.memory_space<vmem>>, vector<8x128xf32>,
    %160 = arith.truncf %158 : vector<8x128xf32> to vector<8x128xbf16>
    %c0_80 = arith.constant 0 : index
    %c0_81 = arith.constant 0 : index
    %161 = vector.load %arg7[%c0_80, %c0_81] : memref<8x128xbf16, #tpu.memory_space<vmem>>, vector<8x128xbf16>
    tpu.vector_store %arg7[%c0_80, %c0_81], %160 {strides = array<i32>} : memref<8x128xbf16, #tpu.memory_space<vmem>>, vector<8x128xbf16>,
    %162 = arith.truncf %158 : vector<8x128xf32> to vector<8x128xbf16>
    %163 = arith.index_cast %135 : i32 to index
    %c0_82 = arith.constant 0 : index
    %164 = vector.load %arg5[%163, %c0_82] : memref<64x128xbf16, #tpu.memory_space<vmem>>, vector<8x128xbf16>
    tpu.vector_store %arg5[%163, %c0_82], %162 {strides = array<i32>} : memref<64x128xbf16, #tpu.memory_space<vmem>>, vector<8x128xbf16>,
    %c5_i32 = arith.constant 5 : i32
    %c8_i32_83 = arith.constant 8 : i32
    %165 = arith.muli %c5_i32, %c8_i32_83 : i32
    %166 = tpu.assume_multiple %165, 8 : i32
    %167 = arith.index_cast %166 : i32 to index
    %c0_84 = arith.constant 0 : index
    %168 = vector.load %arg6[%167, %c0_84] : memref<64x512xf32, #tpu.memory_space<vmem>>, vector<8x512xf32>
    %c0_85 = arith.constant 0 : index
    %c0_86 = arith.constant 0 : index
    %169 = vector.load %arg7[%c0_85, %c0_86] : memref<8x128xbf16, #tpu.memory_space<vmem>>, vector<8x128xbf16>
    %c0_87 = arith.constant 0 : index
    %c0_88 = arith.constant 0 : index
    %170 = vector.load %arg3[%c0_87, %c0_88] : memref<128x512xbf16, #tpu.memory_space<vmem>>, vector<128x512xbf16>
    %cst_89 = arith.constant dense<0.000000e+00> : vector<8x512xf32>
    %171 = tpu.matmul %169, %170, %cst_89 {dimension_numbers = #tpu.dot_dimension_numbers<[1], [0], [0], [1], [0, 0, 1, 1], [], []>} : vector<8x128xbf16>, vector<128x512xbf16>, vector<8x512xf32> -> vector<8x512xf32>
    %172 = arith.addf %168, %171 : vector<8x512xf32>
    %173 = vector.extract_strided_slice %172 {offsets = [0, 0], sizes = [8, 384], strides = [1, 1]} : vector<8x512xf32> to vector<8x384xf32>
    %174 = arith.negf %173 : vector<8x384xf32>
    %175 = math.exp %174 : vector<8x384xf32>
    %cst_90 = arith.constant 1.000000e+00 : f32
    %176 = vector.broadcast %cst_90 : f32 to vector<8x384xf32>
    %177 = arith.addf %176, %175 : vector<8x384xf32>
    %178 = arith.divf %176, %177 : vector<8x384xf32>
    %179 = vector.extract_strided_slice %172 {offsets = [0, 384], sizes = [8, 128], strides = [1, 1]} : vector<8x512xf32> to vector<8x128xf32>
    %180 = math.tanh %179 : vector<8x128xf32>
    %181 = vector.extract_strided_slice %178 {offsets = [0, 0], sizes = [8, 128], strides = [1, 1]} : vector<8x384xf32> to vector<8x128xf32>
    %182 = vector.extract_strided_slice %178 {offsets = [0, 128], sizes = [8, 128], strides = [1, 1]} : vector<8x384xf32> to vector<8x128xf32>
    %183 = vector.extract_strided_slice %178 {offsets = [0, 256], sizes = [8, 128], strides = [1, 1]} : vector<8x384xf32> to vector<8x128xf32>
    %c0_91 = arith.constant 0 : index
    %c0_92 = arith.constant 0 : index
    %184 = vector.load %arg8[%c0_91, %c0_92] : memref<8x128xf32, #tpu.memory_space<vmem>>, vector<8x128xf32>
    %185 = arith.mulf %182, %184 : vector<8x128xf32>
    %186 = arith.mulf %181, %180 : vector<8x128xf32>
    %187 = arith.addf %185, %186 : vector<8x128xf32>
    %188 = math.tanh %187 : vector<8x128xf32>
    %189 = arith.mulf %183, %188 : vector<8x128xf32>
    %c0_93 = arith.constant 0 : index
    %c0_94 = arith.constant 0 : index
    %190 = vector.load %arg8[%c0_93, %c0_94] : memref<8x128xf32, #tpu.memory_space<vmem>>, vector<8x128xf32>
    tpu.vector_store %arg8[%c0_93, %c0_94], %187 {strides = array<i32>} : memref<8x128xf32, #tpu.memory_space<vmem>>, vector<8x128xf32>,
    %191 = arith.truncf %189 : vector<8x128xf32> to vector<8x128xbf16>
    %c0_95 = arith.constant 0 : index
    %c0_96 = arith.constant 0 : index
    %192 = vector.load %arg7[%c0_95, %c0_96] : memref<8x128xbf16, #tpu.memory_space<vmem>>, vector<8x128xbf16>
    tpu.vector_store %arg7[%c0_95, %c0_96], %191 {strides = array<i32>} : memref<8x128xbf16, #tpu.memory_space<vmem>>, vector<8x128xbf16>,
    %193 = arith.truncf %189 : vector<8x128xf32> to vector<8x128xbf16>
    %194 = arith.index_cast %166 : i32 to index
    %c0_97 = arith.constant 0 : index
    %195 = vector.load %arg5[%194, %c0_97] : memref<64x128xbf16, #tpu.memory_space<vmem>>, vector<8x128xbf16>
    tpu.vector_store %arg5[%194, %c0_97], %193 {strides = array<i32>} : memref<64x128xbf16, #tpu.memory_space<vmem>>, vector<8x128xbf16>,
    %c6_i32 = arith.constant 6 : i32
    %c8_i32_98 = arith.constant 8 : i32
    %196 = arith.muli %c6_i32, %c8_i32_98 : i32
    %197 = tpu.assume_multiple %196, 8 : i32
    %198 = arith.index_cast %197 : i32 to index
    %c0_99 = arith.constant 0 : index
    %199 = vector.load %arg6[%198, %c0_99] : memref<64x512xf32, #tpu.memory_space<vmem>>, vector<8x512xf32>
    %c0_100 = arith.constant 0 : index
    %c0_101 = arith.constant 0 : index
    %200 = vector.load %arg7[%c0_100, %c0_101] : memref<8x128xbf16, #tpu.memory_space<vmem>>, vector<8x128xbf16>
    %c0_102 = arith.constant 0 : index
    %c0_103 = arith.constant 0 : index
    %201 = vector.load %arg3[%c0_102, %c0_103] : memref<128x512xbf16, #tpu.memory_space<vmem>>, vector<128x512xbf16>
    %cst_104 = arith.constant dense<0.000000e+00> : vector<8x512xf32>
    %202 = tpu.matmul %200, %201, %cst_104 {dimension_numbers = #tpu.dot_dimension_numbers<[1], [0], [0], [1], [0, 0, 1, 1], [], []>} : vector<8x128xbf16>, vector<128x512xbf16>, vector<8x512xf32> -> vector<8x512xf32>
    %203 = arith.addf %199, %202 : vector<8x512xf32>
    %204 = vector.extract_strided_slice %203 {offsets = [0, 0], sizes = [8, 384], strides = [1, 1]} : vector<8x512xf32> to vector<8x384xf32>
    %205 = arith.negf %204 : vector<8x384xf32>
    %206 = math.exp %205 : vector<8x384xf32>
    %cst_105 = arith.constant 1.000000e+00 : f32
    %207 = vector.broadcast %cst_105 : f32 to vector<8x384xf32>
    %208 = arith.addf %207, %206 : vector<8x384xf32>
    %209 = arith.divf %207, %208 : vector<8x384xf32>
    %210 = vector.extract_strided_slice %203 {offsets = [0, 384], sizes = [8, 128], strides = [1, 1]} : vector<8x512xf32> to vector<8x128xf32>
    %211 = math.tanh %210 : vector<8x128xf32>
    %212 = vector.extract_strided_slice %209 {offsets = [0, 0], sizes = [8, 128], strides = [1, 1]} : vector<8x384xf32> to vector<8x128xf32>
    %213 = vector.extract_strided_slice %209 {offsets = [0, 128], sizes = [8, 128], strides = [1, 1]} : vector<8x384xf32> to vector<8x128xf32>
    %214 = vector.extract_strided_slice %209 {offsets = [0, 256], sizes = [8, 128], strides = [1, 1]} : vector<8x384xf32> to vector<8x128xf32>
    %c0_106 = arith.constant 0 : index
    %c0_107 = arith.constant 0 : index
    %215 = vector.load %arg8[%c0_106, %c0_107] : memref<8x128xf32, #tpu.memory_space<vmem>>, vector<8x128xf32>
    %216 = arith.mulf %213, %215 : vector<8x128xf32>
    %217 = arith.mulf %212, %211 : vector<8x128xf32>
    %218 = arith.addf %216, %217 : vector<8x128xf32>
    %219 = math.tanh %218 : vector<8x128xf32>
    %220 = arith.mulf %214, %219 : vector<8x128xf32>
    %c0_108 = arith.constant 0 : index
    %c0_109 = arith.constant 0 : index
    %221 = vector.load %arg8[%c0_108, %c0_109] : memref<8x128xf32, #tpu.memory_space<vmem>>, vector<8x128xf32>
    tpu.vector_store %arg8[%c0_108, %c0_109], %218 {strides = array<i32>} : memref<8x128xf32, #tpu.memory_space<vmem>>, vector<8x128xf32>,
    %222 = arith.truncf %220 : vector<8x128xf32> to vector<8x128xbf16>
    %c0_110 = arith.constant 0 : index
    %c0_111 = arith.constant 0 : index
    %223 = vector.load %arg7[%c0_110, %c0_111] : memref<8x128xbf16, #tpu.memory_space<vmem>>, vector<8x128xbf16>
    tpu.vector_store %arg7[%c0_110, %c0_111], %222 {strides = array<i32>} : memref<8x128xbf16, #tpu.memory_space<vmem>>, vector<8x128xbf16>,
    %224 = arith.truncf %220 : vector<8x128xf32> to vector<8x128xbf16>
    %225 = arith.index_cast %197 : i32 to index
    %c0_112 = arith.constant 0 : index
    %226 = vector.load %arg5[%225, %c0_112] : memref<64x128xbf16, #tpu.memory_space<vmem>>, vector<8x128xbf16>
    tpu.vector_store %arg5[%225, %c0_112], %224 {strides = array<i32>} : memref<64x128xbf16, #tpu.memory_space<vmem>>, vector<8x128xbf16>,
    %c7_i32 = arith.constant 7 : i32
    %c8_i32_113 = arith.constant 8 : i32
    %227 = arith.muli %c7_i32, %c8_i32_113 : i32
    %228 = tpu.assume_multiple %227, 8 : i32
    %229 = arith.index_cast %228 : i32 to index
    %c0_114 = arith.constant 0 : index
    %230 = vector.load %arg6[%229, %c0_114] : memref<64x512xf32, #tpu.memory_space<vmem>>, vector<8x512xf32>
    %c0_115 = arith.constant 0 : index
    %c0_116 = arith.constant 0 : index
    %231 = vector.load %arg7[%c0_115, %c0_116] : memref<8x128xbf16, #tpu.memory_space<vmem>>, vector<8x128xbf16>
    %c0_117 = arith.constant 0 : index
    %c0_118 = arith.constant 0 : index
    %232 = vector.load %arg3[%c0_117, %c0_118] : memref<128x512xbf16, #tpu.memory_space<vmem>>, vector<128x512xbf16>
    %cst_119 = arith.constant dense<0.000000e+00> : vector<8x512xf32>
    %233 = tpu.matmul %231, %232, %cst_119 {dimension_numbers = #tpu.dot_dimension_numbers<[1], [0], [0], [1], [0, 0, 1, 1], [], []>} : vector<8x128xbf16>, vector<128x512xbf16>, vector<8x512xf32> -> vector<8x512xf32>
    %234 = arith.addf %230, %233 : vector<8x512xf32>
    %235 = vector.extract_strided_slice %234 {offsets = [0, 0], sizes = [8, 384], strides = [1, 1]} : vector<8x512xf32> to vector<8x384xf32>
    %236 = arith.negf %235 : vector<8x384xf32>
    %237 = math.exp %236 : vector<8x384xf32>
    %cst_120 = arith.constant 1.000000e+00 : f32
    %238 = vector.broadcast %cst_120 : f32 to vector<8x384xf32>
    %239 = arith.addf %238, %237 : vector<8x384xf32>
    %240 = arith.divf %238, %239 : vector<8x384xf32>
    %241 = vector.extract_strided_slice %234 {offsets = [0, 384], sizes = [8, 128], strides = [1, 1]} : vector<8x512xf32> to vector<8x128xf32>
    %242 = math.tanh %241 : vector<8x128xf32>
    %243 = vector.extract_strided_slice %240 {offsets = [0, 0], sizes = [8, 128], strides = [1, 1]} : vector<8x384xf32> to vector<8x128xf32>
    %244 = vector.extract_strided_slice %240 {offsets = [0, 128], sizes = [8, 128], strides = [1, 1]} : vector<8x384xf32> to vector<8x128xf32>
    %245 = vector.extract_strided_slice %240 {offsets = [0, 256], sizes = [8, 128], strides = [1, 1]} : vector<8x384xf32> to vector<8x128xf32>
    %c0_121 = arith.constant 0 : index
    %c0_122 = arith.constant 0 : index
    %246 = vector.load %arg8[%c0_121, %c0_122] : memref<8x128xf32, #tpu.memory_space<vmem>>, vector<8x128xf32>
    %247 = arith.mulf %244, %246 : vector<8x128xf32>
    %248 = arith.mulf %243, %242 : vector<8x128xf32>
    %249 = arith.addf %247, %248 : vector<8x128xf32>
    %250 = math.tanh %249 : vector<8x128xf32>
    %251 = arith.mulf %245, %250 : vector<8x128xf32>
    %c0_123 = arith.constant 0 : index
    %c0_124 = arith.constant 0 : index
    %252 = vector.load %arg8[%c0_123, %c0_124] : memref<8x128xf32, #tpu.memory_space<vmem>>, vector<8x128xf32>
    tpu.vector_store %arg8[%c0_123, %c0_124], %249 {strides = array<i32>} : memref<8x128xf32, #tpu.memory_space<vmem>>, vector<8x128xf32>,
    %253 = arith.truncf %251 : vector<8x128xf32> to vector<8x128xbf16>
    %c0_125 = arith.constant 0 : index
    %c0_126 = arith.constant 0 : index
    %254 = vector.load %arg7[%c0_125, %c0_126] : memref<8x128xbf16, #tpu.memory_space<vmem>>, vector<8x128xbf16>
    tpu.vector_store %arg7[%c0_125, %c0_126], %253 {strides = array<i32>} : memref<8x128xbf16, #tpu.memory_space<vmem>>, vector<8x128xbf16>,
    %255 = arith.truncf %251 : vector<8x128xf32> to vector<8x128xbf16>
    %256 = arith.index_cast %228 : i32 to index
    %c0_127 = arith.constant 0 : index
    %257 = vector.load %arg5[%256, %c0_127] : memref<64x128xbf16, #tpu.memory_space<vmem>>, vector<8x128xbf16>
    tpu.vector_store %arg5[%256, %c0_127], %255 {strides = array<i32>} : memref<64x128xbf16, #tpu.memory_space<vmem>>, vector<8x128xbf16>,
    %c8_i32_128 = arith.constant 8 : i32
    return
  }
  func.func @transform_0(%arg0: i32) -> (i32, i32) {
    %c0_i32 = arith.constant 0 : i32
    %c0_i32_0 = arith.constant 0 : i32
    return %arg0, %c0_i32 : i32, i32
  }
  func.func @transform_1(%arg0: i32) -> (i32, i32) {
    %c0_i32 = arith.constant 0 : i32
    %c0_i32_0 = arith.constant 0 : i32
    %c0_i32_1 = arith.constant 0 : i32
    return %c0_i32, %c0_i32_0 : i32, i32
  }
  func.func @transform_2(%arg0: i32) -> (i32, i32) {
    %c0_i32 = arith.constant 0 : i32
    %c0_i32_0 = arith.constant 0 : i32
    %c0_i32_1 = arith.constant 0 : i32
    return %c0_i32, %c0_i32_0 : i32, i32
  }
  func.func @transform_3(%arg0: i32) -> (i32, i32) {
    %c0_i32 = arith.constant 0 : i32
    %c0_i32_0 = arith.constant 0 : i32
    %c0_i32_1 = arith.constant 0 : i32
    return %c0_i32, %c0_i32_0 : i32, i32
  }
  func.func @transform_4(%arg0: i32) -> (i32, i32) {
    %c0_i32 = arith.constant 0 : i32
    %c0_i32_0 = arith.constant 0 : i32
    return %arg0, %c0_i32 : i32, i32
  }
}

</mosaic_0001>

<llo_original>
// kernel: tpu_custom_call.1
$region0: #{tpu_custom_call.1}
  #allocation0 [shape = 'u32[]', space=smem, size = 0x4, offset = 0x4, fixed_abs, tag = 'smem constant byte address 0x4 - core index']
  #allocation1 [shape = 'u32[72,128]{1,0:T(1,128)}', space=vmem, size = 0x9000, scoped, tag = 'internal scratch']
  #allocation2 [shape = 'f32[64,512]{1,0:T(8,128)}', space=vmem, size = 0x20000, scoped, tag = 'scratch operand']
  #allocation3 [shape = 'bf16[8,128]{1,0:T(8,128)(2,1)}', space=vmem, size = 0x800, scoped, tag = 'scratch operand']
  #allocation4 [shape = 'f32[8,128]{1,0:T(8,128)}', space=vmem, size = 0x1000, scoped, tag = 'scratch operand']
  %s0 = inlined_call_operand.vmem [shape: bf16[64,32], index: 0, kind: input, shape index: {}]
  %s1 = inlined_call_operand.hbm [shape: bf16[32,512], index: 1, kind: input, shape index: {}]
  %s2 = inlined_call_operand.hbm [shape: bf16[128,512], index: 2, kind: input, shape index: {}]
  %s3 = inlined_call_operand.vmem [shape: f32[1,512], index: 3, kind: input, shape index: {}]
  %s4 = inlined_call_operand.hbm [shape: bf16[64,128], index: 4, kind: output, shape index: {}]
  %s5 = sld [smem:[#allocation0]]
  $region38: #{tpu_custom_call.1} parent=0
    _
  %s7 = ssub.s32 1, %s5
  %s8 = scalar_select 0, %s7, %s5
  $region1: #{tpu_custom_call.1} parent=0
    #allocation5 [shape = 'u8[32768]{0}', space=vmem, size = 0x8000, scoped, tag = 'input window, operand 1, single buffered']
    #allocation6 [shape = 's32[1]{0}', space=sflag, size = 0x4, scoped, tag = 'scoped memory for tpu_custom_call.1']
    #allocation7 [shape = 's32[1]{0}', space=sflag, size = 0x4, scoped, tag = 'scoped memory for tpu_custom_call.1']
    #allocation8 [shape = 'u8[131072]{0}', space=vmem, size = 0x20000, scoped, tag = 'input window, operand 2, single buffered']
    #allocation9 [shape = 's32[1]{0}', space=sflag, size = 0x4, scoped, tag = 'scoped memory for tpu_custom_call.1']
    #allocation10 [shape = 'u8[16384]{0}', space=vmem, size = 0x4000, scoped, tag = 'output window, operand 0, single buffered']
    %9 = vsyncpa [#allocation6], 0
    %10 = vsyncpa [#allocation9], 0
    %11 = vsyncpa [#allocation7], 0
    // Predicated region
    $region2: #{tpu_custom_call.1} parent=1 // pred_check
      _
    $region3: #{tpu_custom_call.1} parent=1 // pred_check_branch
      %13 = sbr.rel (0) target = $region5
    $region4: #{tpu_custom_call.1} parent=1 // pred_region
      _
    $region5: #{tpu_custom_call.1} parent=1 // pred_fallthru
      _
    // Predicated region
    $region6: #{tpu_custom_call.1} parent=1 // pred_check
      _
    $region7: #{tpu_custom_call.1} parent=1 // pred_check_branch
      %15 = sbr.rel (0) target = $region9
    $region8: #{tpu_custom_call.1} parent=1 // pred_region
      %17 = vsyncadd [#allocation6], 0
      %s18 = sshll.u32 %s1, 4
      %s19 = int_to_ptr.hbm [resolvable:$true] %s18
      %s20 = sshll.u32 [#allocation5], 4
      %s21 = int_to_ptr.vmem [resolvable:$true] %s20
      %26 = dma.hbm_to_vmem [thread:$0]  %s19, 1024, %s21, [#allocation6], 256, 256, 16
    $region9: #{tpu_custom_call.1} parent=1 // pred_fallthru
      _
    // Predicated region
    $region10: #{tpu_custom_call.1} parent=1 // pred_check
      _
    $region11: #{tpu_custom_call.1} parent=1 // pred_check_branch
      %28 = sbr.rel (0) target = $region13
    $region12: #{tpu_custom_call.1} parent=1 // pred_region
      %30 = vsyncadd [#allocation9], 0
      %s31 = sshll.u32 %s2, 4
      %s32 = int_to_ptr.hbm [resolvable:$true] %s31
      %s33 = sshll.u32 [#allocation8], 4
      %s34 = int_to_ptr.vmem [resolvable:$true] %s33
      %39 = dma.hbm_to_vmem [thread:$0]  %s32, 4096, %s34, [#allocation9], 256, 256, 16
    $region13: #{tpu_custom_call.1} parent=1 // pred_fallthru
      _
    // Predicated region
    $region14: #{tpu_custom_call.1} parent=1 // pred_check
      _
    $region15: #{tpu_custom_call.1} parent=1 // pred_check_branch
      %41 = sbr.rel (0) target = $region17
    $region16: #{tpu_custom_call.1} parent=1 // pred_region
      _
    $region17: #{tpu_custom_call.1} parent=1 // pred_fallthru
      _
    // Predicated region
    $region18: #{tpu_custom_call.1} parent=1 // pred_check
      _
    $region19: #{tpu_custom_call.1} parent=1 // pred_check_branch
      %43 = sbr.rel (0) target = $region21
    $region20: #{tpu_custom_call.1} parent=1 // pred_region
      %45 = dma.done [#allocation6], 1024
    $region21: #{tpu_custom_call.1} parent=1 // pred_fallthru
      _
    // Predicated region
    $region22: #{tpu_custom_call.1} parent=1 // pred_check
      _
    $region23: #{tpu_custom_call.1} parent=1 // pred_check_branch
      %47 = sbr.rel (0) target = $region25
    $region24: #{tpu_custom_call.1} parent=1 // pred_region
      %49 = dma.done [#allocation9], 4096
    $region25: #{tpu_custom_call.1} parent=1 // pred_fallthru
      _
    %p51 = scmp.eq.s32.totalorder 0, 0
    // Predicated region
    $region26: #{tpu_custom_call.1} parent=1 // pred_check
      %p52 = pneg %p51
    $region27: #{tpu_custom_call.1} parent=1 // pred_check_branch
      %54 = sbr.rel (%p52) target = $region29
    $region28: #{tpu_custom_call.1} parent=1 // pred_region
      %55 = vst [vmem:[#allocation3] sm:$0xf] 0
      %56 = vst [vmem:[#allocation4] sm:$0xff] 0.0
    $region29: #{tpu_custom_call.1} parent=1 // pred_fallthru
      _
    %v57 = vld [vmem:[%s0] sm:$0xf]
    %v58 = vld [vmem:[%s0 + $0x4] sm:$0xf]
    %v59 = vld [vmem:[%s0 + $0x8] sm:$0xf]
    %v60 = vld [vmem:[%s0 + $0xc] sm:$0xf]
    %v61 = vld [vmem:[%s0 + $0x10] sm:$0xf]
    %v62 = vld [vmem:[%s0 + $0x14] sm:$0xf]
    %v63 = vld [vmem:[%s0 + $0x18] sm:$0xf]
    %v64 = vld [vmem:[%s0 + $0x1c] sm:$0xf]
    %v65 = vld [vmem:[#allocation5] sm:$0xff]
    %v66 = vld [vmem:[#allocation5 + $0x8] sm:$0xff]
    %v67 = vld [vmem:[#allocation5 + $0x10] sm:$0xff]
    %v68 = vld [vmem:[#allocation5 + $0x18] sm:$0xff]
    %v69 = vld [vmem:[#allocation5 + $0x20] sm:$0xff]
    %v70 = vld [vmem:[#allocation5 + $0x28] sm:$0xff]
    %v71 = vld [vmem:[#allocation5 + $0x30] sm:$0xff]
    %v72 = vld [vmem:[#allocation5 + $0x38] sm:$0xff]
    %v73 = vld [vmem:[%s3] sm:$0xf]
    %v75 = vperm.slane %v73, 0
    %v76 = vperm.slane %v73, 1
    %v77 = vperm.slane %v73, 2
    %v78 = vperm.slane %v73, 3
    %v91 = vunpack.c.l.b16 %v57
    %v92 = vunpack.c.l.b16 %v58
    %v93 = vunpack.c.l.b16 %v59
    %v94 = vunpack.c.l.b16 %v60
    %v95 = vunpack.c.l.b16 %v61
    %v96 = vunpack.c.l.b16 %v62
    %v97 = vunpack.c.l.b16 %v63
    %v98 = vunpack.c.l.b16 %v64
    %v99 = vpack.c.b16 %v92, %v91
    %v100 = vpack.c.b16 %v94, %v93
    %v101 = vpack.c.b16 %v96, %v95
    %v102 = vpack.c.b16 %v98, %v97
    %v111 = vunpack.c.l.b16 %v65
    %v112 = vunpack.c.h.b16 %v65
    %v113 = vunpack.c.l.b16 %v66
    %v114 = vunpack.c.h.b16 %v66
    %v115 = vunpack.c.l.b16 %v67
    %v116 = vunpack.c.h.b16 %v67
    %v117 = vunpack.c.l.b16 %v68
    %v118 = vunpack.c.h.b16 %v68
    %v119 = vunpack.c.l.b16 %v69
    %v120 = vunpack.c.h.b16 %v69
    %v121 = vunpack.c.l.b16 %v70
    %v122 = vunpack.c.h.b16 %v70
    %v123 = vunpack.c.l.b16 %v71
    %v124 = vunpack.c.h.b16 %v71
    %v125 = vunpack.c.l.b16 %v72
    %v126 = vunpack.c.h.b16 %v72
    %v127 = vpack.c.b16 %v115, %v111
    %v128 = vpack.c.b16 %v116, %v112
    %v129 = vpack.c.b16 %v117, %v113
    %v130 = vpack.c.b16 %v118, %v114
    %v131 = vpack.c.b16 %v123, %v119
    %v132 = vpack.c.b16 %v124, %v120
    %v133 = vpack.c.b16 %v125, %v121
    %v134 = vpack.c.b16 %v126, %v122
    %vm143 = vcmask 261120
    %v145 = vsel %vm143, %v99, 0
    %v148 = vsel %vm143, %v100, 0
    %v151 = vsel %vm143, %v101, 0
    %v154 = vsel %vm143, %v102, 0
    %156 = vmatpush.bf16.msra.mxu0 0
    %157 = vmatpush.bf16.msra.mxu0 0
    %158 = vmatpush.bf16.msra.mxu0 0
    %159 = vmatpush.bf16.msra.mxu0 0
    %160 = vmatpush.bf16.msra.mxu0 0
    %161 = vmatpush.bf16.msra.mxu0 0
    %162 = vmatpush.bf16.msra.mxu0 %v131
    %163 = vmatpush.bf16.msra.mxu0 %v127
    %164 = vmatmul.bf16.gmra.mxu0 %v145
    %v165 = vpop.f32.mrf.mxu0
    %v166 = vadd.f32 %v75, %v165
    %v167 = vpop.f32.mrf.mxu0
    %v168 = vadd.f32 %v75, %v167
    %169 = vmatmul.bf16.gmra.mxu0 %v148
    %v170 = vpop.f32.mrf.mxu0
    %v171 = vadd.f32 %v75, %v170
    %v172 = vpop.f32.mrf.mxu0
    %v173 = vadd.f32 %v75, %v172
    %174 = vmatmul.bf16.gmra.mxu0 %v151
    %v175 = vpop.f32.mrf.mxu0
    %v176 = vadd.f32 %v75, %v175
    %v177 = vpop.f32.mrf.mxu0
    %v178 = vadd.f32 %v75, %v177
    %179 = vmatmul.bf16.gmra.mxu0 %v154
    %v180 = vpop.f32.mrf.mxu0
    %v181 = vadd.f32 %v75, %v180
    %v182 = vpop.f32.mrf.mxu0
    %v183 = vadd.f32 %v75, %v182
    %184 = vdwg.mxu0
    %185 = vmatpush.bf16.msra.mxu0 0
    %186 = vmatpush.bf16.msra.mxu0 0
    %187 = vmatpush.bf16.msra.mxu0 0
    %188 = vmatpush.bf16.msra.mxu0 0
    %189 = vmatpush.bf16.msra.mxu0 0
    %190 = vmatpush.bf16.msra.mxu0 0
    %191 = vmatpush.bf16.msra.mxu0 %v132
    %192 = vmatpush.bf16.msra.mxu0 %v128
    %193 = vmatmul.bf16.gmra.mxu0 %v145
    %v194 = vpop.f32.mrf.mxu0
    %v195 = vadd.f32 %v76, %v194
    %v196 = vpop.f32.mrf.mxu0
    %v197 = vadd.f32 %v76, %v196
    %198 = vmatmul.bf16.gmra.mxu0 %v148
    %v199 = vpop.f32.mrf.mxu0
    %v200 = vadd.f32 %v76, %v199
    %v201 = vpop.f32.mrf.mxu0
    %v202 = vadd.f32 %v76, %v201
    %203 = vmatmul.bf16.gmra.mxu0 %v151
    %v204 = vpop.f32.mrf.mxu0
    %v205 = vadd.f32 %v76, %v204
    %v206 = vpop.f32.mrf.mxu0
    %v207 = vadd.f32 %v76, %v206
    %208 = vmatmul.bf16.gmra.mxu0 %v154
    %v209 = vpop.f32.mrf.mxu0
    %v210 = vadd.f32 %v76, %v209
    %v211 = vpop.f32.mrf.mxu0
    %v212 = vadd.f32 %v76, %v211
    %213 = vdwg.mxu0
    %214 = vmatpush.bf16.msra.mxu0 0
    %215 = vmatpush.bf16.msra.mxu0 0
    %216 = vmatpush.bf16.msra.mxu0 0
    %217 = vmatpush.bf16.msra.mxu0 0
    %218 = vmatpush.bf16.msra.mxu0 0
    %219 = vmatpush.bf16.msra.mxu0 0
    %220 = vmatpush.bf16.msra.mxu0 %v133
    %221 = vmatpush.bf16.msra.mxu0 %v129
    %222 = vmatmul.bf16.gmra.mxu0 %v145
    %v223 = vpop.f32.mrf.mxu0
    %v224 = vadd.f32 %v77, %v223
    %v225 = vpop.f32.mrf.mxu0
    %v226 = vadd.f32 %v77, %v225
    %227 = vmatmul.bf16.gmra.mxu0 %v148
    %v228 = vpop.f32.mrf.mxu0
    %v229 = vadd.f32 %v77, %v228
    %v230 = vpop.f32.mrf.mxu0
    %v231 = vadd.f32 %v77, %v230
    %232 = vmatmul.bf16.gmra.mxu0 %v151
    %v233 = vpop.f32.mrf.mxu0
    %v234 = vadd.f32 %v77, %v233
    %v235 = vpop.f32.mrf.mxu0
    %v236 = vadd.f32 %v77, %v235
    %237 = vmatmul.bf16.gmra.mxu0 %v154
    %v238 = vpop.f32.mrf.mxu0
    %v239 = vadd.f32 %v77, %v238
    %v240 = vpop.f32.mrf.mxu0
    %v241 = vadd.f32 %v77, %v240
    %242 = vdwg.mxu0
    %243 = vmatpush.bf16.msra.mxu0 0
    %244 = vmatpush.bf16.msra.mxu0 0
    %245 = vmatpush.bf16.msra.mxu0 0
    %246 = vmatpush.bf16.msra.mxu0 0
    %247 = vmatpush.bf16.msra.mxu0 0
    %248 = vmatpush.bf16.msra.mxu0 0
    %249 = vmatpush.bf16.msra.mxu0 %v134
    %250 = vmatpush.bf16.msra.mxu0 %v130
    %251 = vmatmul.bf16.gmra.mxu0 %v145
    %v252 = vpop.f32.mrf.mxu0
    %v253 = vadd.f32 %v78, %v252
    %v254 = vpop.f32.mrf.mxu0
    %v255 = vadd.f32 %v78, %v254
    %256 = vmatmul.bf16.gmra.mxu0 %v148
    %v257 = vpop.f32.mrf.mxu0
    %v258 = vadd.f32 %v78, %v257
    %v259 = vpop.f32.mrf.mxu0
    %v260 = vadd.f32 %v78, %v259
    %261 = vmatmul.bf16.gmra.mxu0 %v151
    %v262 = vpop.f32.mrf.mxu0
    %v263 = vadd.f32 %v78, %v262
    %v264 = vpop.f32.mrf.mxu0
    %v265 = vadd.f32 %v78, %v264
    %266 = vmatmul.bf16.gmra.mxu0 %v154
    %v267 = vpop.f32.mrf.mxu0
    %v268 = vadd.f32 %v78, %v267
    %v269 = vpop.f32.mrf.mxu0
    %v270 = vadd.f32 %v78, %v269
    %271 = vdwg.mxu0
    %272 = vst [vmem:[#allocation2] sm:$0xff] %v166
    %273 = vst [vmem:[#allocation2 + $0x8] sm:$0xff] %v195
    %274 = vst [vmem:[#allocation2 + $0x10] sm:$0xff] %v224
    %275 = vst [vmem:[#allocation2 + $0x18] sm:$0xff] %v253
    %276 = vst [vmem:[#allocation2 + $0x20] sm:$0xff] %v168
    %277 = vst [vmem:[#allocation2 + $0x28] sm:$0xff] %v197
    %278 = vst [vmem:[#allocation2 + $0x30] sm:$0xff] %v226
    %279 = vst [vmem:[#allocation2 + $0x38] sm:$0xff] %v255
    %280 = vst [vmem:[#allocation2 + $0x40] sm:$0xff] %v171
    %281 = vst [vmem:[#allocation2 + $0x48] sm:$0xff] %v200
    %282 = vst [vmem:[#allocation2 + $0x50] sm:$0xff] %v229
    %283 = vst [vmem:[#allocation2 + $0x58] sm:$0xff] %v258
    %284 = vst [vmem:[#allocation2 + $0x60] sm:$0xff] %v173
    %285 = vst [vmem:[#allocation2 + $0x68] sm:$0xff] %v202
    %286 = vst [vmem:[#allocation2 + $0x70] sm:$0xff] %v231
    %287 = vst [vmem:[#allocation2 + $0x78] sm:$0xff] %v260
    %288 = vst [vmem:[#allocation2 + $0x80] sm:$0xff] %v176
    %289 = vst [vmem:[#allocation2 + $0x88] sm:$0xff] %v205
    %290 = vst [vmem:[#allocation2 + $0x90] sm:$0xff] %v234
    %291 = vst [vmem:[#allocation2 + $0x98] sm:$0xff] %v263
    %292 = vst [vmem:[#allocation2 + $0xa0] sm:$0xff] %v178
    %293 = vst [vmem:[#allocation2 + $0xa8] sm:$0xff] %v207
    %294 = vst [vmem:[#allocation2 + $0xb0] sm:$0xff] %v236
    %295 = vst [vmem:[#allocation2 + $0xb8] sm:$0xff] %v265
    %296 = vst [vmem:[#allocation2 + $0xc0] sm:$0xff] %v181
    %297 = vst [vmem:[#allocation2 + $0xc8] sm:$0xff] %v210
    %298 = vst [vmem:[#allocation2 + $0xd0] sm:$0xff] %v239
    %299 = vst [vmem:[#allocation2 + $0xd8] sm:$0xff] %v268
    %300 = vst [vmem:[#allocation2 + $0xe0] sm:$0xff] %v183
    %301 = vst [vmem:[#allocation2 + $0xe8] sm:$0xff] %v212
    %302 = vst [vmem:[#allocation2 + $0xf0] sm:$0xff] %v241
    %303 = vst [vmem:[#allocation2 + $0xf8] sm:$0xff] %v270
    %s304 = smul.u32 0, 4
    %s305 = smul.addr %s304, 8
    %s306 = scalar_lea.vmem [#allocation2], %s305
    %v307 = vld [vmem:[%s306] sm:$0xff]
    %v308 = vld [vmem:[%s306 + $0x8] sm:$0xff]
    %v309 = vld [vmem:[%s306 + $0x10] sm:$0xff]
    %v310 = vld [vmem:[%s306 + $0x18] sm:$0xff]
    %v311 = vld [vmem:[#allocation3] sm:$0xf]
    %v312 = vld [vmem:[#allocation8] sm:$0xff]
    %v313 = vld [vmem:[#allocation8 + $0x8] sm:$0xff]
    %v314 = vld [vmem:[#allocation8 + $0x10] sm:$0xff]
    %v315 = vld [vmem:[#allocation8 + $0x18] sm:$0xff]
    %v316 = vld [vmem:[#allocation8 + $0x20] sm:$0xff]
    %v317 = vld [vmem:[#allocation8 + $0x28] sm:$0xff]
    %v318 = vld [vmem:[#allocation8 + $0x30] sm:$0xff]
    %v319 = vld [vmem:[#allocation8 + $0x38] sm:$0xff]
    %v320 = vld [vmem:[#allocation8 + $0x40] sm:$0xff]
    %v321 = vld [vmem:[#allocation8 + $0x48] sm:$0xff]
    %v322 = vld [vmem:[#allocation8 + $0x50] sm:$0xff]
    %v323 = vld [vmem:[#allocation8 + $0x58] sm:$0xff]
    %v324 = vld [vmem:[#allocation8 + $0x60] sm:$0xff]
    %v325 = vld [vmem:[#allocation8 + $0x68] sm:$0xff]
    %v326 = vld [vmem:[#allocation8 + $0x70] sm:$0xff]
    %v327 = vld [vmem:[#allocation8 + $0x78] sm:$0xff]
    %v328 = vld [vmem:[#allocation8 + $0x80] sm:$0xff]
    %v329 = vld [vmem:[#allocation8 + $0x88] sm:$0xff]
    %v330 = vld [vmem:[#allocation8 + $0x90] sm:$0xff]
    %v331 = vld [vmem:[#allocation8 + $0x98] sm:$0xff]
    %v332 = vld [vmem:[#allocation8 + $0xa0] sm:$0xff]
    %v333 = vld [vmem:[#allocation8 + $0xa8] sm:$0xff]
    %v334 = vld [vmem:[#allocation8 + $0xb0] sm:$0xff]
    %v335 = vld [vmem:[#allocation8 + $0xb8] sm:$0xff]
    %v336 = vld [vmem:[#allocation8 + $0xc0] sm:$0xff]
    %v337 = vld [vmem:[#allocation8 + $0xc8] sm:$0xff]
    %v338 = vld [vmem:[#allocation8 + $0xd0] sm:$0xff]
    %v339 = vld [vmem:[#allocation8 + $0xd8] sm:$0xff]
    %v340 = vld [vmem:[#allocation8 + $0xe0] sm:$0xff]
    %v341 = vld [vmem:[#allocation8 + $0xe8] sm:$0xff]
    %v342 = vld [vmem:[#allocation8 + $0xf0] sm:$0xff]
    %v343 = vld [vmem:[#allocation8 + $0xf8] sm:$0xff]
    %v376 = vunpack.c.l.b16 %v312
    %v377 = vunpack.c.h.b16 %v312
    %v378 = vunpack.c.l.b16 %v313
    %v379 = vunpack.c.h.b16 %v313
    %v380 = vunpack.c.l.b16 %v314
    %v381 = vunpack.c.h.b16 %v314
    %v382 = vunpack.c.l.b16 %v315
    %v383 = vunpack.c.h.b16 %v315
    %v384 = vunpack.c.l.b16 %v316
    %v385 = vunpack.c.h.b16 %v316
    %v386 = vunpack.c.l.b16 %v317
    %v387 = vunpack.c.h.b16 %v317
    %v388 = vunpack.c.l.b16 %v318
    %v389 = vunpack.c.h.b16 %v318
    %v390 = vunpack.c.l.b16 %v319
    %v391 = vunpack.c.h.b16 %v319
    %v392 = vunpack.c.l.b16 %v320
    %v393 = vunpack.c.h.b16 %v320
    %v394 = vunpack.c.l.b16 %v321
    %v395 = vunpack.c.h.b16 %v321
    %v396 = vunpack.c.l.b16 %v322
    %v397 = vunpack.c.h.b16 %v322
    %v398 = vunpack.c.l.b16 %v323
    %v399 = vunpack.c.h.b16 %v323
    %v400 = vunpack.c.l.b16 %v324
    %v401 = vunpack.c.h.b16 %v324
    %v402 = vunpack.c.l.b16 %v325
    %v403 = vunpack.c.h.b16 %v325
    %v404 = vunpack.c.l.b16 %v326
    %v405 = vunpack.c.h.b16 %v326
    %v406 = vunpack.c.l.b16 %v327
    %v407 = vunpack.c.h.b16 %v327
    %v408 = vunpack.c.l.b16 %v328
    %v409 = vunpack.c.h.b16 %v328
    %v410 = vunpack.c.l.b16 %v329
    %v411 = vunpack.c.h.b16 %v329
    %v412 = vunpack.c.l.b16 %v330
    %v413 = vunpack.c.h.b16 %v330
    %v414 = vunpack.c.l.b16 %v331
    %v415 = vunpack.c.h.b16 %v331
    %v416 = vunpack.c.l.b16 %v332
    %v417 = vunpack.c.h.b16 %v332
    %v418 = vunpack.c.l.b16 %v333
    %v419 = vunpack.c.h.b16 %v333
    %v420 = vunpack.c.l.b16 %v334
    %v421 = vunpack.c.h.b16 %v334
    %v422 = vunpack.c.l.b16 %v335
    %v423 = vunpack.c.h.b16 %v335
    %v424 = vunpack.c.l.b16 %v336
    %v425 = vunpack.c.h.b16 %v336
    %v426 = vunpack.c.l.b16 %v337
    %v427 = vunpack.c.h.b16 %v337
    %v428 = vunpack.c.l.b16 %v338
    %v429 = vunpack.c.h.b16 %v338
    %v430 = vunpack.c.l.b16 %v339
    %v431 = vunpack.c.h.b16 %v339
    %v432 = vunpack.c.l.b16 %v340
    %v433 = vunpack.c.h.b16 %v340
    %v434 = vunpack.c.l.b16 %v341
    %v435 = vunpack.c.h.b16 %v341
    %v436 = vunpack.c.l.b16 %v342
    %v437 = vunpack.c.h.b16 %v342
    %v438 = vunpack.c.l.b16 %v343
    %v439 = vunpack.c.h.b16 %v343
    %v440 = vpack.c.b16 %v380, %v376
    %v441 = vpack.c.b16 %v381, %v377
    %v442 = vpack.c.b16 %v382, %v378
    %v443 = vpack.c.b16 %v383, %v379
    %v444 = vpack.c.b16 %v388, %v384
    %v445 = vpack.c.b16 %v389, %v385
    %v446 = vpack.c.b16 %v390, %v386
    %v447 = vpack.c.b16 %v391, %v387
    %v448 = vpack.c.b16 %v396, %v392
    %v449 = vpack.c.b16 %v397, %v393
    %v450 = vpack.c.b16 %v398, %v394
    %v451 = vpack.c.b16 %v399, %v395
    %v452 = vpack.c.b16 %v404, %v400
    %v453 = vpack.c.b16 %v405, %v401
    %v454 = vpack.c.b16 %v406, %v402
    %v455 = vpack.c.b16 %v407, %v403
    %v456 = vpack.c.b16 %v412, %v408
    %v457 = vpack.c.b16 %v413, %v409
    %v458 = vpack.c.b16 %v414, %v410
    %v459 = vpack.c.b16 %v415, %v411
    %v460 = vpack.c.b16 %v420, %v416
    %v461 = vpack.c.b16 %v421, %v417
    %v462 = vpack.c.b16 %v422, %v418
    %v463 = vpack.c.b16 %v423, %v419
    %v464 = vpack.c.b16 %v428, %v424
    %v465 = vpack.c.b16 %v429, %v425
    %v466 = vpack.c.b16 %v430, %v426
    %v467 = vpack.c.b16 %v431, %v427
    %v468 = vpack.c.b16 %v436, %v432
    %v469 = vpack.c.b16 %v437, %v433
    %v470 = vpack.c.b16 %v438, %v434
    %v471 = vpack.c.b16 %v439, %v435
    %504 = vmatpush.bf16.msra.mxu0 %v468
    %505 = vmatpush.bf16.msra.mxu0 %v464
    %506 = vmatpush.bf16.msra.mxu0 %v460
    %507 = vmatpush.bf16.msra.mxu0 %v456
    %508 = vmatpush.bf16.msra.mxu0 %v452
    %509 = vmatpush.bf16.msra.mxu0 %v448
    %510 = vmatpush.bf16.msra.mxu0 %v444
    %511 = vmatpush.bf16.msra.mxu0 %v440
    %512 = vmatmul.bf16.gmra.mxu0 %v311
    %v513 = vpop.f32.mrf.mxu0
    %v514 = vadd.f32 0.0, %v513
    %v515 = vpop.f32.mrf.mxu0
    %516 = vdwg.mxu0
    %517 = vmatpush.bf16.msra.mxu0 %v469
    %518 = vmatpush.bf16.msra.mxu0 %v465
    %519 = vmatpush.bf16.msra.mxu0 %v461
    %520 = vmatpush.bf16.msra.mxu0 %v457
    %521 = vmatpush.bf16.msra.mxu0 %v453
    %522 = vmatpush.bf16.msra.mxu0 %v449
    %523 = vmatpush.bf16.msra.mxu0 %v445
    %524 = vmatpush.bf16.msra.mxu0 %v441
    %525 = vmatmul.bf16.gmra.mxu0 %v311
    %v526 = vpop.f32.mrf.mxu0
    %v527 = vadd.f32 0.0, %v526
    %v528 = vpop.f32.mrf.mxu0
    %529 = vdwg.mxu0
    %530 = vmatpush.bf16.msra.mxu0 %v470
    %531 = vmatpush.bf16.msra.mxu0 %v466
    %532 = vmatpush.bf16.msra.mxu0 %v462
    %533 = vmatpush.bf16.msra.mxu0 %v458
    %534 = vmatpush.bf16.msra.mxu0 %v454
    %535 = vmatpush.bf16.msra.mxu0 %v450
    %536 = vmatpush.bf16.msra.mxu0 %v446
    %537 = vmatpush.bf16.msra.mxu0 %v442
    %538 = vmatmul.bf16.gmra.mxu0 %v311
    %v539 = vpop.f32.mrf.mxu0
    %v540 = vadd.f32 0.0, %v539
    %v541 = vpop.f32.mrf.mxu0
    %542 = vdwg.mxu0
    %543 = vmatpush.bf16.msra.mxu0 %v471
    %544 = vmatpush.bf16.msra.mxu0 %v467
    %545 = vmatpush.bf16.msra.mxu0 %v463
    %546 = vmatpush.bf16.msra.mxu0 %v459
    %547 = vmatpush.bf16.msra.mxu0 %v455
    %548 = vmatpush.bf16.msra.mxu0 %v451
    %549 = vmatpush.bf16.msra.mxu0 %v447
    %550 = vmatpush.bf16.msra.mxu0 %v443
    %551 = vmatmul.bf16.gmra.mxu0 %v311
    %v552 = vpop.f32.mrf.mxu0
    %v553 = vadd.f32 0.0, %v552
    %v554 = vpop.f32.mrf.mxu0
    %555 = vdwg.mxu0
    %v556 = vadd.f32 %v307, %v514
    %v557 = vadd.f32 %v308, %v527
    %v558 = vadd.f32 %v309, %v540
    %v559 = vadd.f32 %v310, %v553
    %v560 = vxor.u32 %v556, 2147483648
    %v561 = vxor.u32 %v557, 2147483648
    %v562 = vxor.u32 %v558, 2147483648
    %v563 = vmul.f32 %v560, 1.442695
    %v564 = vpow.pop %v563
    %v565 = vmul.f32 %v561, 1.442695
    %v566 = vpow.pop %v565
    %v567 = vmul.f32 %v562, 1.442695
    %v568 = vpow.pop %v567
    %v569 = vadd.f32 %v564, 1.0
    %v570 = vadd.f32 %v566, 1.0
    %v571 = vadd.f32 %v568, 1.0
    %v572 = vrcp.pop %v569
    %v573 = vmul.f32 %v569, %v572
    %v574 = vsub.f32 1.0, %v573
    %v575 = vmul.f32 %v572, %v574
    %v576 = vadd.f32 %v572, %v575
    %vm577 = vweird.f32 %v569
    %vm578 = vweird.f32 %v572
    %vm579 = vmor %vm577, %vm578
    %v580 = vsel %vm579, %v572, %v576
    %v581 = vand.u32 2147483647, %v569
    %vm582 = vcmp.eq.f32.partialorder %v581, 8.507059e+37
    %v583 = vand.u32 %v569, 2147483648
    %v584 = vor.u32 1.1754944e-38, %v583
    %v585 = vsel %vm582, %v584, %v580
    %v586 = vmul.f32 1.0, %v585
    %v587 = vrcp.pop %v570
    %v588 = vmul.f32 %v570, %v587
    %v589 = vsub.f32 1.0, %v588
    %v590 = vmul.f32 %v587, %v589
    %v591 = vadd.f32 %v587, %v590
    %vm592 = vweird.f32 %v570
    %vm593 = vweird.f32 %v587
    %vm594 = vmor %vm592, %vm593
    %v595 = vsel %vm594, %v587, %v591
    %v596 = vand.u32 2147483647, %v570
    %vm597 = vcmp.eq.f32.partialorder %v596, 8.507059e+37
    %v598 = vand.u32 %v570, 2147483648
    %v599 = vor.u32 1.1754944e-38, %v598
    %v600 = vsel %vm597, %v599, %v595
    %v601 = vmul.f32 1.0, %v600
    %v602 = vrcp.pop %v571
    %v603 = vmul.f32 %v571, %v602
    %v604 = vsub.f32 1.0, %v603
    %v605 = vmul.f32 %v602, %v604
    %v606 = vadd.f32 %v602, %v605
    %vm607 = vweird.f32 %v571
    %vm608 = vweird.f32 %v602
    %vm609 = vmor %vm607, %vm608
    %v610 = vsel %vm609, %v602, %v606
    %v611 = vand.u32 2147483647, %v571
    %vm612 = vcmp.eq.f32.partialorder %v611, 8.507059e+37
    %v613 = vand.u32 %v571, 2147483648
    %v614 = vor.u32 1.1754944e-38, %v613
    %v615 = vsel %vm612, %v614, %v610
    %v616 = vmul.f32 1.0, %v615
    %v617 = vtanh.pop %v559
    %v618 = vld [vmem:[#allocation4] sm:$0xff]
    %v619 = vmul.f32 %v601, %v618
    %v620 = vmul.f32 %v586, %v617
    %v621 = vadd.f32 %v619, %v620
    %v622 = vtanh.pop %v621
    %v623 = vmul.f32 %v616, %v622
    %624 = vst [vmem:[#allocation4] sm:$0xff] %v621
    %v625 = vpack.c.bf16 %v623, %v623
    %626 = vst [vmem:[#allocation3] sm:$0xf] %v625
    %627 = vst [vmem:[#allocation10] sm:$0xf] %v625
    %s628 = smul.u32 1, 4
    %s629 = smul.addr %s628, 8
    %s630 = scalar_lea.vmem [#allocation2], %s629
    %v631 = vld [vmem:[%s630] sm:$0xff]
    %v632 = vld [vmem:[%s630 + $0x8] sm:$0xff]
    %v633 = vld [vmem:[%s630 + $0x10] sm:$0xff]
    %v634 = vld [vmem:[%s630 + $0x18] sm:$0xff]
    %v635 = vld [vmem:[#allocation3] sm:$0xf]
    %v636 = vld [vmem:[#allocation8] sm:$0xff]
    %v637 = vld [vmem:[#allocation8 + $0x8] sm:$0xff]
    %v638 = vld [vmem:[#allocation8 + $0x10] sm:$0xff]
    %v639 = vld [vmem:[#allocation8 + $0x18] sm:$0xff]
    %v640 = vld [vmem:[#allocation8 + $0x20] sm:$0xff]
    %v641 = vld [vmem:[#allocation8 + $0x28] sm:$0xff]
    %v642 = vld [vmem:[#allocation8 + $0x30] sm:$0xff]
    %v643 = vld [vmem:[#allocation8 + $0x38] sm:$0xff]
    %v644 = vld [vmem:[#allocation8 + $0x40] sm:$0xff]
    %v645 = vld [vmem:[#allocation8 + $0x48] sm:$0xff]
    %v646 = vld [vmem:[#allocation8 + $0x50] sm:$0xff]
    %v647 = vld [vmem:[#allocation8 + $0x58] sm:$0xff]
    %v648 = vld [vmem:[#allocation8 + $0x60] sm:$0xff]
    %v649 = vld [vmem:[#allocation8 + $0x68] sm:$0xff]
    %v650 = vld [vmem:[#allocation8 + $0x70] sm:$0xff]
    %v651 = vld [vmem:[#allocation8 + $0x78] sm:$0xff]
    %v652 = vld [vmem:[#allocation8 + $0x80] sm:$0xff]
    %v653 = vld [vmem:[#allocation8 + $0x88] sm:$0xff]
    %v654 = vld [vmem:[#allocation8 + $0x90] sm:$0xff]
    %v655 = vld [vmem:[#allocation8 + $0x98] sm:$0xff]
    %v656 = vld [vmem:[#allocation8 + $0xa0] sm:$0xff]
    %v657 = vld [vmem:[#allocation8 + $0xa8] sm:$0xff]
    %v658 = vld [vmem:[#allocation8 + $0xb0] sm:$0xff]
    %v659 = vld [vmem:[#allocation8 + $0xb8] sm:$0xff]
    %v660 = vld [vmem:[#allocation8 + $0xc0] sm:$0xff]
    %v661 = vld [vmem:[#allocation8 + $0xc8] sm:$0xff]
    %v662 = vld [vmem:[#allocation8 + $0xd0] sm:$0xff]
    %v663 = vld [vmem:[#allocation8 + $0xd8] sm:$0xff]
    %v664 = vld [vmem:[#allocation8 + $0xe0] sm:$0xff]
    %v665 = vld [vmem:[#allocation8 + $0xe8] sm:$0xff]
    %v666 = vld [vmem:[#allocation8 + $0xf0] sm:$0xff]
    %v667 = vld [vmem:[#allocation8 + $0xf8] sm:$0xff]
    %v700 = vunpack.c.l.b16 %v636
    %v701 = vunpack.c.h.b16 %v636
    %v702 = vunpack.c.l.b16 %v637
    %v703 = vunpack.c.h.b16 %v637
    %v704 = vunpack.c.l.b16 %v638
    %v705 = vunpack.c.h.b16 %v638
    %v706 = vunpack.c.l.b16 %v639
    %v707 = vunpack.c.h.b16 %v639
    %v708 = vunpack.c.l.b16 %v640
    %v709 = vunpack.c.h.b16 %v640
    %v710 = vunpack.c.l.b16 %v641
    %v711 = vunpack.c.h.b16 %v641
    %v712 = vunpack.c.l.b16 %v642
    %v713 = vunpack.c.h.b16 %v642
    %v714 = vunpack.c.l.b16 %v643
    %v715 = vunpack.c.h.b16 %v643
    %v716 = vunpack.c.l.b16 %v644
    %v717 = vunpack.c.h.b16 %v644
    %v718 = vunpack.c.l.b16 %v645
    %v719 = vunpack.c.h.b16 %v645
    %v720 = vunpack.c.l.b16 %v646
    %v721 = vunpack.c.h.b16 %v646
    %v722 = vunpack.c.l.b16 %v647
    %v723 = vunpack.c.h.b16 %v647
    %v724 = vunpack.c.l.b16 %v648
    %v725 = vunpack.c.h.b16 %v648
    %v726 = vunpack.c.l.b16 %v649
    %v727 = vunpack.c.h.b16 %v649
    %v728 = vunpack.c.l.b16 %v650
    %v729 = vunpack.c.h.b16 %v650
    %v730 = vunpack.c.l.b16 %v651
    %v731 = vunpack.c.h.b16 %v651
    %v732 = vunpack.c.l.b16 %v652
    %v733 = vunpack.c.h.b16 %v652
    %v734 = vunpack.c.l.b16 %v653
    %v735 = vunpack.c.h.b16 %v653
    %v736 = vunpack.c.l.b16 %v654
    %v737 = vunpack.c.h.b16 %v654
    %v738 = vunpack.c.l.b16 %v655
    %v739 = vunpack.c.h.b16 %v655
    %v740 = vunpack.c.l.b16 %v656
    %v741 = vunpack.c.h.b16 %v656
    %v742 = vunpack.c.l.b16 %v657
    %v743 = vunpack.c.h.b16 %v657
    %v744 = vunpack.c.l.b16 %v658
    %v745 = vunpack.c.h.b16 %v658
    %v746 = vunpack.c.l.b16 %v659
    %v747 = vunpack.c.h.b16 %v659
    %v748 = vunpack.c.l.b16 %v660
    %v749 = vunpack.c.h.b16 %v660
    %v750 = vunpack.c.l.b16 %v661
    %v751 = vunpack.c.h.b16 %v661
    %v752 = vunpack.c.l.b16 %v662
    %v753 = vunpack.c.h.b16 %v662
    %v754 = vunpack.c.l.b16 %v663
    %v755 = vunpack.c.h.b16 %v663
    %v756 = vunpack.c.l.b16 %v664
    %v757 = vunpack.c.h.b16 %v664
    %v758 = vunpack.c.l.b16 %v665
    %v759 = vunpack.c.h.b16 %v665
    %v760 = vunpack.c.l.b16 %v666
    %v761 = vunpack.c.h.b16 %v666
    %v762 = vunpack.c.l.b16 %v667
    %v763 = vunpack.c.h.b16 %v667
    %v764 = vpack.c.b16 %v704, %v700
    %v765 = vpack.c.b16 %v705, %v701
    %v766 = vpack.c.b16 %v706, %v702
    %v767 = vpack.c.b16 %v707, %v703
    %v768 = vpack.c.b16 %v712, %v708
    %v769 = vpack.c.b16 %v713, %v709
    %v770 = vpack.c.b16 %v714, %v710
    %v771 = vpack.c.b16 %v715, %v711
    %v772 = vpack.c.b16 %v720, %v716
    %v773 = vpack.c.b16 %v721, %v717
    %v774 = vpack.c.b16 %v722, %v718
    %v775 = vpack.c.b16 %v723, %v719
    %v776 = vpack.c.b16 %v728, %v724
    %v777 = vpack.c.b16 %v729, %v725
    %v778 = vpack.c.b16 %v730, %v726
    %v779 = vpack.c.b16 %v731, %v727
    %v780 = vpack.c.b16 %v736, %v732
    %v781 = vpack.c.b16 %v737, %v733
    %v782 = vpack.c.b16 %v738, %v734
    %v783 = vpack.c.b16 %v739, %v735
    %v784 = vpack.c.b16 %v744, %v740
    %v785 = vpack.c.b16 %v745, %v741
    %v786 = vpack.c.b16 %v746, %v742
    %v787 = vpack.c.b16 %v747, %v743
    %v788 = vpack.c.b16 %v752, %v748
    %v789 = vpack.c.b16 %v753, %v749
    %v790 = vpack.c.b16 %v754, %v750
    %v791 = vpack.c.b16 %v755, %v751
    %v792 = vpack.c.b16 %v760, %v756
    %v793 = vpack.c.b16 %v761, %v757
    %v794 = vpack.c.b16 %v762, %v758
    %v795 = vpack.c.b16 %v763, %v759
    %828 = vmatpush.bf16.msra.mxu0 %v792
    %829 = vmatpush.bf16.msra.mxu0 %v788
    %830 = vmatpush.bf16.msra.mxu0 %v784
    %831 = vmatpush.bf16.msra.mxu0 %v780
    %832 = vmatpush.bf16.msra.mxu0 %v776
    %833 = vmatpush.bf16.msra.mxu0 %v772
    %834 = vmatpush.bf16.msra.mxu0 %v768
    %835 = vmatpush.bf16.msra.mxu0 %v764
    %836 = vmatmul.bf16.gmra.mxu0 %v635
    %v837 = vpop.f32.mrf.mxu0
    %v838 = vadd.f32 0.0, %v837
    %v839 = vpop.f32.mrf.mxu0
    %840 = vdwg.mxu0
    %841 = vmatpush.bf16.msra.mxu0 %v793
    %842 = vmatpush.bf16.msra.mxu0 %v789
    %843 = vmatpush.bf16.msra.mxu0 %v785
    %844 = vmatpush.bf16.msra.mxu0 %v781
    %845 = vmatpush.bf16.msra.mxu0 %v777
    %846 = vmatpush.bf16.msra.mxu0 %v773
    %847 = vmatpush.bf16.msra.mxu0 %v769
    %848 = vmatpush.bf16.msra.mxu0 %v765
    %849 = vmatmul.bf16.gmra.mxu0 %v635
    %v850 = vpop.f32.mrf.mxu0
    %v851 = vadd.f32 0.0, %v850
    %v852 = vpop.f32.mrf.mxu0
    %853 = vdwg.mxu0
    %854 = vmatpush.bf16.msra.mxu0 %v794
    %855 = vmatpush.bf16.msra.mxu0 %v790
    %856 = vmatpush.bf16.msra.mxu0 %v786
    %857 = vmatpush.bf16.msra.mxu0 %v782
    %858 = vmatpush.bf16.msra.mxu0 %v778
    %859 = vmatpush.bf16.msra.mxu0 %v774
    %860 = vmatpush.bf16.msra.mxu0 %v770
    %861 = vmatpush.bf16.msra.mxu0 %v766
    %862 = vmatmul.bf16.gmra.mxu0 %v635
    %v863 = vpop.f32.mrf.mxu0
    %v864 = vadd.f32 0.0, %v863
    %v865 = vpop.f32.mrf.mxu0
    %866 = vdwg.mxu0
    %867 = vmatpush.bf16.msra.mxu0 %v795
    %868 = vmatpush.bf16.msra.mxu0 %v791
    %869 = vmatpush.bf16.msra.mxu0 %v787
    %870 = vmatpush.bf16.msra.mxu0 %v783
    %871 = vmatpush.bf16.msra.mxu0 %v779
    %872 = vmatpush.bf16.msra.mxu0 %v775
    %873 = vmatpush.bf16.msra.mxu0 %v771
    %874 = vmatpush.bf16.msra.mxu0 %v767
    %875 = vmatmul.bf16.gmra.mxu0 %v635
    %v876 = vpop.f32.mrf.mxu0
    %v877 = vadd.f32 0.0, %v876
    %v878 = vpop.f32.mrf.mxu0
    %879 = vdwg.mxu0
    %v880 = vadd.f32 %v631, %v838
    %v881 = vadd.f32 %v632, %v851
    %v882 = vadd.f32 %v633, %v864
    %v883 = vadd.f32 %v634, %v877
    %v884 = vxor.u32 %v880, 2147483648
    %v885 = vxor.u32 %v881, 2147483648
    %v886 = vxor.u32 %v882, 2147483648
    %v887 = vmul.f32 %v884, 1.442695
    %v888 = vpow.pop %v887
    %v889 = vmul.f32 %v885, 1.442695
    %v890 = vpow.pop %v889
    %v891 = vmul.f32 %v886, 1.442695
    %v892 = vpow.pop %v891
    %v893 = vadd.f32 %v888, 1.0
    %v894 = vadd.f32 %v890, 1.0
    %v895 = vadd.f32 %v892, 1.0
    %v896 = vrcp.pop %v893
    %v897 = vmul.f32 %v893, %v896
    %v898 = vsub.f32 1.0, %v897
    %v899 = vmul.f32 %v896, %v898
    %v900 = vadd.f32 %v896, %v899
    %vm901 = vweird.f32 %v893
    %vm902 = vweird.f32 %v896
    %vm903 = vmor %vm901, %vm902
    %v904 = vsel %vm903, %v896, %v900
    %v905 = vand.u32 2147483647, %v893
    %vm906 = vcmp.eq.f32.partialorder %v905, 8.507059e+37
    %v907 = vand.u32 %v893, 2147483648
    %v908 = vor.u32 1.1754944e-38, %v907
    %v909 = vsel %vm906, %v908, %v904
    %v910 = vmul.f32 1.0, %v909
    %v911 = vrcp.pop %v894
    %v912 = vmul.f32 %v894, %v911
    %v913 = vsub.f32 1.0, %v912
    %v914 = vmul.f32 %v911, %v913
    %v915 = vadd.f32 %v911, %v914
    %vm916 = vweird.f32 %v894
    %vm917 = vweird.f32 %v911
    %vm918 = vmor %vm916, %vm917
    %v919 = vsel %vm918, %v911, %v915
    %v920 = vand.u32 2147483647, %v894
    %vm921 = vcmp.eq.f32.partialorder %v920, 8.507059e+37
    %v922 = vand.u32 %v894, 2147483648
    %v923 = vor.u32 1.1754944e-38, %v922
    %v924 = vsel %vm921, %v923, %v919
    %v925 = vmul.f32 1.0, %v924
    %v926 = vrcp.pop %v895
    %v927 = vmul.f32 %v895, %v926
    %v928 = vsub.f32 1.0, %v927
    %v929 = vmul.f32 %v926, %v928
    %v930 = vadd.f32 %v926, %v929
    %vm931 = vweird.f32 %v895
    %vm932 = vweird.f32 %v926
    %vm933 = vmor %vm931, %vm932
    %v934 = vsel %vm933, %v926, %v930
    %v935 = vand.u32 2147483647, %v895
    %vm936 = vcmp.eq.f32.partialorder %v935, 8.507059e+37
    %v937 = vand.u32 %v895, 2147483648
    %v938 = vor.u32 1.1754944e-38, %v937
    %v939 = vsel %vm936, %v938, %v934
    %v940 = vmul.f32 1.0, %v939
    %v941 = vtanh.pop %v883
    %v942 = vld [vmem:[#allocation4] sm:$0xff]
    %v943 = vmul.f32 %v925, %v942
    %v944 = vmul.f32 %v910, %v941
    %v945 = vadd.f32 %v943, %v944
    %v946 = vtanh.pop %v945
    %v947 = vmul.f32 %v940, %v946
    %948 = vst [vmem:[#allocation4] sm:$0xff] %v945
    %v949 = vpack.c.bf16 %v947, %v947
    %950 = vst [vmem:[#allocation3] sm:$0xf] %v949
    %s951 = scalar_lea.vmem [#allocation10], 4
    %952 = vst [vmem:[%s951] sm:$0xf] %v949
    %s953 = smul.u32 2, 4
    %s954 = smul.addr %s953, 8
    %s955 = scalar_lea.vmem [#allocation2], %s954
    %v956 = vld [vmem:[%s955] sm:$0xff]
    %v957 = vld [vmem:[%s955 + $0x8] sm:$0xff]
    %v958 = vld [vmem:[%s955 + $0x10] sm:$0xff]
    %v959 = vld [vmem:[%s955 + $0x18] sm:$0xff]
    %v960 = vld [vmem:[#allocation3] sm:$0xf]
    %v961 = vld [vmem:[#allocation8] sm:$0xff]
    %v962 = vld [vmem:[#allocation8 + $0x8] sm:$0xff]
    %v963 = vld [vmem:[#allocation8 + $0x10] sm:$0xff]
    %v964 = vld [vmem:[#allocation8 + $0x18] sm:$0xff]
    %v965 = vld [vmem:[#allocation8 + $0x20] sm:$0xff]
    %v966 = vld [vmem:[#allocation8 + $0x28] sm:$0xff]
    %v967 = vld [vmem:[#allocation8 + $0x30] sm:$0xff]
    %v968 = vld [vmem:[#allocation8 + $0x38] sm:$0xff]
    %v969 = vld [vmem:[#allocation8 + $0x40] sm:$0xff]
    %v970 = vld [vmem:[#allocation8 + $0x48] sm:$0xff]
    %v971 = vld [vmem:[#allocation8 + $0x50] sm:$0xff]
    %v972 = vld [vmem:[#allocation8 + $0x58] sm:$0xff]
    %v973 = vld [vmem:[#allocation8 + $0x60] sm:$0xff]
    %v974 = vld [vmem:[#allocation8 + $0x68] sm:$0xff]
    %v975 = vld [vmem:[#allocation8 + $0x70] sm:$0xff]
    %v976 = vld [vmem:[#allocation8 + $0x78] sm:$0xff]
    %v977 = vld [vmem:[#allocation8 + $0x80] sm:$0xff]
    %v978 = vld [vmem:[#allocation8 + $0x88] sm:$0xff]
    %v979 = vld [vmem:[#allocation8 + $0x90] sm:$0xff]
    %v980 = vld [vmem:[#allocation8 + $0x98] sm:$0xff]
    %v981 = vld [vmem:[#allocation8 + $0xa0] sm:$0xff]
    %v982 = vld [vmem:[#allocation8 + $0xa8] sm:$0xff]
    %v983 = vld [vmem:[#allocation8 + $0xb0] sm:$0xff]
    %v984 = vld [vmem:[#allocation8 + $0xb8] sm:$0xff]
    %v985 = vld [vmem:[#allocation8 + $0xc0] sm:$0xff]
    %v986 = vld [vmem:[#allocation8 + $0xc8] sm:$0xff]
    %v987 = vld [vmem:[#allocation8 + $0xd0] sm:$0xff]
    %v988 = vld [vmem:[#allocation8 + $0xd8] sm:$0xff]
    %v989 = vld [vmem:[#allocation8 + $0xe0] sm:$0xff]
    %v990 = vld [vmem:[#allocation8 + $0xe8] sm:$0xff]
    %v991 = vld [vmem:[#allocation8 + $0xf0] sm:$0xff]
    %v992 = vld [vmem:[#allocation8 + $0xf8] sm:$0xff]
    %v1025 = vunpack.c.l.b16 %v961
    %v1026 = vunpack.c.h.b16 %v961
    %v1027 = vunpack.c.l.b16 %v962
    %v1028 = vunpack.c.h.b16 %v962
    %v1029 = vunpack.c.l.b16 %v963
    %v1030 = vunpack.c.h.b16 %v963
    %v1031 = vunpack.c.l.b16 %v964
    %v1032 = vunpack.c.h.b16 %v964
    %v1033 = vunpack.c.l.b16 %v965
    %v1034 = vunpack.c.h.b16 %v965
    %v1035 = vunpack.c.l.b16 %v966
    %v1036 = vunpack.c.h.b16 %v966
    %v1037 = vunpack.c.l.b16 %v967
    %v1038 = vunpack.c.h.b16 %v967
    %v1039 = vunpack.c.l.b16 %v968
    %v1040 = vunpack.c.h.b16 %v968
    %v1041 = vunpack.c.l.b16 %v969
    %v1042 = vunpack.c.h.b16 %v969
    %v1043 = vunpack.c.l.b16 %v970
    %v1044 = vunpack.c.h.b16 %v970
    %v1045 = vunpack.c.l.b16 %v971
    %v1046 = vunpack.c.h.b16 %v971
    %v1047 = vunpack.c.l.b16 %v972
    %v1048 = vunpack.c.h.b16 %v972
    %v1049 = vunpack.c.l.b16 %v973
    %v1050 = vunpack.c.h.b16 %v973
    %v1051 = vunpack.c.l.b16 %v974
    %v1052 = vunpack.c.h.b16 %v974
    %v1053 = vunpack.c.l.b16 %v975
    %v1054 = vunpack.c.h.b16 %v975
    %v1055 = vunpack.c.l.b16 %v976
    %v1056 = vunpack.c.h.b16 %v976
    %v1057 = vunpack.c.l.b16 %v977
    %v1058 = vunpack.c.h.b16 %v977
    %v1059 = vunpack.c.l.b16 %v978
    %v1060 = vunpack.c.h.b16 %v978
    %v1061 = vunpack.c.l.b16 %v979
    %v1062 = vunpack.c.h.b16 %v979
    %v1063 = vunpack.c.l.b16 %v980
    %v1064 = vunpack.c.h.b16 %v980
    %v1065 = vunpack.c.l.b16 %v981
    %v1066 = vunpack.c.h.b16 %v981
    %v1067 = vunpack.c.l.b16 %v982
    %v1068 = vunpack.c.h.b16 %v982
    %v1069 = vunpack.c.l.b16 %v983
    %v1070 = vunpack.c.h.b16 %v983
    %v1071 = vunpack.c.l.b16 %v984
    %v1072 = vunpack.c.h.b16 %v984
    %v1073 = vunpack.c.l.b16 %v985
    %v1074 = vunpack.c.h.b16 %v985
    %v1075 = vunpack.c.l.b16 %v986
    %v1076 = vunpack.c.h.b16 %v986
    %v1077 = vunpack.c.l.b16 %v987
    %v1078 = vunpack.c.h.b16 %v987
    %v1079 = vunpack.c.l.b16 %v988
    %v1080 = vunpack.c.h.b16 %v988
    %v1081 = vunpack.c.l.b16 %v989
    %v1082 = vunpack.c.h.b16 %v989
    %v1083 = vunpack.c.l.b16 %v990
    %v1084 = vunpack.c.h.b16 %v990
    %v1085 = vunpack.c.l.b16 %v991
    %v1086 = vunpack.c.h.b16 %v991
    %v1087 = vunpack.c.l.b16 %v992
    %v1088 = vunpack.c.h.b16 %v992
    %v1089 = vpack.c.b16 %v1029, %v1025
    %v1090 = vpack.c.b16 %v1030, %v1026
    %v1091 = vpack.c.b16 %v1031, %v1027
    %v1092 = vpack.c.b16 %v1032, %v1028
    %v1093 = vpack.c.b16 %v1037, %v1033
    %v1094 = vpack.c.b16 %v1038, %v1034
    %v1095 = vpack.c.b16 %v1039, %v1035
    %v1096 = vpack.c.b16 %v1040, %v1036
    %v1097 = vpack.c.b16 %v1045, %v1041
    %v1098 = vpack.c.b16 %v1046, %v1042
    %v1099 = vpack.c.b16 %v1047, %v1043
    %v1100 = vpack.c.b16 %v1048, %v1044
    %v1101 = vpack.c.b16 %v1053, %v1049
    %v1102 = vpack.c.b16 %v1054, %v1050
    %v1103 = vpack.c.b16 %v1055, %v1051
    %v1104 = vpack.c.b16 %v1056, %v1052
    %v1105 = vpack.c.b16 %v1061, %v1057
    %v1106 = vpack.c.b16 %v1062, %v1058
    %v1107 = vpack.c.b16 %v1063, %v1059
    %v1108 = vpack.c.b16 %v1064, %v1060
    %v1109 = vpack.c.b16 %v1069, %v1065
    %v1110 = vpack.c.b16 %v1070, %v1066
    %v1111 = vpack.c.b16 %v1071, %v1067
    %v1112 = vpack.c.b16 %v1072, %v1068
    %v1113 = vpack.c.b16 %v1077, %v1073
    %v1114 = vpack.c.b16 %v1078, %v1074
    %v1115 = vpack.c.b16 %v1079, %v1075
    %v1116 = vpack.c.b16 %v1080, %v1076
    %v1117 = vpack.c.b16 %v1085, %v1081
    %v1118 = vpack.c.b16 %v1086, %v1082
    %v1119 = vpack.c.b16 %v1087, %v1083
    %v1120 = vpack.c.b16 %v1088, %v1084
    %1153 = vmatpush.bf16.msra.mxu0 %v1117
    %1154 = vmatpush.bf16.msra.mxu0 %v1113
    %1155 = vmatpush.bf16.msra.mxu0 %v1109
    %1156 = vmatpush.bf16.msra.mxu0 %v1105
    %1157 = vmatpush.bf16.msra.mxu0 %v1101
    %1158 = vmatpush.bf16.msra.mxu0 %v1097
    %1159 = vmatpush.bf16.msra.mxu0 %v1093
    %1160 = vmatpush.bf16.msra.mxu0 %v1089
    %1161 = vmatmul.bf16.gmra.mxu0 %v960
    %v1162 = vpop.f32.mrf.mxu0
    %v1163 = vadd.f32 0.0, %v1162
    %v1164 = vpop.f32.mrf.mxu0
    %1165 = vdwg.mxu0
    %1166 = vmatpush.bf16.msra.mxu0 %v1118
    %1167 = vmatpush.bf16.msra.mxu0 %v1114
    %1168 = vmatpush.bf16.msra.mxu0 %v1110
    %1169 = vmatpush.bf16.msra.mxu0 %v1106
    %1170 = vmatpush.bf16.msra.mxu0 %v1102
    %1171 = vmatpush.bf16.msra.mxu0 %v1098
    %1172 = vmatpush.bf16.msra.mxu0 %v1094
    %1173 = vmatpush.bf16.msra.mxu0 %v1090
    %1174 = vmatmul.bf16.gmra.mxu0 %v960
    %v1175 = vpop.f32.mrf.mxu0
    %v1176 = vadd.f32 0.0, %v1175
    %v1177 = vpop.f32.mrf.mxu0
    %1178 = vdwg.mxu0
    %1179 = vmatpush.bf16.msra.mxu0 %v1119
    %1180 = vmatpush.bf16.msra.mxu0 %v1115
    %1181 = vmatpush.bf16.msra.mxu0 %v1111
    %1182 = vmatpush.bf16.msra.mxu0 %v1107
    %1183 = vmatpush.bf16.msra.mxu0 %v1103
    %1184 = vmatpush.bf16.msra.mxu0 %v1099
    %1185 = vmatpush.bf16.msra.mxu0 %v1095
    %1186 = vmatpush.bf16.msra.mxu0 %v1091
    %1187 = vmatmul.bf16.gmra.mxu0 %v960
    %v1188 = vpop.f32.mrf.mxu0
    %v1189 = vadd.f32 0.0, %v1188
    %v1190 = vpop.f32.mrf.mxu0
    %1191 = vdwg.mxu0
    %1192 = vmatpush.bf16.msra.mxu0 %v1120
    %1193 = vmatpush.bf16.msra.mxu0 %v1116
    %1194 = vmatpush.bf16.msra.mxu0 %v1112
    %1195 = vmatpush.bf16.msra.mxu0 %v1108
    %1196 = vmatpush.bf16.msra.mxu0 %v1104
    %1197 = vmatpush.bf16.msra.mxu0 %v1100
    %1198 = vmatpush.bf16.msra.mxu0 %v1096
    %1199 = vmatpush.bf16.msra.mxu0 %v1092
    %1200 = vmatmul.bf16.gmra.mxu0 %v960
    %v1201 = vpop.f32.mrf.mxu0
    %v1202 = vadd.f32 0.0, %v1201
    %v1203 = vpop.f32.mrf.mxu0
    %1204 = vdwg.mxu0
    %v1205 = vadd.f32 %v956, %v1163
    %v1206 = vadd.f32 %v957, %v1176
    %v1207 = vadd.f32 %v958, %v1189
    %v1208 = vadd.f32 %v959, %v1202
    %v1209 = vxor.u32 %v1205, 2147483648
    %v1210 = vxor.u32 %v1206, 2147483648
    %v1211 = vxor.u32 %v1207, 2147483648
    %v1212 = vmul.f32 %v1209, 1.442695
    %v1213 = vpow.pop %v1212
    %v1214 = vmul.f32 %v1210, 1.442695
    %v1215 = vpow.pop %v1214
    %v1216 = vmul.f32 %v1211, 1.442695
    %v1217 = vpow.pop %v1216
    %v1218 = vadd.f32 %v1213, 1.0
    %v1219 = vadd.f32 %v1215, 1.0
    %v1220 = vadd.f32 %v1217, 1.0
    %v1221 = vrcp.pop %v1218
    %v1222 = vmul.f32 %v1218, %v1221
    %v1223 = vsub.f32 1.0, %v1222
    %v1224 = vmul.f32 %v1221, %v1223
    %v1225 = vadd.f32 %v1221, %v1224
    %vm1226 = vweird.f32 %v1218
    %vm1227 = vweird.f32 %v1221
    %vm1228 = vmor %vm1226, %vm1227
    %v1229 = vsel %vm1228, %v1221, %v1225
    %v1230 = vand.u32 2147483647, %v1218
    %vm1231 = vcmp.eq.f32.partialorder %v1230, 8.507059e+37
    %v1232 = vand.u32 %v1218, 2147483648
    %v1233 = vor.u32 1.1754944e-38, %v1232
    %v1234 = vsel %vm1231, %v1233, %v1229
    %v1235 = vmul.f32 1.0, %v1234
    %v1236 = vrcp.pop %v1219
    %v1237 = vmul.f32 %v1219, %v1236
    %v1238 = vsub.f32 1.0, %v1237
    %v1239 = vmul.f32 %v1236, %v1238
    %v1240 = vadd.f32 %v1236, %v1239
    %vm1241 = vweird.f32 %v1219
    %vm1242 = vweird.f32 %v1236
    %vm1243 = vmor %vm1241, %vm1242
    %v1244 = vsel %vm1243, %v1236, %v1240
    %v1245 = vand.u32 2147483647, %v1219
    %vm1246 = vcmp.eq.f32.partialorder %v1245, 8.507059e+37
    %v1247 = vand.u32 %v1219, 2147483648
    %v1248 = vor.u32 1.1754944e-38, %v1247
    %v1249 = vsel %vm1246, %v1248, %v1244
    %v1250 = vmul.f32 1.0, %v1249
    %v1251 = vrcp.pop %v1220
    %v1252 = vmul.f32 %v1220, %v1251
    %v1253 = vsub.f32 1.0, %v1252
    %v1254 = vmul.f32 %v1251, %v1253
    %v1255 = vadd.f32 %v1251, %v1254
    %vm1256 = vweird.f32 %v1220
    %vm1257 = vweird.f32 %v1251
    %vm1258 = vmor %vm1256, %vm1257
    %v1259 = vsel %vm1258, %v1251, %v1255
    %v1260 = vand.u32 2147483647, %v1220
    %vm1261 = vcmp.eq.f32.partialorder %v1260, 8.507059e+37
    %v1262 = vand.u32 %v1220, 2147483648
    %v1263 = vor.u32 1.1754944e-38, %v1262
    %v1264 = vsel %vm1261, %v1263, %v1259
    %v1265 = vmul.f32 1.0, %v1264
    %v1266 = vtanh.pop %v1208
    %v1267 = vld [vmem:[#allocation4] sm:$0xff]
    %v1268 = vmul.f32 %v1250, %v1267
    %v1269 = vmul.f32 %v1235, %v1266
    %v1270 = vadd.f32 %v1268, %v1269
    %v1271 = vtanh.pop %v1270
    %v1272 = vmul.f32 %v1265, %v1271
    %1273 = vst [vmem:[#allocation4] sm:$0xff] %v1270
    %v1274 = vpack.c.bf16 %v1272, %v1272
    %1275 = vst [vmem:[#allocation3] sm:$0xf] %v1274
    %s1276 = scalar_lea.vmem [#allocation10], 8
    %1277 = vst [vmem:[%s1276] sm:$0xf] %v1274
    %s1278 = smul.u32 3, 4
    %s1279 = smul.addr %s1278, 8
    %s1280 = scalar_lea.vmem [#allocation2], %s1279
    %v1281 = vld [vmem:[%s1280] sm:$0xff]
    %v1282 = vld [vmem:[%s1280 + $0x8] sm:$0xff]
    %v1283 = vld [vmem:[%s1280 + $0x10] sm:$0xff]
    %v1284 = vld [vmem:[%s1280 + $0x18] sm:$0xff]
    %v1285 = vld [vmem:[#allocation3] sm:$0xf]
    %v1286 = vld [vmem:[#allocation8] sm:$0xff]
    %v1287 = vld [vmem:[#allocation8 + $0x8] sm:$0xff]
    %v1288 = vld [vmem:[#allocation8 + $0x10] sm:$0xff]
    %v1289 = vld [vmem:[#allocation8 + $0x18] sm:$0xff]
    %v1290 = vld [vmem:[#allocation8 + $0x20] sm:$0xff]
    %v1291 = vld [vmem:[#allocation8 + $0x28] sm:$0xff]
    %v1292 = vld [vmem:[#allocation8 + $0x30] sm:$0xff]
    %v1293 = vld [vmem:[#allocation8 + $0x38] sm:$0xff]
    %v1294 = vld [vmem:[#allocation8 + $0x40] sm:$0xff]
    %v1295 = vld [vmem:[#allocation8 + $0x48] sm:$0xff]
    %v1296 = vld [vmem:[#allocation8 + $0x50] sm:$0xff]
    %v1297 = vld [vmem:[#allocation8 + $0x58] sm:$0xff]
    %v1298 = vld [vmem:[#allocation8 + $0x60] sm:$0xff]
    %v1299 = vld [vmem:[#allocation8 + $0x68] sm:$0xff]
    %v1300 = vld [vmem:[#allocation8 + $0x70] sm:$0xff]
    %v1301 = vld [vmem:[#allocation8 + $0x78] sm:$0xff]
    %v1302 = vld [vmem:[#allocation8 + $0x80] sm:$0xff]
    %v1303 = vld [vmem:[#allocation8 + $0x88] sm:$0xff]
    %v1304 = vld [vmem:[#allocation8 + $0x90] sm:$0xff]
    %v1305 = vld [vmem:[#allocation8 + $0x98] sm:$0xff]
    %v1306 = vld [vmem:[#allocation8 + $0xa0] sm:$0xff]
    %v1307 = vld [vmem:[#allocation8 + $0xa8] sm:$0xff]
    %v1308 = vld [vmem:[#allocation8 + $0xb0] sm:$0xff]
    %v1309 = vld [vmem:[#allocation8 + $0xb8] sm:$0xff]
    %v1310 = vld [vmem:[#allocation8 + $0xc0] sm:$0xff]
    %v1311 = vld [vmem:[#allocation8 + $0xc8] sm:$0xff]
    %v1312 = vld [vmem:[#allocation8 + $0xd0] sm:$0xff]
    %v1313 = vld [vmem:[#allocation8 + $0xd8] sm:$0xff]
    %v1314 = vld [vmem:[#allocation8 + $0xe0] sm:$0xff]
    %v1315 = vld [vmem:[#allocation8 + $0xe8] sm:$0xff]
    %v1316 = vld [vmem:[#allocation8 + $0xf0] sm:$0xff]
    %v1317 = vld [vmem:[#allocation8 + $0xf8] sm:$0xff]
    %v1350 = vunpack.c.l.b16 %v1286
    %v1351 = vunpack.c.h.b16 %v1286
    %v1352 = vunpack.c.l.b16 %v1287
    %v1353 = vunpack.c.h.b16 %v1287
    %v1354 = vunpack.c.l.b16 %v1288
    %v1355 = vunpack.c.h.b16 %v1288
    %v1356 = vunpack.c.l.b16 %v1289
    %v1357 = vunpack.c.h.b16 %v1289
    %v1358 = vunpack.c.l.b16 %v1290
    %v1359 = vunpack.c.h.b16 %v1290
    %v1360 = vunpack.c.l.b16 %v1291
    %v1361 = vunpack.c.h.b16 %v1291
    %v1362 = vunpack.c.l.b16 %v1292
    %v1363 = vunpack.c.h.b16 %v1292
    %v1364 = vunpack.c.l.b16 %v1293
    %v1365 = vunpack.c.h.b16 %v1293
    %v1366 = vunpack.c.l.b16 %v1294
    %v1367 = vunpack.c.h.b16 %v1294
    %v1368 = vunpack.c.l.b16 %v1295
    %v1369 = vunpack.c.h.b16 %v1295
    %v1370 = vunpack.c.l.b16 %v1296
    %v1371 = vunpack.c.h.b16 %v1296
    %v1372 = vunpack.c.l.b16 %v1297
    %v1373 = vunpack.c.h.b16 %v1297
    %v1374 = vunpack.c.l.b16 %v1298
    %v1375 = vunpack.c.h.b16 %v1298
    %v1376 = vunpack.c.l.b16 %v1299
    %v1377 = vunpack.c.h.b16 %v1299
    %v1378 = vunpack.c.l.b16 %v1300
    %v1379 = vunpack.c.h.b16 %v1300
    %v1380 = vunpack.c.l.b16 %v1301
    %v1381 = vunpack.c.h.b16 %v1301
    %v1382 = vunpack.c.l.b16 %v1302
    %v1383 = vunpack.c.h.b16 %v1302
    %v1384 = vunpack.c.l.b16 %v1303
    %v1385 = vunpack.c.h.b16 %v1303
    %v1386 = vunpack.c.l.b16 %v1304
    %v1387 = vunpack.c.h.b16 %v1304
    %v1388 = vunpack.c.l.b16 %v1305
    %v1389 = vunpack.c.h.b16 %v1305
    %v1390 = vunpack.c.l.b16 %v1306
    %v1391 = vunpack.c.h.b16 %v1306
    %v1392 = vunpack.c.l.b16 %v1307
    %v1393 = vunpack.c.h.b16 %v1307
    %v1394 = vunpack.c.l.b16 %v1308
    %v1395 = vunpack.c.h.b16 %v1308
    %v1396 = vunpack.c.l.b16 %v1309
    %v1397 = vunpack.c.h.b16 %v1309
    %v1398 = vunpack.c.l.b16 %v1310
    %v1399 = vunpack.c.h.b16 %v1310
    %v1400 = vunpack.c.l.b16 %v1311
    %v1401 = vunpack.c.h.b16 %v1311
    %v1402 = vunpack.c.l.b16 %v1312
    %v1403 = vunpack.c.h.b16 %v1312
    %v1404 = vunpack.c.l.b16 %v1313
    %v1405 = vunpack.c.h.b16 %v1313
    %v1406 = vunpack.c.l.b16 %v1314
    %v1407 = vunpack.c.h.b16 %v1314
    %v1408 = vunpack.c.l.b16 %v1315
    %v1409 = vunpack.c.h.b16 %v1315
    %v1410 = vunpack.c.l.b16 %v1316
    %v1411 = vunpack.c.h.b16 %v1316
    %v1412 = vunpack.c.l.b16 %v1317
    %v1413 = vunpack.c.h.b16 %v1317
    %v1414 = vpack.c.b16 %v1354, %v1350
    %v1415 = vpack.c.b16 %v1355, %v1351
    %v1416 = vpack.c.b16 %v1356, %v1352
    %v1417 = vpack.c.b16 %v1357, %v1353
    %v1418 = vpack.c.b16 %v1362, %v1358
    %v1419 = vpack.c.b16 %v1363, %v1359
    %v1420 = vpack.c.b16 %v1364, %v1360
    %v1421 = vpack.c.b16 %v1365, %v1361
    %v1422 = vpack.c.b16 %v1370, %v1366
    %v1423 = vpack.c.b16 %v1371, %v1367
    %v1424 = vpack.c.b16 %v1372, %v1368
    %v1425 = vpack.c.b16 %v1373, %v1369
    %v1426 = vpack.c.b16 %v1378, %v1374
    %v1427 = vpack.c.b16 %v1379, %v1375
    %v1428 = vpack.c.b16 %v1380, %v1376
    %v1429 = vpack.c.b16 %v1381, %v1377
    %v1430 = vpack.c.b16 %v1386, %v1382
    %v1431 = vpack.c.b16 %v1387, %v1383
    %v1432 = vpack.c.b16 %v1388, %v1384
    %v1433 = vpack.c.b16 %v1389, %v1385
    %v1434 = vpack.c.b16 %v1394, %v1390
    %v1435 = vpack.c.b16 %v1395, %v1391
    %v1436 = vpack.c.b16 %v1396, %v1392
    %v1437 = vpack.c.b16 %v1397, %v1393
    %v1438 = vpack.c.b16 %v1402, %v1398
    %v1439 = vpack.c.b16 %v1403, %v1399
    %v1440 = vpack.c.b16 %v1404, %v1400
    %v1441 = vpack.c.b16 %v1405, %v1401
    %v1442 = vpack.c.b16 %v1410, %v1406
    %v1443 = vpack.c.b16 %v1411, %v1407
    %v1444 = vpack.c.b16 %v1412, %v1408
    %v1445 = vpack.c.b16 %v1413, %v1409
    %1478 = vmatpush.bf16.msra.mxu0 %v1442
    %1479 = vmatpush.bf16.msra.mxu0 %v1438
    %1480 = vmatpush.bf16.msra.mxu0 %v1434
    %1481 = vmatpush.bf16.msra.mxu0 %v1430
    %1482 = vmatpush.bf16.msra.mxu0 %v1426
    %1483 = vmatpush.bf16.msra.mxu0 %v1422
    %1484 = vmatpush.bf16.msra.mxu0 %v1418
    %1485 = vmatpush.bf16.msra.mxu0 %v1414
    %1486 = vmatmul.bf16.gmra.mxu0 %v1285
    %v1487 = vpop.f32.mrf.mxu0
    %v1488 = vadd.f32 0.0, %v1487
    %v1489 = vpop.f32.mrf.mxu0
    %1490 = vdwg.mxu0
    %1491 = vmatpush.bf16.msra.mxu0 %v1443
    %1492 = vmatpush.bf16.msra.mxu0 %v1439
    %1493 = vmatpush.bf16.msra.mxu0 %v1435
    %1494 = vmatpush.bf16.msra.mxu0 %v1431
    %1495 = vmatpush.bf16.msra.mxu0 %v1427
    %1496 = vmatpush.bf16.msra.mxu0 %v1423
    %1497 = vmatpush.bf16.msra.mxu0 %v1419
    %1498 = vmatpush.bf16.msra.mxu0 %v1415
    %1499 = vmatmul.bf16.gmra.mxu0 %v1285
    %v1500 = vpop.f32.mrf.mxu0
    %v1501 = vadd.f32 0.0, %v1500
    %v1502 = vpop.f32.mrf.mxu0
    %1503 = vdwg.mxu0
    %1504 = vmatpush.bf16.msra.mxu0 %v1444
    %1505 = vmatpush.bf16.msra.mxu0 %v1440
    %1506 = vmatpush.bf16.msra.mxu0 %v1436
    %1507 = vmatpush.bf16.msra.mxu0 %v1432
    %1508 = vmatpush.bf16.msra.mxu0 %v1428
    %1509 = vmatpush.bf16.msra.mxu0 %v1424
    %1510 = vmatpush.bf16.msra.mxu0 %v1420
    %1511 = vmatpush.bf16.msra.mxu0 %v1416
    %1512 = vmatmul.bf16.gmra.mxu0 %v1285
    %v1513 = vpop.f32.mrf.mxu0
    %v1514 = vadd.f32 0.0, %v1513
    %v1515 = vpop.f32.mrf.mxu0
    %1516 = vdwg.mxu0
    %1517 = vmatpush.bf16.msra.mxu0 %v1445
    %1518 = vmatpush.bf16.msra.mxu0 %v1441
    %1519 = vmatpush.bf16.msra.mxu0 %v1437
    %1520 = vmatpush.bf16.msra.mxu0 %v1433
    %1521 = vmatpush.bf16.msra.mxu0 %v1429
    %1522 = vmatpush.bf16.msra.mxu0 %v1425
    %1523 = vmatpush.bf16.msra.mxu0 %v1421
    %1524 = vmatpush.bf16.msra.mxu0 %v1417
    %1525 = vmatmul.bf16.gmra.mxu0 %v1285
    %v1526 = vpop.f32.mrf.mxu0
    %v1527 = vadd.f32 0.0, %v1526
    %v1528 = vpop.f32.mrf.mxu0
    %1529 = vdwg.mxu0
    %v1530 = vadd.f32 %v1281, %v1488
    %v1531 = vadd.f32 %v1282, %v1501
    %v1532 = vadd.f32 %v1283, %v1514
    %v1533 = vadd.f32 %v1284, %v1527
    %v1534 = vxor.u32 %v1530, 2147483648
    %v1535 = vxor.u32 %v1531, 2147483648
    %v1536 = vxor.u32 %v1532, 2147483648
    %v1537 = vmul.f32 %v1534, 1.442695
    %v1538 = vpow.pop %v1537
    %v1539 = vmul.f32 %v1535, 1.442695
    %v1540 = vpow.pop %v1539
    %v1541 = vmul.f32 %v1536, 1.442695
    %v1542 = vpow.pop %v1541
    %v1543 = vadd.f32 %v1538, 1.0
    %v1544 = vadd.f32 %v1540, 1.0
    %v1545 = vadd.f32 %v1542, 1.0
    %v1546 = vrcp.pop %v1543
    %v1547 = vmul.f32 %v1543, %v1546
    %v1548 = vsub.f32 1.0, %v1547
    %v1549 = vmul.f32 %v1546, %v1548
    %v1550 = vadd.f32 %v1546, %v1549
    %vm1551 = vweird.f32 %v1543
    %vm1552 = vweird.f32 %v1546
    %vm1553 = vmor %vm1551, %vm1552
    %v1554 = vsel %vm1553, %v1546, %v1550
    %v1555 = vand.u32 2147483647, %v1543
    %vm1556 = vcmp.eq.f32.partialorder %v1555, 8.507059e+37
    %v1557 = vand.u32 %v1543, 2147483648
    %v1558 = vor.u32 1.1754944e-38, %v1557
    %v1559 = vsel %vm1556, %v1558, %v1554
    %v1560 = vmul.f32 1.0, %v1559
    %v1561 = vrcp.pop %v1544
    %v1562 = vmul.f32 %v1544, %v1561
    %v1563 = vsub.f32 1.0, %v1562
    %v1564 = vmul.f32 %v1561, %v1563
    %v1565 = vadd.f32 %v1561, %v1564
    %vm1566 = vweird.f32 %v1544
    %vm1567 = vweird.f32 %v1561
    %vm1568 = vmor %vm1566, %vm1567
    %v1569 = vsel %vm1568, %v1561, %v1565
    %v1570 = vand.u32 2147483647, %v1544
    %vm1571 = vcmp.eq.f32.partialorder %v1570, 8.507059e+37
    %v1572 = vand.u32 %v1544, 2147483648
    %v1573 = vor.u32 1.1754944e-38, %v1572
    %v1574 = vsel %vm1571, %v1573, %v1569
    %v1575 = vmul.f32 1.0, %v1574
    %v1576 = vrcp.pop %v1545
    %v1577 = vmul.f32 %v1545, %v1576
    %v1578 = vsub.f32 1.0, %v1577
    %v1579 = vmul.f32 %v1576, %v1578
    %v1580 = vadd.f32 %v1576, %v1579
    %vm1581 = vweird.f32 %v1545
    %vm1582 = vweird.f32 %v1576
    %vm1583 = vmor %vm1581, %vm1582
    %v1584 = vsel %vm1583, %v1576, %v1580
    %v1585 = vand.u32 2147483647, %v1545
    %vm1586 = vcmp.eq.f32.partialorder %v1585, 8.507059e+37
    %v1587 = vand.u32 %v1545, 2147483648
    %v1588 = vor.u32 1.1754944e-38, %v1587
    %v1589 = vsel %vm1586, %v1588, %v1584
    %v1590 = vmul.f32 1.0, %v1589
    %v1591 = vtanh.pop %v1533
    %v1592 = vld [vmem:[#allocation4] sm:$0xff]
    %v1593 = vmul.f32 %v1575, %v1592
    %v1594 = vmul.f32 %v1560, %v1591
    %v1595 = vadd.f32 %v1593, %v1594
    %v1596 = vtanh.pop %v1595
    %v1597 = vmul.f32 %v1590, %v1596
    %1598 = vst [vmem:[#allocation4] sm:$0xff] %v1595
    %v1599 = vpack.c.bf16 %v1597, %v1597
    %1600 = vst [vmem:[#allocation3] sm:$0xf] %v1599
    %s1601 = scalar_lea.vmem [#allocation10], 12
    %1602 = vst [vmem:[%s1601] sm:$0xf] %v1599
    %s1603 = smul.u32 4, 4
    %s1604 = smul.addr %s1603, 8
    %s1605 = scalar_lea.vmem [#allocation2], %s1604
    %v1606 = vld [vmem:[%s1605] sm:$0xff]
    %v1607 = vld [vmem:[%s1605 + $0x8] sm:$0xff]
    %v1608 = vld [vmem:[%s1605 + $0x10] sm:$0xff]
    %v1609 = vld [vmem:[%s1605 + $0x18] sm:$0xff]
    %v1610 = vld [vmem:[#allocation3] sm:$0xf]
    %v1611 = vld [vmem:[#allocation8] sm:$0xff]
    %v1612 = vld [vmem:[#allocation8 + $0x8] sm:$0xff]
    %v1613 = vld [vmem:[#allocation8 + $0x10] sm:$0xff]
    %v1614 = vld [vmem:[#allocation8 + $0x18] sm:$0xff]
    %v1615 = vld [vmem:[#allocation8 + $0x20] sm:$0xff]
    %v1616 = vld [vmem:[#allocation8 + $0x28] sm:$0xff]
    %v1617 = vld [vmem:[#allocation8 + $0x30] sm:$0xff]
    %v1618 = vld [vmem:[#allocation8 + $0x38] sm:$0xff]
    %v1619 = vld [vmem:[#allocation8 + $0x40] sm:$0xff]
    %v1620 = vld [vmem:[#allocation8 + $0x48] sm:$0xff]
    %v1621 = vld [vmem:[#allocation8 + $0x50] sm:$0xff]
    %v1622 = vld [vmem:[#allocation8 + $0x58] sm:$0xff]
    %v1623 = vld [vmem:[#allocation8 + $0x60] sm:$0xff]
    %v1624 = vld [vmem:[#allocation8 + $0x68] sm:$0xff]
    %v1625 = vld [vmem:[#allocation8 + $0x70] sm:$0xff]
    %v1626 = vld [vmem:[#allocation8 + $0x78] sm:$0xff]
    %v1627 = vld [vmem:[#allocation8 + $0x80] sm:$0xff]
    %v1628 = vld [vmem:[#allocation8 + $0x88] sm:$0xff]
    %v1629 = vld [vmem:[#allocation8 + $0x90] sm:$0xff]
    %v1630 = vld [vmem:[#allocation8 + $0x98] sm:$0xff]
    %v1631 = vld [vmem:[#allocation8 + $0xa0] sm:$0xff]
    %v1632 = vld [vmem:[#allocation8 + $0xa8] sm:$0xff]
    %v1633 = vld [vmem:[#allocation8 + $0xb0] sm:$0xff]
    %v1634 = vld [vmem:[#allocation8 + $0xb8] sm:$0xff]
    %v1635 = vld [vmem:[#allocation8 + $0xc0] sm:$0xff]
    %v1636 = vld [vmem:[#allocation8 + $0xc8] sm:$0xff]
    %v1637 = vld [vmem:[#allocation8 + $0xd0] sm:$0xff]
    %v1638 = vld [vmem:[#allocation8 + $0xd8] sm:$0xff]
    %v1639 = vld [vmem:[#allocation8 + $0xe0] sm:$0xff]
    %v1640 = vld [vmem:[#allocation8 + $0xe8] sm:$0xff]
    %v1641 = vld [vmem:[#allocation8 + $0xf0] sm:$0xff]
    %v1642 = vld [vmem:[#allocation8 + $0xf8] sm:$0xff]
    %v1675 = vunpack.c.l.b16 %v1611
    %v1676 = vunpack.c.h.b16 %v1611
    %v1677 = vunpack.c.l.b16 %v1612
    %v1678 = vunpack.c.h.b16 %v1612
    %v1679 = vunpack.c.l.b16 %v1613
    %v1680 = vunpack.c.h.b16 %v1613
    %v1681 = vunpack.c.l.b16 %v1614
    %v1682 = vunpack.c.h.b16 %v1614
    %v1683 = vunpack.c.l.b16 %v1615
    %v1684 = vunpack.c.h.b16 %v1615
    %v1685 = vunpack.c.l.b16 %v1616
    %v1686 = vunpack.c.h.b16 %v1616
    %v1687 = vunpack.c.l.b16 %v1617
    %v1688 = vunpack.c.h.b16 %v1617
    %v1689 = vunpack.c.l.b16 %v1618
    %v1690 = vunpack.c.h.b16 %v1618
    %v1691 = vunpack.c.l.b16 %v1619
    %v1692 = vunpack.c.h.b16 %v1619
    %v1693 = vunpack.c.l.b16 %v1620
    %v1694 = vunpack.c.h.b16 %v1620
    %v1695 = vunpack.c.l.b16 %v1621
    %v1696 = vunpack.c.h.b16 %v1621
    %v1697 = vunpack.c.l.b16 %v1622
    %v1698 = vunpack.c.h.b16 %v1622
    %v1699 = vunpack.c.l.b16 %v1623
    %v1700 = vunpack.c.h.b16 %v1623
    %v1701 = vunpack.c.l.b16 %v1624
    %v1702 = vunpack.c.h.b16 %v1624
    %v1703 = vunpack.c.l.b16 %v1625
    %v1704 = vunpack.c.h.b16 %v1625
    %v1705 = vunpack.c.l.b16 %v1626
    %v1706 = vunpack.c.h.b16 %v1626
    %v1707 = vunpack.c.l.b16 %v1627
    %v1708 = vunpack.c.h.b16 %v1627
    %v1709 = vunpack.c.l.b16 %v1628
    %v1710 = vunpack.c.h.b16 %v1628
    %v1711 = vunpack.c.l.b16 %v1629
    %v1712 = vunpack.c.h.b16 %v1629
    %v1713 = vunpack.c.l.b16 %v1630
    %v1714 = vunpack.c.h.b16 %v1630
    %v1715 = vunpack.c.l.b16 %v1631
    %v1716 = vunpack.c.h.b16 %v1631
    %v1717 = vunpack.c.l.b16 %v1632
    %v1718 = vunpack.c.h.b16 %v1632
    %v1719 = vunpack.c.l.b16 %v1633
    %v1720 = vunpack.c.h.b16 %v1633
    %v1721 = vunpack.c.l.b16 %v1634
    %v1722 = vunpack.c.h.b16 %v1634
    %v1723 = vunpack.c.l.b16 %v1635
    %v1724 = vunpack.c.h.b16 %v1635
    %v1725 = vunpack.c.l.b16 %v1636
    %v1726 = vunpack.c.h.b16 %v1636
    %v1727 = vunpack.c.l.b16 %v1637
    %v1728 = vunpack.c.h.b16 %v1637
    %v1729 = vunpack.c.l.b16 %v1638
    %v1730 = vunpack.c.h.b16 %v1638
    %v1731 = vunpack.c.l.b16 %v1639
    %v1732 = vunpack.c.h.b16 %v1639
    %v1733 = vunpack.c.l.b16 %v1640
    %v1734 = vunpack.c.h.b16 %v1640
    %v1735 = vunpack.c.l.b16 %v1641
    %v1736 = vunpack.c.h.b16 %v1641
    %v1737 = vunpack.c.l.b16 %v1642
    %v1738 = vunpack.c.h.b16 %v1642
    %v1739 = vpack.c.b16 %v1679, %v1675
    %v1740 = vpack.c.b16 %v1680, %v1676
    %v1741 = vpack.c.b16 %v1681, %v1677
    %v1742 = vpack.c.b16 %v1682, %v1678
    %v1743 = vpack.c.b16 %v1687, %v1683
    %v1744 = vpack.c.b16 %v1688, %v1684
    %v1745 = vpack.c.b16 %v1689, %v1685
    %v1746 = vpack.c.b16 %v1690, %v1686
    %v1747 = vpack.c.b16 %v1695, %v1691
    %v1748 = vpack.c.b16 %v1696, %v1692
    %v1749 = vpack.c.b16 %v1697, %v1693
    %v1750 = vpack.c.b16 %v1698, %v1694
    %v1751 = vpack.c.b16 %v1703, %v1699
    %v1752 = vpack.c.b16 %v1704, %v1700
    %v1753 = vpack.c.b16 %v1705, %v1701
    %v1754 = vpack.c.b16 %v1706, %v1702
    %v1755 = vpack.c.b16 %v1711, %v1707
    %v1756 = vpack.c.b16 %v1712, %v1708
    %v1757 = vpack.c.b16 %v1713, %v1709
    %v1758 = vpack.c.b16 %v1714, %v1710
    %v1759 = vpack.c.b16 %v1719, %v1715
    %v1760 = vpack.c.b16 %v1720, %v1716
    %v1761 = vpack.c.b16 %v1721, %v1717
    %v1762 = vpack.c.b16 %v1722, %v1718
    %v1763 = vpack.c.b16 %v1727, %v1723
    %v1764 = vpack.c.b16 %v1728, %v1724
    %v1765 = vpack.c.b16 %v1729, %v1725
    %v1766 = vpack.c.b16 %v1730, %v1726
    %v1767 = vpack.c.b16 %v1735, %v1731
    %v1768 = vpack.c.b16 %v1736, %v1732
    %v1769 = vpack.c.b16 %v1737, %v1733
    %v1770 = vpack.c.b16 %v1738, %v1734
    %1803 = vmatpush.bf16.msra.mxu0 %v1767
    %1804 = vmatpush.bf16.msra.mxu0 %v1763
    %1805 = vmatpush.bf16.msra.mxu0 %v1759
    %1806 = vmatpush.bf16.msra.mxu0 %v1755
    %1807 = vmatpush.bf16.msra.mxu0 %v1751
    %1808 = vmatpush.bf16.msra.mxu0 %v1747
    %1809 = vmatpush.bf16.msra.mxu0 %v1743
    %1810 = vmatpush.bf16.msra.mxu0 %v1739
    %1811 = vmatmul.bf16.gmra.mxu0 %v1610
    %v1812 = vpop.f32.mrf.mxu0
    %v1813 = vadd.f32 0.0, %v1812
    %v1814 = vpop.f32.mrf.mxu0
    %1815 = vdwg.mxu0
    %1816 = vmatpush.bf16.msra.mxu0 %v1768
    %1817 = vmatpush.bf16.msra.mxu0 %v1764
    %1818 = vmatpush.bf16.msra.mxu0 %v1760
    %1819 = vmatpush.bf16.msra.mxu0 %v1756
    %1820 = vmatpush.bf16.msra.mxu0 %v1752
    %1821 = vmatpush.bf16.msra.mxu0 %v1748
    %1822 = vmatpush.bf16.msra.mxu0 %v1744
    %1823 = vmatpush.bf16.msra.mxu0 %v1740
    %1824 = vmatmul.bf16.gmra.mxu0 %v1610
    %v1825 = vpop.f32.mrf.mxu0
    %v1826 = vadd.f32 0.0, %v1825
    %v1827 = vpop.f32.mrf.mxu0
    %1828 = vdwg.mxu0
    %1829 = vmatpush.bf16.msra.mxu0 %v1769
    %1830 = vmatpush.bf16.msra.mxu0 %v1765
    %1831 = vmatpush.bf16.msra.mxu0 %v1761
    %1832 = vmatpush.bf16.msra.mxu0 %v1757
    %1833 = vmatpush.bf16.msra.mxu0 %v1753
    %1834 = vmatpush.bf16.msra.mxu0 %v1749
    %1835 = vmatpush.bf16.msra.mxu0 %v1745
    %1836 = vmatpush.bf16.msra.mxu0 %v1741
    %1837 = vmatmul.bf16.gmra.mxu0 %v1610
    %v1838 = vpop.f32.mrf.mxu0
    %v1839 = vadd.f32 0.0, %v1838
    %v1840 = vpop.f32.mrf.mxu0
    %1841 = vdwg.mxu0
    %1842 = vmatpush.bf16.msra.mxu0 %v1770
    %1843 = vmatpush.bf16.msra.mxu0 %v1766
    %1844 = vmatpush.bf16.msra.mxu0 %v1762
    %1845 = vmatpush.bf16.msra.mxu0 %v1758
    %1846 = vmatpush.bf16.msra.mxu0 %v1754
    %1847 = vmatpush.bf16.msra.mxu0 %v1750
    %1848 = vmatpush.bf16.msra.mxu0 %v1746
    %1849 = vmatpush.bf16.msra.mxu0 %v1742
    %1850 = vmatmul.bf16.gmra.mxu0 %v1610
    %v1851 = vpop.f32.mrf.mxu0
    %v1852 = vadd.f32 0.0, %v1851
    %v1853 = vpop.f32.mrf.mxu0
    %1854 = vdwg.mxu0
    %v1855 = vadd.f32 %v1606, %v1813
    %v1856 = vadd.f32 %v1607, %v1826
    %v1857 = vadd.f32 %v1608, %v1839
    %v1858 = vadd.f32 %v1609, %v1852
    %v1859 = vxor.u32 %v1855, 2147483648
    %v1860 = vxor.u32 %v1856, 2147483648
    %v1861 = vxor.u32 %v1857, 2147483648
    %v1862 = vmul.f32 %v1859, 1.442695
    %v1863 = vpow.pop %v1862
    %v1864 = vmul.f32 %v1860, 1.442695
    %v1865 = vpow.pop %v1864
    %v1866 = vmul.f32 %v1861, 1.442695
    %v1867 = vpow.pop %v1866
    %v1868 = vadd.f32 %v1863, 1.0
    %v1869 = vadd.f32 %v1865, 1.0
    %v1870 = vadd.f32 %v1867, 1.0
    %v1871 = vrcp.pop %v1868
    %v1872 = vmul.f32 %v1868, %v1871
    %v1873 = vsub.f32 1.0, %v1872
    %v1874 = vmul.f32 %v1871, %v1873
    %v1875 = vadd.f32 %v1871, %v1874
    %vm1876 = vweird.f32 %v1868
    %vm1877 = vweird.f32 %v1871
    %vm1878 = vmor %vm1876, %vm1877
    %v1879 = vsel %vm1878, %v1871, %v1875
    %v1880 = vand.u32 2147483647, %v1868
    %vm1881 = vcmp.eq.f32.partialorder %v1880, 8.507059e+37
    %v1882 = vand.u32 %v1868, 2147483648
    %v1883 = vor.u32 1.1754944e-38, %v1882
    %v1884 = vsel %vm1881, %v1883, %v1879
    %v1885 = vmul.f32 1.0, %v1884
    %v1886 = vrcp.pop %v1869
    %v1887 = vmul.f32 %v1869, %v1886
    %v1888 = vsub.f32 1.0, %v1887
    %v1889 = vmul.f32 %v1886, %v1888
    %v1890 = vadd.f32 %v1886, %v1889
    %vm1891 = vweird.f32 %v1869
    %vm1892 = vweird.f32 %v1886
    %vm1893 = vmor %vm1891, %vm1892
    %v1894 = vsel %vm1893, %v1886, %v1890
    %v1895 = vand.u32 2147483647, %v1869
    %vm1896 = vcmp.eq.f32.partialorder %v1895, 8.507059e+37
    %v1897 = vand.u32 %v1869, 2147483648
    %v1898 = vor.u32 1.1754944e-38, %v1897
    %v1899 = vsel %vm1896, %v1898, %v1894
    %v1900 = vmul.f32 1.0, %v1899
    %v1901 = vrcp.pop %v1870
    %v1902 = vmul.f32 %v1870, %v1901
    %v1903 = vsub.f32 1.0, %v1902
    %v1904 = vmul.f32 %v1901, %v1903
    %v1905 = vadd.f32 %v1901, %v1904
    %vm1906 = vweird.f32 %v1870
    %vm1907 = vweird.f32 %v1901
    %vm1908 = vmor %vm1906, %vm1907
    %v1909 = vsel %vm1908, %v1901, %v1905
    %v1910 = vand.u32 2147483647, %v1870
    %vm1911 = vcmp.eq.f32.partialorder %v1910, 8.507059e+37
    %v1912 = vand.u32 %v1870, 2147483648
    %v1913 = vor.u32 1.1754944e-38, %v1912
    %v1914 = vsel %vm1911, %v1913, %v1909
    %v1915 = vmul.f32 1.0, %v1914
    %v1916 = vtanh.pop %v1858
    %v1917 = vld [vmem:[#allocation4] sm:$0xff]
    %v1918 = vmul.f32 %v1900, %v1917
    %v1919 = vmul.f32 %v1885, %v1916
    %v1920 = vadd.f32 %v1918, %v1919
    %v1921 = vtanh.pop %v1920
    %v1922 = vmul.f32 %v1915, %v1921
    %1923 = vst [vmem:[#allocation4] sm:$0xff] %v1920
    %v1924 = vpack.c.bf16 %v1922, %v1922
    %1925 = vst [vmem:[#allocation3] sm:$0xf] %v1924
    %s1926 = scalar_lea.vmem [#allocation10], 16
    %1927 = vst [vmem:[%s1926] sm:$0xf] %v1924
    %s1928 = smul.u32 5, 4
    %s1929 = smul.addr %s1928, 8
    %s1930 = scalar_lea.vmem [#allocation2], %s1929
    %v1931 = vld [vmem:[%s1930] sm:$0xff]
    %v1932 = vld [vmem:[%s1930 + $0x8] sm:$0xff]
    %v1933 = vld [vmem:[%s1930 + $0x10] sm:$0xff]
    %v1934 = vld [vmem:[%s1930 + $0x18] sm:$0xff]
    %v1935 = vld [vmem:[#allocation3] sm:$0xf]
    %v1936 = vld [vmem:[#allocation8] sm:$0xff]
    %v1937 = vld [vmem:[#allocation8 + $0x8] sm:$0xff]
    %v1938 = vld [vmem:[#allocation8 + $0x10] sm:$0xff]
    %v1939 = vld [vmem:[#allocation8 + $0x18] sm:$0xff]
    %v1940 = vld [vmem:[#allocation8 + $0x20] sm:$0xff]
    %v1941 = vld [vmem:[#allocation8 + $0x28] sm:$0xff]
    %v1942 = vld [vmem:[#allocation8 + $0x30] sm:$0xff]
    %v1943 = vld [vmem:[#allocation8 + $0x38] sm:$0xff]
    %v1944 = vld [vmem:[#allocation8 + $0x40] sm:$0xff]
    %v1945 = vld [vmem:[#allocation8 + $0x48] sm:$0xff]
    %v1946 = vld [vmem:[#allocation8 + $0x50] sm:$0xff]
    %v1947 = vld [vmem:[#allocation8 + $0x58] sm:$0xff]
    %v1948 = vld [vmem:[#allocation8 + $0x60] sm:$0xff]
    %v1949 = vld [vmem:[#allocation8 + $0x68] sm:$0xff]
    %v1950 = vld [vmem:[#allocation8 + $0x70] sm:$0xff]
    %v1951 = vld [vmem:[#allocation8 + $0x78] sm:$0xff]
    %v1952 = vld [vmem:[#allocation8 + $0x80] sm:$0xff]
    %v1953 = vld [vmem:[#allocation8 + $0x88] sm:$0xff]
    %v1954 = vld [vmem:[#allocation8 + $0x90] sm:$0xff]
    %v1955 = vld [vmem:[#allocation8 + $0x98] sm:$0xff]
    %v1956 = vld [vmem:[#allocation8 + $0xa0] sm:$0xff]
    %v1957 = vld [vmem:[#allocation8 + $0xa8] sm:$0xff]
    %v1958 = vld [vmem:[#allocation8 + $0xb0] sm:$0xff]
    %v1959 = vld [vmem:[#allocation8 + $0xb8] sm:$0xff]
    %v1960 = vld [vmem:[#allocation8 + $0xc0] sm:$0xff]
    %v1961 = vld [vmem:[#allocation8 + $0xc8] sm:$0xff]
    %v1962 = vld [vmem:[#allocation8 + $0xd0] sm:$0xff]
    %v1963 = vld [vmem:[#allocation8 + $0xd8] sm:$0xff]
    %v1964 = vld [vmem:[#allocation8 + $0xe0] sm:$0xff]
    %v1965 = vld [vmem:[#allocation8 + $0xe8] sm:$0xff]
    %v1966 = vld [vmem:[#allocation8 + $0xf0] sm:$0xff]
    %v1967 = vld [vmem:[#allocation8 + $0xf8] sm:$0xff]
    %v2000 = vunpack.c.l.b16 %v1936
    %v2001 = vunpack.c.h.b16 %v1936
    %v2002 = vunpack.c.l.b16 %v1937
    %v2003 = vunpack.c.h.b16 %v1937
    %v2004 = vunpack.c.l.b16 %v1938
    %v2005 = vunpack.c.h.b16 %v1938
    %v2006 = vunpack.c.l.b16 %v1939
    %v2007 = vunpack.c.h.b16 %v1939
    %v2008 = vunpack.c.l.b16 %v1940
    %v2009 = vunpack.c.h.b16 %v1940
    %v2010 = vunpack.c.l.b16 %v1941
    %v2011 = vunpack.c.h.b16 %v1941
    %v2012 = vunpack.c.l.b16 %v1942
    %v2013 = vunpack.c.h.b16 %v1942
    %v2014 = vunpack.c.l.b16 %v1943
    %v2015 = vunpack.c.h.b16 %v1943
    %v2016 = vunpack.c.l.b16 %v1944
    %v2017 = vunpack.c.h.b16 %v1944
    %v2018 = vunpack.c.l.b16 %v1945
    %v2019 = vunpack.c.h.b16 %v1945
    %v2020 = vunpack.c.l.b16 %v1946
    %v2021 = vunpack.c.h.b16 %v1946
    %v2022 = vunpack.c.l.b16 %v1947
    %v2023 = vunpack.c.h.b16 %v1947
    %v2024 = vunpack.c.l.b16 %v1948
    %v2025 = vunpack.c.h.b16 %v1948
    %v2026 = vunpack.c.l.b16 %v1949
    %v2027 = vunpack.c.h.b16 %v1949
    %v2028 = vunpack.c.l.b16 %v1950
    %v2029 = vunpack.c.h.b16 %v1950
    %v2030 = vunpack.c.l.b16 %v1951
    %v2031 = vunpack.c.h.b16 %v1951
    %v2032 = vunpack.c.l.b16 %v1952
    %v2033 = vunpack.c.h.b16 %v1952
    %v2034 = vunpack.c.l.b16 %v1953
    %v2035 = vunpack.c.h.b16 %v1953
    %v2036 = vunpack.c.l.b16 %v1954
    %v2037 = vunpack.c.h.b16 %v1954
    %v2038 = vunpack.c.l.b16 %v1955
    %v2039 = vunpack.c.h.b16 %v1955
    %v2040 = vunpack.c.l.b16 %v1956
    %v2041 = vunpack.c.h.b16 %v1956
    %v2042 = vunpack.c.l.b16 %v1957
    %v2043 = vunpack.c.h.b16 %v1957
    %v2044 = vunpack.c.l.b16 %v1958
    %v2045 = vunpack.c.h.b16 %v1958
    %v2046 = vunpack.c.l.b16 %v1959
    %v2047 = vunpack.c.h.b16 %v1959
    %v2048 = vunpack.c.l.b16 %v1960
    %v2049 = vunpack.c.h.b16 %v1960
    %v2050 = vunpack.c.l.b16 %v1961
    %v2051 = vunpack.c.h.b16 %v1961
    %v2052 = vunpack.c.l.b16 %v1962
    %v2053 = vunpack.c.h.b16 %v1962
    %v2054 = vunpack.c.l.b16 %v1963
    %v2055 = vunpack.c.h.b16 %v1963
    %v2056 = vunpack.c.l.b16 %v1964
    %v2057 = vunpack.c.h.b16 %v1964
    %v2058 = vunpack.c.l.b16 %v1965
    %v2059 = vunpack.c.h.b16 %v1965
    %v2060 = vunpack.c.l.b16 %v1966
    %v2061 = vunpack.c.h.b16 %v1966
    %v2062 = vunpack.c.l.b16 %v1967
    %v2063 = vunpack.c.h.b16 %v1967
    %v2064 = vpack.c.b16 %v2004, %v2000
    %v2065 = vpack.c.b16 %v2005, %v2001
    %v2066 = vpack.c.b16 %v2006, %v2002
    %v2067 = vpack.c.b16 %v2007, %v2003
    %v2068 = vpack.c.b16 %v2012, %v2008
    %v2069 = vpack.c.b16 %v2013, %v2009
    %v2070 = vpack.c.b16 %v2014, %v2010
    %v2071 = vpack.c.b16 %v2015, %v2011
    %v2072 = vpack.c.b16 %v2020, %v2016
    %v2073 = vpack.c.b16 %v2021, %v2017
    %v2074 = vpack.c.b16 %v2022, %v2018
    %v2075 = vpack.c.b16 %v2023, %v2019
    %v2076 = vpack.c.b16 %v2028, %v2024
    %v2077 = vpack.c.b16 %v2029, %v2025
    %v2078 = vpack.c.b16 %v2030, %v2026
    %v2079 = vpack.c.b16 %v2031, %v2027
    %v2080 = vpack.c.b16 %v2036, %v2032
    %v2081 = vpack.c.b16 %v2037, %v2033
    %v2082 = vpack.c.b16 %v2038, %v2034
    %v2083 = vpack.c.b16 %v2039, %v2035
    %v2084 = vpack.c.b16 %v2044, %v2040
    %v2085 = vpack.c.b16 %v2045, %v2041
    %v2086 = vpack.c.b16 %v2046, %v2042
    %v2087 = vpack.c.b16 %v2047, %v2043
    %v2088 = vpack.c.b16 %v2052, %v2048
    %v2089 = vpack.c.b16 %v2053, %v2049
    %v2090 = vpack.c.b16 %v2054, %v2050
    %v2091 = vpack.c.b16 %v2055, %v2051
    %v2092 = vpack.c.b16 %v2060, %v2056
    %v2093 = vpack.c.b16 %v2061, %v2057
    %v2094 = vpack.c.b16 %v2062, %v2058
    %v2095 = vpack.c.b16 %v2063, %v2059
    %2128 = vmatpush.bf16.msra.mxu0 %v2092
    %2129 = vmatpush.bf16.msra.mxu0 %v2088
    %2130 = vmatpush.bf16.msra.mxu0 %v2084
    %2131 = vmatpush.bf16.msra.mxu0 %v2080
    %2132 = vmatpush.bf16.msra.mxu0 %v2076
    %2133 = vmatpush.bf16.msra.mxu0 %v2072
    %2134 = vmatpush.bf16.msra.mxu0 %v2068
    %2135 = vmatpush.bf16.msra.mxu0 %v2064
    %2136 = vmatmul.bf16.gmra.mxu0 %v1935
    %v2137 = vpop.f32.mrf.mxu0
    %v2138 = vadd.f32 0.0, %v2137
    %v2139 = vpop.f32.mrf.mxu0
    %2140 = vdwg.mxu0
    %2141 = vmatpush.bf16.msra.mxu0 %v2093
    %2142 = vmatpush.bf16.msra.mxu0 %v2089
    %2143 = vmatpush.bf16.msra.mxu0 %v2085
    %2144 = vmatpush.bf16.msra.mxu0 %v2081
    %2145 = vmatpush.bf16.msra.mxu0 %v2077
    %2146 = vmatpush.bf16.msra.mxu0 %v2073
    %2147 = vmatpush.bf16.msra.mxu0 %v2069
    %2148 = vmatpush.bf16.msra.mxu0 %v2065
    %2149 = vmatmul.bf16.gmra.mxu0 %v1935
    %v2150 = vpop.f32.mrf.mxu0
    %v2151 = vadd.f32 0.0, %v2150
    %v2152 = vpop.f32.mrf.mxu0
    %2153 = vdwg.mxu0
    %2154 = vmatpush.bf16.msra.mxu0 %v2094
    %2155 = vmatpush.bf16.msra.mxu0 %v2090
    %2156 = vmatpush.bf16.msra.mxu0 %v2086
    %2157 = vmatpush.bf16.msra.mxu0 %v2082
    %2158 = vmatpush.bf16.msra.mxu0 %v2078
    %2159 = vmatpush.bf16.msra.mxu0 %v2074
    %2160 = vmatpush.bf16.msra.mxu0 %v2070
    %2161 = vmatpush.bf16.msra.mxu0 %v2066
    %2162 = vmatmul.bf16.gmra.mxu0 %v1935
    %v2163 = vpop.f32.mrf.mxu0
    %v2164 = vadd.f32 0.0, %v2163
    %v2165 = vpop.f32.mrf.mxu0
    %2166 = vdwg.mxu0
    %2167 = vmatpush.bf16.msra.mxu0 %v2095
    %2168 = vmatpush.bf16.msra.mxu0 %v2091
    %2169 = vmatpush.bf16.msra.mxu0 %v2087
    %2170 = vmatpush.bf16.msra.mxu0 %v2083
    %2171 = vmatpush.bf16.msra.mxu0 %v2079
    %2172 = vmatpush.bf16.msra.mxu0 %v2075
    %2173 = vmatpush.bf16.msra.mxu0 %v2071
    %2174 = vmatpush.bf16.msra.mxu0 %v2067
    %2175 = vmatmul.bf16.gmra.mxu0 %v1935
    %v2176 = vpop.f32.mrf.mxu0
    %v2177 = vadd.f32 0.0, %v2176
    %v2178 = vpop.f32.mrf.mxu0
    %2179 = vdwg.mxu0
    %v2180 = vadd.f32 %v1931, %v2138
    %v2181 = vadd.f32 %v1932, %v2151
    %v2182 = vadd.f32 %v1933, %v2164
    %v2183 = vadd.f32 %v1934, %v2177
    %v2184 = vxor.u32 %v2180, 2147483648
    %v2185 = vxor.u32 %v2181, 2147483648
    %v2186 = vxor.u32 %v2182, 2147483648
    %v2187 = vmul.f32 %v2184, 1.442695
    %v2188 = vpow.pop %v2187
    %v2189 = vmul.f32 %v2185, 1.442695
    %v2190 = vpow.pop %v2189
    %v2191 = vmul.f32 %v2186, 1.442695
    %v2192 = vpow.pop %v2191
    %v2193 = vadd.f32 %v2188, 1.0
    %v2194 = vadd.f32 %v2190, 1.0
    %v2195 = vadd.f32 %v2192, 1.0
    %v2196 = vrcp.pop %v2193
    %v2197 = vmul.f32 %v2193, %v2196
    %v2198 = vsub.f32 1.0, %v2197
    %v2199 = vmul.f32 %v2196, %v2198
    %v2200 = vadd.f32 %v2196, %v2199
    %vm2201 = vweird.f32 %v2193
    %vm2202 = vweird.f32 %v2196
    %vm2203 = vmor %vm2201, %vm2202
    %v2204 = vsel %vm2203, %v2196, %v2200
    %v2205 = vand.u32 2147483647, %v2193
    %vm2206 = vcmp.eq.f32.partialorder %v2205, 8.507059e+37
    %v2207 = vand.u32 %v2193, 2147483648
    %v2208 = vor.u32 1.1754944e-38, %v2207
    %v2209 = vsel %vm2206, %v2208, %v2204
    %v2210 = vmul.f32 1.0, %v2209
    %v2211 = vrcp.pop %v2194
    %v2212 = vmul.f32 %v2194, %v2211
    %v2213 = vsub.f32 1.0, %v2212
    %v2214 = vmul.f32 %v2211, %v2213
    %v2215 = vadd.f32 %v2211, %v2214
    %vm2216 = vweird.f32 %v2194
    %vm2217 = vweird.f32 %v2211
    %vm2218 = vmor %vm2216, %vm2217
    %v2219 = vsel %vm2218, %v2211, %v2215
    %v2220 = vand.u32 2147483647, %v2194
    %vm2221 = vcmp.eq.f32.partialorder %v2220, 8.507059e+37
    %v2222 = vand.u32 %v2194, 2147483648
    %v2223 = vor.u32 1.1754944e-38, %v2222
    %v2224 = vsel %vm2221, %v2223, %v2219
    %v2225 = vmul.f32 1.0, %v2224
    %v2226 = vrcp.pop %v2195
    %v2227 = vmul.f32 %v2195, %v2226
    %v2228 = vsub.f32 1.0, %v2227
    %v2229 = vmul.f32 %v2226, %v2228
    %v2230 = vadd.f32 %v2226, %v2229
    %vm2231 = vweird.f32 %v2195
    %vm2232 = vweird.f32 %v2226
    %vm2233 = vmor %vm2231, %vm2232
    %v2234 = vsel %vm2233, %v2226, %v2230
    %v2235 = vand.u32 2147483647, %v2195
    %vm2236 = vcmp.eq.f32.partialorder %v2235, 8.507059e+37
    %v2237 = vand.u32 %v2195, 2147483648
    %v2238 = vor.u32 1.1754944e-38, %v2237
    %v2239 = vsel %vm2236, %v2238, %v2234
    %v2240 = vmul.f32 1.0, %v2239
    %v2241 = vtanh.pop %v2183
    %v2242 = vld [vmem:[#allocation4] sm:$0xff]
    %v2243 = vmul.f32 %v2225, %v2242
    %v2244 = vmul.f32 %v2210, %v2241
    %v2245 = vadd.f32 %v2243, %v2244
    %v2246 = vtanh.pop %v2245
    %v2247 = vmul.f32 %v2240, %v2246
    %2248 = vst [vmem:[#allocation4] sm:$0xff] %v2245
    %v2249 = vpack.c.bf16 %v2247, %v2247
    %2250 = vst [vmem:[#allocation3] sm:$0xf] %v2249
    %s2251 = scalar_lea.vmem [#allocation10], 20
    %2252 = vst [vmem:[%s2251] sm:$0xf] %v2249
    %s2253 = smul.u32 6, 4
    %s2254 = smul.addr %s2253, 8
    %s2255 = scalar_lea.vmem [#allocation2], %s2254
    %v2256 = vld [vmem:[%s2255] sm:$0xff]
    %v2257 = vld [vmem:[%s2255 + $0x8] sm:$0xff]
    %v2258 = vld [vmem:[%s2255 + $0x10] sm:$0xff]
    %v2259 = vld [vmem:[%s2255 + $0x18] sm:$0xff]
    %v2260 = vld [vmem:[#allocation3] sm:$0xf]
    %v2261 = vld [vmem:[#allocation8] sm:$0xff]
    %v2262 = vld [vmem:[#allocation8 + $0x8] sm:$0xff]
    %v2263 = vld [vmem:[#allocation8 + $0x10] sm:$0xff]
    %v2264 = vld [vmem:[#allocation8 + $0x18] sm:$0xff]
    %v2265 = vld [vmem:[#allocation8 + $0x20] sm:$0xff]
    %v2266 = vld [vmem:[#allocation8 + $0x28] sm:$0xff]
    %v2267 = vld [vmem:[#allocation8 + $0x30] sm:$0xff]
    %v2268 = vld [vmem:[#allocation8 + $0x38] sm:$0xff]
    %v2269 = vld [vmem:[#allocation8 + $0x40] sm:$0xff]
    %v2270 = vld [vmem:[#allocation8 + $0x48] sm:$0xff]
    %v2271 = vld [vmem:[#allocation8 + $0x50] sm:$0xff]
    %v2272 = vld [vmem:[#allocation8 + $0x58] sm:$0xff]
    %v2273 = vld [vmem:[#allocation8 + $0x60] sm:$0xff]
    %v2274 = vld [vmem:[#allocation8 + $0x68] sm:$0xff]
    %v2275 = vld [vmem:[#allocation8 + $0x70] sm:$0xff]
    %v2276 = vld [vmem:[#allocation8 + $0x78] sm:$0xff]
    %v2277 = vld [vmem:[#allocation8 + $0x80] sm:$0xff]
    %v2278 = vld [vmem:[#allocation8 + $0x88] sm:$0xff]
    %v2279 = vld [vmem:[#allocation8 + $0x90] sm:$0xff]
    %v2280 = vld [vmem:[#allocation8 + $0x98] sm:$0xff]
    %v2281 = vld [vmem:[#allocation8 + $0xa0] sm:$0xff]
    %v2282 = vld [vmem:[#allocation8 + $0xa8] sm:$0xff]
    %v2283 = vld [vmem:[#allocation8 + $0xb0] sm:$0xff]
    %v2284 = vld [vmem:[#allocation8 + $0xb8] sm:$0xff]
    %v2285 = vld [vmem:[#allocation8 + $0xc0] sm:$0xff]
    %v2286 = vld [vmem:[#allocation8 + $0xc8] sm:$0xff]
    %v2287 = vld [vmem:[#allocation8 + $0xd0] sm:$0xff]
    %v2288 = vld [vmem:[#allocation8 + $0xd8] sm:$0xff]
    %v2289 = vld [vmem:[#allocation8 + $0xe0] sm:$0xff]
    %v2290 = vld [vmem:[#allocation8 + $0xe8] sm:$0xff]
    %v2291 = vld [vmem:[#allocation8 + $0xf0] sm:$0xff]
    %v2292 = vld [vmem:[#allocation8 + $0xf8] sm:$0xff]
    %v2325 = vunpack.c.l.b16 %v2261
    %v2326 = vunpack.c.h.b16 %v2261
    %v2327 = vunpack.c.l.b16 %v2262
    %v2328 = vunpack.c.h.b16 %v2262
    %v2329 = vunpack.c.l.b16 %v2263
    %v2330 = vunpack.c.h.b16 %v2263
    %v2331 = vunpack.c.l.b16 %v2264
    %v2332 = vunpack.c.h.b16 %v2264
    %v2333 = vunpack.c.l.b16 %v2265
    %v2334 = vunpack.c.h.b16 %v2265
    %v2335 = vunpack.c.l.b16 %v2266
    %v2336 = vunpack.c.h.b16 %v2266
    %v2337 = vunpack.c.l.b16 %v2267
    %v2338 = vunpack.c.h.b16 %v2267
    %v2339 = vunpack.c.l.b16 %v2268
    %v2340 = vunpack.c.h.b16 %v2268
    %v2341 = vunpack.c.l.b16 %v2269
    %v2342 = vunpack.c.h.b16 %v2269
    %v2343 = vunpack.c.l.b16 %v2270
    %v2344 = vunpack.c.h.b16 %v2270
    %v2345 = vunpack.c.l.b16 %v2271
    %v2346 = vunpack.c.h.b16 %v2271
    %v2347 = vunpack.c.l.b16 %v2272
    %v2348 = vunpack.c.h.b16 %v2272
    %v2349 = vunpack.c.l.b16 %v2273
    %v2350 = vunpack.c.h.b16 %v2273
    %v2351 = vunpack.c.l.b16 %v2274
    %v2352 = vunpack.c.h.b16 %v2274
    %v2353 = vunpack.c.l.b16 %v2275
    %v2354 = vunpack.c.h.b16 %v2275
    %v2355 = vunpack.c.l.b16 %v2276
    %v2356 = vunpack.c.h.b16 %v2276
    %v2357 = vunpack.c.l.b16 %v2277
    %v2358 = vunpack.c.h.b16 %v2277
    %v2359 = vunpack.c.l.b16 %v2278
    %v2360 = vunpack.c.h.b16 %v2278
    %v2361 = vunpack.c.l.b16 %v2279
    %v2362 = vunpack.c.h.b16 %v2279
    %v2363 = vunpack.c.l.b16 %v2280
    %v2364 = vunpack.c.h.b16 %v2280
    %v2365 = vunpack.c.l.b16 %v2281
    %v2366 = vunpack.c.h.b16 %v2281
    %v2367 = vunpack.c.l.b16 %v2282
    %v2368 = vunpack.c.h.b16 %v2282
    %v2369 = vunpack.c.l.b16 %v2283
    %v2370 = vunpack.c.h.b16 %v2283
    %v2371 = vunpack.c.l.b16 %v2284
    %v2372 = vunpack.c.h.b16 %v2284
    %v2373 = vunpack.c.l.b16 %v2285
    %v2374 = vunpack.c.h.b16 %v2285
    %v2375 = vunpack.c.l.b16 %v2286
    %v2376 = vunpack.c.h.b16 %v2286
    %v2377 = vunpack.c.l.b16 %v2287
    %v2378 = vunpack.c.h.b16 %v2287
    %v2379 = vunpack.c.l.b16 %v2288
    %v2380 = vunpack.c.h.b16 %v2288
    %v2381 = vunpack.c.l.b16 %v2289
    %v2382 = vunpack.c.h.b16 %v2289
    %v2383 = vunpack.c.l.b16 %v2290
    %v2384 = vunpack.c.h.b16 %v2290
    %v2385 = vunpack.c.l.b16 %v2291
    %v2386 = vunpack.c.h.b16 %v2291
    %v2387 = vunpack.c.l.b16 %v2292
    %v2388 = vunpack.c.h.b16 %v2292
    %v2389 = vpack.c.b16 %v2329, %v2325
    %v2390 = vpack.c.b16 %v2330, %v2326
    %v2391 = vpack.c.b16 %v2331, %v2327
    %v2392 = vpack.c.b16 %v2332, %v2328
    %v2393 = vpack.c.b16 %v2337, %v2333
    %v2394 = vpack.c.b16 %v2338, %v2334
    %v2395 = vpack.c.b16 %v2339, %v2335
    %v2396 = vpack.c.b16 %v2340, %v2336
    %v2397 = vpack.c.b16 %v2345, %v2341
    %v2398 = vpack.c.b16 %v2346, %v2342
    %v2399 = vpack.c.b16 %v2347, %v2343
    %v2400 = vpack.c.b16 %v2348, %v2344
    %v2401 = vpack.c.b16 %v2353, %v2349
    %v2402 = vpack.c.b16 %v2354, %v2350
    %v2403 = vpack.c.b16 %v2355, %v2351
    %v2404 = vpack.c.b16 %v2356, %v2352
    %v2405 = vpack.c.b16 %v2361, %v2357
    %v2406 = vpack.c.b16 %v2362, %v2358
    %v2407 = vpack.c.b16 %v2363, %v2359
    %v2408 = vpack.c.b16 %v2364, %v2360
    %v2409 = vpack.c.b16 %v2369, %v2365
    %v2410 = vpack.c.b16 %v2370, %v2366
    %v2411 = vpack.c.b16 %v2371, %v2367
    %v2412 = vpack.c.b16 %v2372, %v2368
    %v2413 = vpack.c.b16 %v2377, %v2373
    %v2414 = vpack.c.b16 %v2378, %v2374
    %v2415 = vpack.c.b16 %v2379, %v2375
    %v2416 = vpack.c.b16 %v2380, %v2376
    %v2417 = vpack.c.b16 %v2385, %v2381
    %v2418 = vpack.c.b16 %v2386, %v2382
    %v2419 = vpack.c.b16 %v2387, %v2383
    %v2420 = vpack.c.b16 %v2388, %v2384
    %2453 = vmatpush.bf16.msra.mxu0 %v2417
    %2454 = vmatpush.bf16.msra.mxu0 %v2413
    %2455 = vmatpush.bf16.msra.mxu0 %v2409
    %2456 = vmatpush.bf16.msra.mxu0 %v2405
    %2457 = vmatpush.bf16.msra.mxu0 %v2401
    %2458 = vmatpush.bf16.msra.mxu0 %v2397
    %2459 = vmatpush.bf16.msra.mxu0 %v2393
    %2460 = vmatpush.bf16.msra.mxu0 %v2389
    %2461 = vmatmul.bf16.gmra.mxu0 %v2260
    %v2462 = vpop.f32.mrf.mxu0
    %v2463 = vadd.f32 0.0, %v2462
    %v2464 = vpop.f32.mrf.mxu0
    %2465 = vdwg.mxu0
    %2466 = vmatpush.bf16.msra.mxu0 %v2418
    %2467 = vmatpush.bf16.msra.mxu0 %v2414
    %2468 = vmatpush.bf16.msra.mxu0 %v2410
    %2469 = vmatpush.bf16.msra.mxu0 %v2406
    %2470 = vmatpush.bf16.msra.mxu0 %v2402
    %2471 = vmatpush.bf16.msra.mxu0 %v2398
    %2472 = vmatpush.bf16.msra.mxu0 %v2394
    %2473 = vmatpush.bf16.msra.mxu0 %v2390
    %2474 = vmatmul.bf16.gmra.mxu0 %v2260
    %v2475 = vpop.f32.mrf.mxu0
    %v2476 = vadd.f32 0.0, %v2475
    %v2477 = vpop.f32.mrf.mxu0
    %2478 = vdwg.mxu0
    %2479 = vmatpush.bf16.msra.mxu0 %v2419
    %2480 = vmatpush.bf16.msra.mxu0 %v2415
    %2481 = vmatpush.bf16.msra.mxu0 %v2411
    %2482 = vmatpush.bf16.msra.mxu0 %v2407
    %2483 = vmatpush.bf16.msra.mxu0 %v2403
    %2484 = vmatpush.bf16.msra.mxu0 %v2399
    %2485 = vmatpush.bf16.msra.mxu0 %v2395
    %2486 = vmatpush.bf16.msra.mxu0 %v2391
    %2487 = vmatmul.bf16.gmra.mxu0 %v2260
    %v2488 = vpop.f32.mrf.mxu0
    %v2489 = vadd.f32 0.0, %v2488
    %v2490 = vpop.f32.mrf.mxu0
    %2491 = vdwg.mxu0
    %2492 = vmatpush.bf16.msra.mxu0 %v2420
    %2493 = vmatpush.bf16.msra.mxu0 %v2416
    %2494 = vmatpush.bf16.msra.mxu0 %v2412
    %2495 = vmatpush.bf16.msra.mxu0 %v2408
    %2496 = vmatpush.bf16.msra.mxu0 %v2404
    %2497 = vmatpush.bf16.msra.mxu0 %v2400
    %2498 = vmatpush.bf16.msra.mxu0 %v2396
    %2499 = vmatpush.bf16.msra.mxu0 %v2392
    %2500 = vmatmul.bf16.gmra.mxu0 %v2260
    %v2501 = vpop.f32.mrf.mxu0
    %v2502 = vadd.f32 0.0, %v2501
    %v2503 = vpop.f32.mrf.mxu0
    %2504 = vdwg.mxu0
    %v2505 = vadd.f32 %v2256, %v2463
    %v2506 = vadd.f32 %v2257, %v2476
    %v2507 = vadd.f32 %v2258, %v2489
    %v2508 = vadd.f32 %v2259, %v2502
    %v2509 = vxor.u32 %v2505, 2147483648
    %v2510 = vxor.u32 %v2506, 2147483648
    %v2511 = vxor.u32 %v2507, 2147483648
    %v2512 = vmul.f32 %v2509, 1.442695
    %v2513 = vpow.pop %v2512
    %v2514 = vmul.f32 %v2510, 1.442695
    %v2515 = vpow.pop %v2514
    %v2516 = vmul.f32 %v2511, 1.442695
    %v2517 = vpow.pop %v2516
    %v2518 = vadd.f32 %v2513, 1.0
    %v2519 = vadd.f32 %v2515, 1.0
    %v2520 = vadd.f32 %v2517, 1.0
    %v2521 = vrcp.pop %v2518
    %v2522 = vmul.f32 %v2518, %v2521
    %v2523 = vsub.f32 1.0, %v2522
    %v2524 = vmul.f32 %v2521, %v2523
    %v2525 = vadd.f32 %v2521, %v2524
    %vm2526 = vweird.f32 %v2518
    %vm2527 = vweird.f32 %v2521
    %vm2528 = vmor %vm2526, %vm2527
    %v2529 = vsel %vm2528, %v2521, %v2525
    %v2530 = vand.u32 2147483647, %v2518
    %vm2531 = vcmp.eq.f32.partialorder %v2530, 8.507059e+37
    %v2532 = vand.u32 %v2518, 2147483648
    %v2533 = vor.u32 1.1754944e-38, %v2532
    %v2534 = vsel %vm2531, %v2533, %v2529
    %v2535 = vmul.f32 1.0, %v2534
    %v2536 = vrcp.pop %v2519
    %v2537 = vmul.f32 %v2519, %v2536
    %v2538 = vsub.f32 1.0, %v2537
    %v2539 = vmul.f32 %v2536, %v2538
    %v2540 = vadd.f32 %v2536, %v2539
    %vm2541 = vweird.f32 %v2519
    %vm2542 = vweird.f32 %v2536
    %vm2543 = vmor %vm2541, %vm2542
    %v2544 = vsel %vm2543, %v2536, %v2540
    %v2545 = vand.u32 2147483647, %v2519
    %vm2546 = vcmp.eq.f32.partialorder %v2545, 8.507059e+37
    %v2547 = vand.u32 %v2519, 2147483648
    %v2548 = vor.u32 1.1754944e-38, %v2547
    %v2549 = vsel %vm2546, %v2548, %v2544
    %v2550 = vmul.f32 1.0, %v2549
    %v2551 = vrcp.pop %v2520
    %v2552 = vmul.f32 %v2520, %v2551
    %v2553 = vsub.f32 1.0, %v2552
    %v2554 = vmul.f32 %v2551, %v2553
    %v2555 = vadd.f32 %v2551, %v2554
    %vm2556 = vweird.f32 %v2520
    %vm2557 = vweird.f32 %v2551
    %vm2558 = vmor %vm2556, %vm2557
    %v2559 = vsel %vm2558, %v2551, %v2555
    %v2560 = vand.u32 2147483647, %v2520
    %vm2561 = vcmp.eq.f32.partialorder %v2560, 8.507059e+37
    %v2562 = vand.u32 %v2520, 2147483648
    %v2563 = vor.u32 1.1754944e-38, %v2562
    %v2564 = vsel %vm2561, %v2563, %v2559
    %v2565 = vmul.f32 1.0, %v2564
    %v2566 = vtanh.pop %v2508
    %v2567 = vld [vmem:[#allocation4] sm:$0xff]
    %v2568 = vmul.f32 %v2550, %v2567
    %v2569 = vmul.f32 %v2535, %v2566
    %v2570 = vadd.f32 %v2568, %v2569
    %v2571 = vtanh.pop %v2570
    %v2572 = vmul.f32 %v2565, %v2571
    %2573 = vst [vmem:[#allocation4] sm:$0xff] %v2570
    %v2574 = vpack.c.bf16 %v2572, %v2572
    %2575 = vst [vmem:[#allocation3] sm:$0xf] %v2574
    %s2576 = scalar_lea.vmem [#allocation10], 24
    %2577 = vst [vmem:[%s2576] sm:$0xf] %v2574
    %s2578 = smul.u32 7, 4
    %s2579 = smul.addr %s2578, 8
    %s2580 = scalar_lea.vmem [#allocation2], %s2579
    %v2581 = vld [vmem:[%s2580] sm:$0xff]
    %v2582 = vld [vmem:[%s2580 + $0x8] sm:$0xff]
    %v2583 = vld [vmem:[%s2580 + $0x10] sm:$0xff]
    %v2584 = vld [vmem:[%s2580 + $0x18] sm:$0xff]
    %v2585 = vld [vmem:[#allocation3] sm:$0xf]
    %v2586 = vld [vmem:[#allocation8] sm:$0xff]
    %v2587 = vld [vmem:[#allocation8 + $0x8] sm:$0xff]
    %v2588 = vld [vmem:[#allocation8 + $0x10] sm:$0xff]
    %v2589 = vld [vmem:[#allocation8 + $0x18] sm:$0xff]
    %v2590 = vld [vmem:[#allocation8 + $0x20] sm:$0xff]
    %v2591 = vld [vmem:[#allocation8 + $0x28] sm:$0xff]
    %v2592 = vld [vmem:[#allocation8 + $0x30] sm:$0xff]
    %v2593 = vld [vmem:[#allocation8 + $0x38] sm:$0xff]
    %v2594 = vld [vmem:[#allocation8 + $0x40] sm:$0xff]
    %v2595 = vld [vmem:[#allocation8 + $0x48] sm:$0xff]
    %v2596 = vld [vmem:[#allocation8 + $0x50] sm:$0xff]
    %v2597 = vld [vmem:[#allocation8 + $0x58] sm:$0xff]
    %v2598 = vld [vmem:[#allocation8 + $0x60] sm:$0xff]
    %v2599 = vld [vmem:[#allocation8 + $0x68] sm:$0xff]
    %v2600 = vld [vmem:[#allocation8 + $0x70] sm:$0xff]
    %v2601 = vld [vmem:[#allocation8 + $0x78] sm:$0xff]
    %v2602 = vld [vmem:[#allocation8 + $0x80] sm:$0xff]
    %v2603 = vld [vmem:[#allocation8 + $0x88] sm:$0xff]
    %v2604 = vld [vmem:[#allocation8 + $0x90] sm:$0xff]
    %v2605 = vld [vmem:[#allocation8 + $0x98] sm:$0xff]
    %v2606 = vld [vmem:[#allocation8 + $0xa0] sm:$0xff]
    %v2607 = vld [vmem:[#allocation8 + $0xa8] sm:$0xff]
    %v2608 = vld [vmem:[#allocation8 + $0xb0] sm:$0xff]
    %v2609 = vld [vmem:[#allocation8 + $0xb8] sm:$0xff]
    %v2610 = vld [vmem:[#allocation8 + $0xc0] sm:$0xff]
    %v2611 = vld [vmem:[#allocation8 + $0xc8] sm:$0xff]
    %v2612 = vld [vmem:[#allocation8 + $0xd0] sm:$0xff]
    %v2613 = vld [vmem:[#allocation8 + $0xd8] sm:$0xff]
    %v2614 = vld [vmem:[#allocation8 + $0xe0] sm:$0xff]
    %v2615 = vld [vmem:[#allocation8 + $0xe8] sm:$0xff]
    %v2616 = vld [vmem:[#allocation8 + $0xf0] sm:$0xff]
    %v2617 = vld [vmem:[#allocation8 + $0xf8] sm:$0xff]
    %v2650 = vunpack.c.l.b16 %v2586
    %v2651 = vunpack.c.h.b16 %v2586
    %v2652 = vunpack.c.l.b16 %v2587
    %v2653 = vunpack.c.h.b16 %v2587
    %v2654 = vunpack.c.l.b16 %v2588
    %v2655 = vunpack.c.h.b16 %v2588
    %v2656 = vunpack.c.l.b16 %v2589
    %v2657 = vunpack.c.h.b16 %v2589
    %v2658 = vunpack.c.l.b16 %v2590
    %v2659 = vunpack.c.h.b16 %v2590
    %v2660 = vunpack.c.l.b16 %v2591
    %v2661 = vunpack.c.h.b16 %v2591
    %v2662 = vunpack.c.l.b16 %v2592
    %v2663 = vunpack.c.h.b16 %v2592
    %v2664 = vunpack.c.l.b16 %v2593
    %v2665 = vunpack.c.h.b16 %v2593
    %v2666 = vunpack.c.l.b16 %v2594
    %v2667 = vunpack.c.h.b16 %v2594
    %v2668 = vunpack.c.l.b16 %v2595
    %v2669 = vunpack.c.h.b16 %v2595
    %v2670 = vunpack.c.l.b16 %v2596
    %v2671 = vunpack.c.h.b16 %v2596
    %v2672 = vunpack.c.l.b16 %v2597
    %v2673 = vunpack.c.h.b16 %v2597
    %v2674 = vunpack.c.l.b16 %v2598
    %v2675 = vunpack.c.h.b16 %v2598
    %v2676 = vunpack.c.l.b16 %v2599
    %v2677 = vunpack.c.h.b16 %v2599
    %v2678 = vunpack.c.l.b16 %v2600
    %v2679 = vunpack.c.h.b16 %v2600
    %v2680 = vunpack.c.l.b16 %v2601
    %v2681 = vunpack.c.h.b16 %v2601
    %v2682 = vunpack.c.l.b16 %v2602
    %v2683 = vunpack.c.h.b16 %v2602
    %v2684 = vunpack.c.l.b16 %v2603
    %v2685 = vunpack.c.h.b16 %v2603
    %v2686 = vunpack.c.l.b16 %v2604
    %v2687 = vunpack.c.h.b16 %v2604
    %v2688 = vunpack.c.l.b16 %v2605
    %v2689 = vunpack.c.h.b16 %v2605
    %v2690 = vunpack.c.l.b16 %v2606
    %v2691 = vunpack.c.h.b16 %v2606
    %v2692 = vunpack.c.l.b16 %v2607
    %v2693 = vunpack.c.h.b16 %v2607
    %v2694 = vunpack.c.l.b16 %v2608
    %v2695 = vunpack.c.h.b16 %v2608
    %v2696 = vunpack.c.l.b16 %v2609
    %v2697 = vunpack.c.h.b16 %v2609
    %v2698 = vunpack.c.l.b16 %v2610
    %v2699 = vunpack.c.h.b16 %v2610
    %v2700 = vunpack.c.l.b16 %v2611
    %v2701 = vunpack.c.h.b16 %v2611
    %v2702 = vunpack.c.l.b16 %v2612
    %v2703 = vunpack.c.h.b16 %v2612
    %v2704 = vunpack.c.l.b16 %v2613
    %v2705 = vunpack.c.h.b16 %v2613
    %v2706 = vunpack.c.l.b16 %v2614
    %v2707 = vunpack.c.h.b16 %v2614
    %v2708 = vunpack.c.l.b16 %v2615
    %v2709 = vunpack.c.h.b16 %v2615
    %v2710 = vunpack.c.l.b16 %v2616
    %v2711 = vunpack.c.h.b16 %v2616
    %v2712 = vunpack.c.l.b16 %v2617
    %v2713 = vunpack.c.h.b16 %v2617
    %v2714 = vpack.c.b16 %v2654, %v2650
    %v2715 = vpack.c.b16 %v2655, %v2651
    %v2716 = vpack.c.b16 %v2656, %v2652
    %v2717 = vpack.c.b16 %v2657, %v2653
    %v2718 = vpack.c.b16 %v2662, %v2658
    %v2719 = vpack.c.b16 %v2663, %v2659
    %v2720 = vpack.c.b16 %v2664, %v2660
    %v2721 = vpack.c.b16 %v2665, %v2661
    %v2722 = vpack.c.b16 %v2670, %v2666
    %v2723 = vpack.c.b16 %v2671, %v2667
    %v2724 = vpack.c.b16 %v2672, %v2668
    %v2725 = vpack.c.b16 %v2673, %v2669
    %v2726 = vpack.c.b16 %v2678, %v2674
    %v2727 = vpack.c.b16 %v2679, %v2675
    %v2728 = vpack.c.b16 %v2680, %v2676
    %v2729 = vpack.c.b16 %v2681, %v2677
    %v2730 = vpack.c.b16 %v2686, %v2682
    %v2731 = vpack.c.b16 %v2687, %v2683
    %v2732 = vpack.c.b16 %v2688, %v2684
    %v2733 = vpack.c.b16 %v2689, %v2685
    %v2734 = vpack.c.b16 %v2694, %v2690
    %v2735 = vpack.c.b16 %v2695, %v2691
    %v2736 = vpack.c.b16 %v2696, %v2692
    %v2737 = vpack.c.b16 %v2697, %v2693
    %v2738 = vpack.c.b16 %v2702, %v2698
    %v2739 = vpack.c.b16 %v2703, %v2699
    %v2740 = vpack.c.b16 %v2704, %v2700
    %v2741 = vpack.c.b16 %v2705, %v2701
    %v2742 = vpack.c.b16 %v2710, %v2706
    %v2743 = vpack.c.b16 %v2711, %v2707
    %v2744 = vpack.c.b16 %v2712, %v2708
    %v2745 = vpack.c.b16 %v2713, %v2709
    %2778 = vmatpush.bf16.msra.mxu0 %v2742
    %2779 = vmatpush.bf16.msra.mxu0 %v2738
    %2780 = vmatpush.bf16.msra.mxu0 %v2734
    %2781 = vmatpush.bf16.msra.mxu0 %v2730
    %2782 = vmatpush.bf16.msra.mxu0 %v2726
    %2783 = vmatpush.bf16.msra.mxu0 %v2722
    %2784 = vmatpush.bf16.msra.mxu0 %v2718
    %2785 = vmatpush.bf16.msra.mxu0 %v2714
    %2786 = vmatmul.bf16.gmra.mxu0 %v2585
    %v2787 = vpop.f32.mrf.mxu0
    %v2788 = vadd.f32 0.0, %v2787
    %v2789 = vpop.f32.mrf.mxu0
    %2790 = vdwg.mxu0
    %2791 = vmatpush.bf16.msra.mxu0 %v2743
    %2792 = vmatpush.bf16.msra.mxu0 %v2739
    %2793 = vmatpush.bf16.msra.mxu0 %v2735
    %2794 = vmatpush.bf16.msra.mxu0 %v2731
    %2795 = vmatpush.bf16.msra.mxu0 %v2727
    %2796 = vmatpush.bf16.msra.mxu0 %v2723
    %2797 = vmatpush.bf16.msra.mxu0 %v2719
    %2798 = vmatpush.bf16.msra.mxu0 %v2715
    %2799 = vmatmul.bf16.gmra.mxu0 %v2585
    %v2800 = vpop.f32.mrf.mxu0
    %v2801 = vadd.f32 0.0, %v2800
    %v2802 = vpop.f32.mrf.mxu0
    %2803 = vdwg.mxu0
    %2804 = vmatpush.bf16.msra.mxu0 %v2744
    %2805 = vmatpush.bf16.msra.mxu0 %v2740
    %2806 = vmatpush.bf16.msra.mxu0 %v2736
    %2807 = vmatpush.bf16.msra.mxu0 %v2732
    %2808 = vmatpush.bf16.msra.mxu0 %v2728
    %2809 = vmatpush.bf16.msra.mxu0 %v2724
    %2810 = vmatpush.bf16.msra.mxu0 %v2720
    %2811 = vmatpush.bf16.msra.mxu0 %v2716
    %2812 = vmatmul.bf16.gmra.mxu0 %v2585
    %v2813 = vpop.f32.mrf.mxu0
    %v2814 = vadd.f32 0.0, %v2813
    %v2815 = vpop.f32.mrf.mxu0
    %2816 = vdwg.mxu0
    %2817 = vmatpush.bf16.msra.mxu0 %v2745
    %2818 = vmatpush.bf16.msra.mxu0 %v2741
    %2819 = vmatpush.bf16.msra.mxu0 %v2737
    %2820 = vmatpush.bf16.msra.mxu0 %v2733
    %2821 = vmatpush.bf16.msra.mxu0 %v2729
    %2822 = vmatpush.bf16.msra.mxu0 %v2725
    %2823 = vmatpush.bf16.msra.mxu0 %v2721
    %2824 = vmatpush.bf16.msra.mxu0 %v2717
    %2825 = vmatmul.bf16.gmra.mxu0 %v2585
    %v2826 = vpop.f32.mrf.mxu0
    %v2827 = vadd.f32 0.0, %v2826
    %v2828 = vpop.f32.mrf.mxu0
    %2829 = vdwg.mxu0
    %v2830 = vadd.f32 %v2581, %v2788
    %v2831 = vadd.f32 %v2582, %v2801
    %v2832 = vadd.f32 %v2583, %v2814
    %v2833 = vadd.f32 %v2584, %v2827
    %v2834 = vxor.u32 %v2830, 2147483648
    %v2835 = vxor.u32 %v2831, 2147483648
    %v2836 = vxor.u32 %v2832, 2147483648
    %v2837 = vmul.f32 %v2834, 1.442695
    %v2838 = vpow.pop %v2837
    %v2839 = vmul.f32 %v2835, 1.442695
    %v2840 = vpow.pop %v2839
    %v2841 = vmul.f32 %v2836, 1.442695
    %v2842 = vpow.pop %v2841
    %v2843 = vadd.f32 %v2838, 1.0
    %v2844 = vadd.f32 %v2840, 1.0
    %v2845 = vadd.f32 %v2842, 1.0
    %v2846 = vrcp.pop %v2843
    %v2847 = vmul.f32 %v2843, %v2846
    %v2848 = vsub.f32 1.0, %v2847
    %v2849 = vmul.f32 %v2846, %v2848
    %v2850 = vadd.f32 %v2846, %v2849
    %vm2851 = vweird.f32 %v2843
    %vm2852 = vweird.f32 %v2846
    %vm2853 = vmor %vm2851, %vm2852
    %v2854 = vsel %vm2853, %v2846, %v2850
    %v2855 = vand.u32 2147483647, %v2843
    %vm2856 = vcmp.eq.f32.partialorder %v2855, 8.507059e+37
    %v2857 = vand.u32 %v2843, 2147483648
    %v2858 = vor.u32 1.1754944e-38, %v2857
    %v2859 = vsel %vm2856, %v2858, %v2854
    %v2860 = vmul.f32 1.0, %v2859
    %v2861 = vrcp.pop %v2844
    %v2862 = vmul.f32 %v2844, %v2861
    %v2863 = vsub.f32 1.0, %v2862
    %v2864 = vmul.f32 %v2861, %v2863
    %v2865 = vadd.f32 %v2861, %v2864
    %vm2866 = vweird.f32 %v2844
    %vm2867 = vweird.f32 %v2861
    %vm2868 = vmor %vm2866, %vm2867
    %v2869 = vsel %vm2868, %v2861, %v2865
    %v2870 = vand.u32 2147483647, %v2844
    %vm2871 = vcmp.eq.f32.partialorder %v2870, 8.507059e+37
    %v2872 = vand.u32 %v2844, 2147483648
    %v2873 = vor.u32 1.1754944e-38, %v2872
    %v2874 = vsel %vm2871, %v2873, %v2869
    %v2875 = vmul.f32 1.0, %v2874
    %v2876 = vrcp.pop %v2845
    %v2877 = vmul.f32 %v2845, %v2876
    %v2878 = vsub.f32 1.0, %v2877
    %v2879 = vmul.f32 %v2876, %v2878
    %v2880 = vadd.f32 %v2876, %v2879
    %vm2881 = vweird.f32 %v2845
    %vm2882 = vweird.f32 %v2876
    %vm2883 = vmor %vm2881, %vm2882
    %v2884 = vsel %vm2883, %v2876, %v2880
    %v2885 = vand.u32 2147483647, %v2845
    %vm2886 = vcmp.eq.f32.partialorder %v2885, 8.507059e+37
    %v2887 = vand.u32 %v2845, 2147483648
    %v2888 = vor.u32 1.1754944e-38, %v2887
    %v2889 = vsel %vm2886, %v2888, %v2884
    %v2890 = vmul.f32 1.0, %v2889
    %v2891 = vtanh.pop %v2833
    %v2892 = vld [vmem:[#allocation4] sm:$0xff]
    %v2893 = vmul.f32 %v2875, %v2892
    %v2894 = vmul.f32 %v2860, %v2891
    %v2895 = vadd.f32 %v2893, %v2894
    %v2896 = vtanh.pop %v2895
    %v2897 = vmul.f32 %v2890, %v2896
    %2898 = vst [vmem:[#allocation4] sm:$0xff] %v2895
    %v2899 = vpack.c.bf16 %v2897, %v2897
    %2900 = vst [vmem:[#allocation3] sm:$0xf] %v2899
    %s2901 = scalar_lea.vmem [#allocation10], 28
    %2902 = vst [vmem:[%s2901] sm:$0xf] %v2899
    // Predicated region
    $region30: #{tpu_custom_call.1} parent=1 // pred_check
      _
    $region31: #{tpu_custom_call.1} parent=1 // pred_check_branch
      %2904 = sbr.rel (0) target = $region33
    $region32: #{tpu_custom_call.1} parent=1 // pred_region
      %2906 = vsyncadd [#allocation7], 0
      %s2907 = sshll.u32 [#allocation10], 4
      %s2908 = int_to_ptr.vmem [resolvable:$true] %s2907
      %s2909 = sshll.u32 %s4, 4
      %s2910 = int_to_ptr.hbm [resolvable:$true] %s2909
      %2915 = dma.vmem_to_hbm [thread:$0]  %s2908, 512, %s2910, [#allocation7], 64, 64, 4
    $region33: #{tpu_custom_call.1} parent=1 // pred_fallthru
      _
    // Predicated region
    $region34: #{tpu_custom_call.1} parent=1 // pred_check
      _
    $region35: #{tpu_custom_call.1} parent=1 // pred_check_branch
      %2917 = sbr.rel (0) target = $region37
    $region36: #{tpu_custom_call.1} parent=1 // pred_region
      %2919 = dma.done [#allocation7], 512
    $region37: #{tpu_custom_call.1} parent=1 // pred_fallthru
      _
    %2920 = vsyncpa [#allocation6], 1
    %2921 = vsyncpa [#allocation9], 1
    %2922 = vsyncpa [#allocation7], 1

</llo_original>
